<compile_context>
chip_gen: v7x
topology: tpu7x:2x2x1
jax: 0.10.0
libtpu: 0.0.40
codegen_flags: <defaults>
</compile_context>

<pallas_src>
import functools

import jax
import jax.numpy as jnp
import numpy as np
from jax.experimental import pallas as pl
from jax.experimental.pallas import tpu as pltpu

# (kernel_size, dilation) of the 5 TDNN Conv1d layers — static structure.
_TDNN_SPECS = ((5, 1), (3, 2), (3, 3), (1, 1), (1, 1))
_BF16 = jnp.bfloat16


def _full_block(shape):
    """BlockSpec covering the whole array (block == full dims => always legal)."""
    zeros = (0,) * len(shape)
    return pl.BlockSpec(shape, lambda *_: zeros)


def _sigmoid(v):
    # Exact logistic for the SE / GRU gates: these feed multiplicative paths and
    # the 512-step recurrence, so we keep full accuracy here.  The softmax
    # denominators (uniform per-row scaling) use the EUP approx reciprocal.
    return 1.0 / (1.0 + jnp.exp(-v))


# ---------------------------------------------------------------------------
# Kernels 1-3: dilated Conv1d (im2col) + ReLU + folded BN + SE, time-major
# ---------------------------------------------------------------------------
def _tdnn_se_block_kernel(x_ref, w_ref, b_ref, scale_ref, shift_ref,
                          sw1_ref, sb1_ref, sw2_ref, sb2_ref, o_ref,
                          *, k, dilation, t_out):
    # x_ref: (1, T_in, C_in) time-major (channels on lanes).
    # im2col: K time-shifted windows read directly from the ref (static sublane
    # slices), stacked on the contraction axis -> ONE MXU matmul.
    taps = [x_ref[0, j * dilation:j * dilation + t_out, :] for j in range(k)]
    xcat = taps[0] if k == 1 else jnp.concatenate(taps, axis=-1)   # (T_out, K*C_in)
    y = jnp.dot(xcat.astype(_BF16), w_ref[...],
                preferred_element_type=jnp.float32) + b_ref[...]
    y = jnp.maximum(y, 0.0)                                  # conv bias + ReLU
    y = y * scale_ref[...] + shift_ref[...]                  # inference BatchNorm
    # SE: time mean (sublane reduce, lane-dense) -> bottleneck MLP -> gate.
    s = jnp.sum(y, axis=0, keepdims=True) * (1.0 / t_out)    # (1, C_out)
    hmid = jnp.maximum(
        jnp.dot(s.astype(_BF16), sw1_ref[...],
                preferred_element_type=jnp.float32) + sb1_ref[...], 0.0)
    gate = _sigmoid(jnp.dot(hmid.astype(_BF16), sw2_ref[...],
                            preferred_element_type=jnp.float32) + sb2_ref[...])
    o_ref[0] = (y * gate).astype(o_ref.dtype)


def _tdnn_se_block(x, bp, dilation):
    # x: (B, T_in, C_in) time-major.
    B, t_in, c_in = x.shape
    w = bp["w"]                                              # torch (C_out, C_in, K)
    c_out, _, k = w.shape
    c_mid = bp["se_w1"].shape[0]
    t_out = t_in - (k - 1) * dilation
    # (K, C_in, C_out) -> (K*C_in, C_out) im2col weight, bf16 for 1-pass MXU.
    w_im2col = jnp.transpose(w, (2, 1, 0)).reshape(k * c_in, c_out).astype(_BF16)

    kernel = functools.partial(_tdnn_se_block_kernel,
                               k=k, dilation=dilation, t_out=t_out)
    flops = 2 * B * (t_out * k * c_in * c_out + 2 * c_out * c_mid)
    bytes_accessed = (4 * B * (t_in * c_in + t_out * c_out)
                      + 2 * (k * c_in * c_out + 2 * c_out * c_mid)
                      + 4 * (4 * c_out + c_mid))

    # NOTE: per-channel vectors are (1, C) lane-major (tiny padded VMEM blocks).
    args = (x, w_im2col,
            bp["b"].reshape(1, c_out),
            bp["bn_scale"].reshape(1, c_out), bp["bn_shift"].reshape(1, c_out),
            bp["se_w1"].T.astype(_BF16), bp["se_b1"].reshape(1, c_mid),
            bp["se_w2"].T.astype(_BF16), bp["se_b2"].reshape(1, c_out))
    return pl.pallas_call(
        kernel,
        out_shape=jax.ShapeDtypeStruct((B, t_out, c_out), x.dtype),
        grid_spec=pltpu.PrefetchScalarGridSpec(
            num_scalar_prefetch=0,
            grid=(B,),
            in_specs=[pl.BlockSpec((1, t_in, c_in), lambda i: (i, 0, 0))]
                     + [_full_block(a.shape) for a in args[1:]],
            out_specs=pl.BlockSpec((1, t_out, c_out), lambda i: (i, 0, 0)),
        ),
        compiler_params=pltpu.CompilerParams(dimension_semantics=("parallel",)),
        cost_estimate=pl.CostEstimate(flops=flops, transcendentals=B * c_out,
                                      bytes_accessed=bytes_accessed),
    )(*args)


# ---------------------------------------------------------------------------
# Kernel 4: fused 1x1-conv layers 4 + 5 (layer 5 has no BatchNorm)
# ---------------------------------------------------------------------------
def _tdnn_pw2_se_kernel(x_ref, w4_ref, b4_ref, s4_ref, t4_ref,
                        sw14_ref, sb14_ref, sw24_ref, sb24_ref,
                        w5_ref, b5_ref,
                        sw15_ref, sb15_ref, sw25_ref, sb25_ref,
                        o_ref, *, t_out):
    def se_gate(y, w1_ref, b1_ref, w2_ref, b2_ref):
        s = jnp.sum(y, axis=0, keepdims=True) * (1.0 / t_out)
        hmid = jnp.maximum(
            jnp.dot(s.astype(_BF16), w1_ref[...],
                    preferred_element_type=jnp.float32) + b1_ref[...], 0.0)
        return _sigmoid(jnp.dot(hmid.astype(_BF16), w2_ref[...],
                                preferred_element_type=jnp.float32) + b2_ref[...])

    x = x_ref[0].astype(_BF16)                               # (T, C_in)
    y4 = jnp.maximum(jnp.dot(x, w4_ref[...],
                             preferred_element_type=jnp.float32) + b4_ref[...], 0.0)
    y4 = y4 * s4_ref[...] + t4_ref[...]                      # BN4 (inference)
    y4 = y4 * se_gate(y4, sw14_ref, sb14_ref, sw24_ref, sb24_ref)
    y5 = jnp.maximum(jnp.dot(y4.astype(_BF16), w5_ref[...],
                             preferred_element_type=jnp.float32) + b5_ref[...], 0.0)
    y5 = y5 * se_gate(y5, sw15_ref, sb15_ref, sw25_ref, sb25_ref)   # no BN on layer 5
    o_ref[0] = y5.astype(o_ref.dtype)


def _tdnn_pw2_block(x, bp4, bp5):
    B, t, c_in = x.shape
    c4 = bp4["w"].shape[0]
    c5 = bp5["w"].shape[0]
    m4 = bp4["se_w1"].shape[0]
    m5 = bp5["se_w1"].shape[0]
    args = (x,
            bp4["w"][:, :, 0].T.astype(_BF16), bp4["b"].reshape(1, c4),
            bp4["bn_scale"].reshape(1, c4), bp4["bn_shift"].reshape(1, c4),
            bp4["se_w1"].T.astype(_BF16), bp4["se_b1"].reshape(1, m4),
            bp4["se_w2"].T.astype(_BF16), bp4["se_b2"].reshape(1, c4),
            bp5["w"][:, :, 0].T.astype(_BF16), bp5["b"].reshape(1, c5),
            bp5["se_w1"].T.astype(_BF16), bp5["se_b1"].reshape(1, m5),
            bp5["se_w2"].T.astype(_BF16), bp5["se_b2"].reshape(1, c5))
    kernel = functools.partial(_tdnn_pw2_se_kernel, t_out=t)
    return pl.pallas_call(
        kernel,
        out_shape=jax.ShapeDtypeStruct((B, t, c5), x.dtype),
        grid_spec=pltpu.PrefetchScalarGridSpec(
            num_scalar_prefetch=0,
            grid=(B,),
            in_specs=[pl.BlockSpec((1, t, c_in), lambda i: (i, 0, 0))]
                     + [_full_block(a.shape) for a in args[1:]],
            out_specs=pl.BlockSpec((1, t, c5), lambda i: (i, 0, 0)),
        ),
        compiler_params=pltpu.CompilerParams(dimension_semantics=("parallel",)),
        cost_estimate=pl.CostEstimate(
            flops=2 * B * t * (c_in * c4 + c4 * c5),
            transcendentals=B * (c4 + c5),
            bytes_accessed=4 * B * t * (c_in + c5) + 2 * (c_in * c4 + c4 * c5)),
    )(*args)


# ---------------------------------------------------------------------------
# Kernel 5: fused 2-layer GRU (gate-fused matmuls, hoisted input projection,
#           ref-fed weights, 1-step software pipelining of the two layers)
# ---------------------------------------------------------------------------
def _gru2_kernel(gi1_ref, wh1_ref, bh1_ref, wi2_ref, bi2_ref, wh2_ref, bh2_ref,
                 o_ref):
    S, B, _ = gi1_ref.shape
    H = o_ref.shape[-1]

    def gates(gi, gh, h):
        # gi = x@Wi_cat + bi_cat ; gh = h@Wh_cat + bh_cat  (torch GRU equations)
        r = _sigmoid(gi[:, :H] + gh[:, :H])
        z = _sigmoid(gi[:, H:2 * H] + gh[:, H:2 * H])
        n = jnp.tanh(gi[:, 2 * H:] + r * gh[:, 2 * H:])
        return (1.0 - z) * n + z * h

    def cell1(s, h1):                                        # layer 1, step s
        gi = gi1_ref[s].astype(jnp.float32)                  # hoisted x@Wi1 + bi1
        gh = jnp.dot(h1.astype(_BF16), wh1_ref[...],
                     preferred_element_type=jnp.float32) + bh1_ref[...]
        return gates(gi, gh, h1)

    def cell2(x_t, h2):                                      # layer 2
        gi = jnp.dot(x_t.astype(_BF16), wi2_ref[...],
                     preferred_element_type=jnp.float32) + bi2_ref[...]
        gh = jnp.dot(h2.astype(_BF16), wh2_ref[...],
                     preferred_element_type=jnp.float32) + bh2_ref[...]
        return gates(gi, gh, h2)

    zeros = jnp.zeros((B, H), jnp.float32)
    h1_first = cell1(0, zeros)

    def step(s, carry):
        # Pipeline: layer-2 step s and layer-1 step s+1 are independent given
        # the carry, so both cells' MXU/EUP work overlaps inside one iteration.
        h1, h2 = carry
        h2_new = cell2(h1, h2)
        o_ref[s] = h2_new.astype(o_ref.dtype)
        h1_next = cell1(jnp.minimum(s + 1, S - 1), h1)       # last one is discarded
        return h1_next, h2_new

    jax.lax.fori_loop(0, S, step, (h1_first, zeros))


def _gru_2layer(h, gp):
    # h: (B, T', C) time-major TDNN output; GRU sequence axis = C, features = T'.
    B = h.shape[0]
    H = gp["wh1"].shape[-1]

    def cat(w):                                              # (3, a, b) -> (a, 3b)
        return jnp.concatenate([w[0], w[1], w[2]], axis=-1)

    wi1c, wh1c = cat(gp["wi1"]), cat(gp["wh1"])
    bi1c, bh1c = cat(gp["bi1"]), cat(gp["bh1"])
    wi2c, wh2c = cat(gp["wi2"]), cat(gp["wh2"])
    bi2c, bh2c = cat(gp["bi2"]), cat(gp["bh2"])

    xg = jnp.transpose(h, (2, 0, 1))                         # (S, B, I)
    S, _, I = xg.shape
    # Hoisted layer-1 input projection: one MXU-friendly matmul instead of S
    # tiny per-step matmuls (review item; done as a separate well-shaped matmul).
    gi1 = jnp.dot(xg, wi1c) + bi1c                           # (S, B, 3H)

    flops = 2 * S * B * 3 * H * (I + 3 * H)
    return pl.pallas_call(
        _gru2_kernel,
        out_shape=jax.ShapeDtypeStruct((S, B, H), h.dtype),
        grid_spec=pltpu.PrefetchScalarGridSpec(
            num_scalar_prefetch=0,
            grid=(1,),
            in_specs=[_full_block(gi1.shape),
                      _full_block(wh1c.shape), _full_block(bh1c.shape),
                      _full_block(wi2c.shape), _full_block(bi2c.shape),
                      _full_block(wh2c.shape), _full_block(bh2c.shape)],
            out_specs=_full_block((S, B, H)),
        ),
        compiler_params=pltpu.CompilerParams(dimension_semantics=("arbitrary",)),
        cost_estimate=pl.CostEstimate(
            flops=flops, transcendentals=6 * S * B * H,
            bytes_accessed=4 * S * B * (3 * H + H) + 2 * 9 * H * H),
    )(gi1, wh1c.astype(_BF16), bh1c, wi2c.astype(_BF16), bi2c,
      wh2c.astype(_BF16), bh2c)                              # (S, B, H)


# ---------------------------------------------------------------------------
# Kernel 6: AttentiveStatsPool + (folded BN ->) Linear -> Linear -> softmax
# ---------------------------------------------------------------------------
def _asp_head_kernel(x_ref, w1_ref, b1_ref, w2_ref, b2_ref,
                     wl_ref, bl_ref, wf_ref, bf_ref, o_ref):
    x = x_ref[0]                                             # (frames, channels) f32
    a = jnp.tanh(jnp.dot(x.astype(_BF16), w1_ref[...],
                         preferred_element_type=jnp.float32) + b1_ref[...])
    e = jnp.dot(a.astype(_BF16), w2_ref[...],
                preferred_element_type=jnp.float32) + b2_ref[...]
    e = e - jnp.max(e, axis=0, keepdims=True)                # softmax over frames
    p = jnp.exp(e)
    alpha = p * pl.reciprocal(jnp.sum(p, axis=0, keepdims=True), approx=True)
    ax = alpha * x
    mean = jnp.sum(ax, axis=0, keepdims=True)                # (1, C) single-pass
    msq = jnp.sum(ax * x, axis=0, keepdims=True)             # weighted sum & sumsq
    std = jnp.sqrt(jnp.maximum(msq - mean * mean, 1e-9))
    pooled = jnp.concatenate([mean, std], axis=-1)           # (1, 2C) lane-dense
    # Head: BN5/BN6 are pre-folded into wl/bl, so it is just two matmuls.
    emb = jnp.dot(pooled.astype(_BF16), wl_ref[...],
                  preferred_element_type=jnp.float32) + bl_ref[...]
    logits = jnp.dot(emb.astype(_BF16), wf_ref[...],
                     preferred_element_type=jnp.float32) + bf_ref[...]
    logits = logits - jnp.max(logits, axis=-1, keepdims=True)
    z = jnp.exp(logits)
    probs = z * pl.reciprocal(jnp.sum(z, axis=-1, keepdims=True), approx=True)
    o_ref[0] = probs.astype(o_ref.dtype)


def _asp_head(x, ap, hp):
    # x: (B, frames, channels) with channels on the lane axis.
    B, T, C = x.shape
    CB = ap["w1"].shape[0]
    E = hp["wl"].shape[1]
    NC = hp["wf"].shape[1]
    # Fold the two inference BatchNorms into the linear layers (review item).
    wl_f = (hp["s5"][:, None] * hp["wl"]) * hp["s6"][None, :]
    bl_f = (hp["t5"] @ hp["wl"] + hp["bl"]) * hp["s6"] + hp["t6"]

    args = (x,
            ap["w1"].T.astype(_BF16), ap["b1"].reshape(1, CB),
            ap["w2"].T.astype(_BF16), ap["b2"].reshape(1, C),
            wl_f.astype(_BF16), bl_f.reshape(1, E),
            hp["wf"].astype(_BF16), hp["bf"].reshape(1, NC))
    out = pl.pallas_call(
        _asp_head_kernel,
        out_shape=jax.ShapeDtypeStruct((B, 1, NC), x.dtype),
        grid_spec=pltpu.PrefetchScalarGridSpec(
            num_scalar_prefetch=0,
            grid=(B,),
            in_specs=[pl.BlockSpec((1, T, C), lambda i: (i, 0, 0))]
                     + [_full_block(a.shape) for a in args[1:]],
            out_specs=pl.BlockSpec((1, 1, NC), lambda i: (i, 0, 0)),
        ),
        compiler_params=pltpu.CompilerParams(dimension_semantics=("parallel",)),
        cost_estimate=pl.CostEstimate(
            flops=B * (4 * T * C * CB + 8 * T * C + 4 * C * E + 2 * E * NC),
            transcendentals=B * T * (CB + C),
            bytes_accessed=4 * B * T * C + 2 * (2 * C * CB + 2 * C * E + E * NC)),
    )(*args)
    return out.reshape(B, NC)


# ---------------------------------------------------------------------------
# Full forward
# ---------------------------------------------------------------------------
def tdnn_gru_se_forward(x, params):
    """x: (B, 1, input_size, T) -> class probabilities (B, num_class)."""
    h = jnp.transpose(x[:, 0], (0, 2, 1))                    # (B, T, F) time-major
    blocks = params["blocks"]
    for bp, (_, dil) in zip(blocks[:3], _TDNN_SPECS[:3]):
        h = _tdnn_se_block(h, bp, dil)                       # (B, T', C)
    h = _tdnn_pw2_block(h, blocks[3], blocks[4])             # fused 1x1 layers 4+5
    gru_out = _gru_2layer(h, params["gru"])                  # (S=C, B, H=T')
    asp_in = jnp.transpose(gru_out, (1, 2, 0))               # single (B, T', C) relayout
    return _asp_head(asp_in, params["asp"], params["head"])  # (B, num_class)


# ---------------------------------------------------------------------------
# Parameters + pure-JAX reference
# ---------------------------------------------------------------------------
def _fold_bn(gamma, beta, mean, var, eps=1e-5):
    scale = gamma / jnp.sqrt(var + eps)
    return scale, beta - mean * scale


def init_params(key, cfg):
    F, C = cfg["input_size"], cfg["channels"]
    E, NC = cfg["embd_dim"], cfg["num_class"]
    R, CB, T = cfg["se_reduction"], cfg["asp_bottleneck"], cfg["time"]
    frames = T - sum((k - 1) * d for k, d in _TDNN_SPECS)    # GRU feature/hidden dim

    kit = iter(jax.random.split(key, 96))
    nxt = lambda: next(kit)

    def bn(n):
        gamma = 1.0 + 0.1 * jax.random.normal(nxt(), (n,), jnp.float32)
        beta = 0.1 * jax.random.normal(nxt(), (n,), jnp.float32)
        mean = 0.1 * jax.random.normal(nxt(), (n,), jnp.float32)
        var = jax.random.uniform(nxt(), (n,), minval=0.5, maxval=1.5)
        return _fold_bn(gamma, beta, mean, var)

    blocks = []
    c_in = F
    for li, (k, _) in enumerate(_TDNN_SPECS):
        c_out = C
        w = jax.random.normal(nxt(), (c_out, c_in, k), jnp.float32) / np.sqrt(c_in * k)
        b = 0.1 * jax.random.normal(nxt(), (c_out,), jnp.float32)
        if li < 4:                                           # layer 5 has no BatchNorm
            scale, shift = bn(c_out)
        else:
            scale = jnp.ones((c_out,), jnp.float32)
            shift = jnp.zeros((c_out,), jnp.float32)
        c_mid = c_out // R
        blocks.append(dict(
            w=w, b=b, bn_scale=scale, bn_shift=shift,
            se_w1=jax.random.normal(nxt(), (c_mid, c_out), jnp.float32) / np.sqrt(c_out),
            se_b1=0.1 * jax.random.normal(nxt(), (c_mid,), jnp.float32),
            se_w2=jax.random.normal(nxt(), (c_out, c_mid), jnp.float32) / np.sqrt(c_mid),
            se_b2=0.1 * jax.random.normal(nxt(), (c_out,), jnp.float32)))
        c_in = c_out

    def gru_layer(in_dim, hid):
        return (jax.random.normal(nxt(), (3, in_dim, hid), jnp.float32) / np.sqrt(in_dim),
                jax.random.normal(nxt(), (3, hid, hid), jnp.float32) / np.sqrt(hid),
                0.1 * jax.random.normal(nxt(), (3, 1, hid), jnp.float32),
                0.1 * jax.random.normal(nxt(), (3, 1, hid), jnp.float32))

    wi1, wh1, bi1, bh1 = gru_layer(frames, frames)
    wi2, wh2, bi2, bh2 = gru_layer(frames, frames)
    gru = dict(wi1=wi1, wh1=wh1, bi1=bi1, bh1=bh1,
               wi2=wi2, wh2=wh2, bi2=bi2, bh2=bh2)

    asp = dict(
        w1=jax.random.normal(nxt(), (CB, C), jnp.float32) / np.sqrt(C),
        b1=0.1 * jax.random.normal(nxt(), (CB,), jnp.float32),
        w2=jax.random.normal(nxt(), (C, CB), jnp.float32) / np.sqrt(CB),
        b2=0.1 * jax.random.normal(nxt(), (C,), jnp.float32))

    s5, t5 = bn(2 * C)
    s6, t6 = bn(E)
    head = dict(
        s5=s5, t5=t5,
        wl=jax.random.normal(nxt(), (2 * C, E), jnp.float32) / np.sqrt(2 * C),
        bl=0.1 * jax.random.normal(nxt(), (E,), jnp.float32),
        s6=s6, t6=t6,
        wf=jax.random.normal(nxt(), (E, NC), jnp.float32) / np.sqrt(E),
        bf=0.1 * jax.random.normal(nxt(), (NC,), jnp.float32))

    return dict(blocks=blocks, gru=gru, asp=asp, head=head)


def _gru_layer_ref(x, wi, wh, bi, bh):
    B = x.shape[0]
    H = wh.shape[-1]

    def step(h, x_t):
        r = jax.nn.sigmoid(x_t @ wi[0] + h @ wh[0] + bi[0] + bh[0])
        z = jax.nn.sigmoid(x_t @ wi[1] + h @ wh[1] + bi[1] + bh[1])
        n = jnp.tanh(x_t @ wi[2] + bi[2] + r * (h @ wh[2] + bh[2]))
        h_new = (1.0 - z) * n + z * h
        return h_new, h_new

    h0 = jnp.zeros((B, H), jnp.float32)
    _, ys = jax.lax.scan(step, h0, jnp.transpose(x, (1, 0, 2)))
    return jnp.transpose(ys, (1, 0, 2))


def reference_forward(x, params):
    h = x[:, 0]
    for bp, (_, dil) in zip(params["blocks"], _TDNN_SPECS):
        y = jax.lax.conv_general_dilated(
            h, bp["w"], window_strides=(1,), padding="VALID",
            rhs_dilation=(dil,), dimension_numbers=("NCH", "OIH", "NCH"))
        y = jnp.maximum(y + bp["b"][None, :, None], 0.0)
        y = y * bp["bn_scale"][None, :, None] + bp["bn_shift"][None, :, None]
        s = jnp.mean(y, axis=-1)
        hm = jnp.maximum(s @ bp["se_w1"].T + bp["se_b1"], 0.0)
        gate = jax.nn.sigmoid(hm @ bp["se_w2"].T + bp["se_b2"])
        h = y * gate[:, :, None]
    g = params["gru"]
    h = _gru_layer_ref(h, g["wi1"], g["wh1"], g["bi1"], g["bh1"])
    h = _gru_layer_ref(h, g["wi2"], g["wh2"], g["bi2"], g["bh2"])
    ap = params["asp"]
    a = jnp.tanh(jnp.einsum("mc,bct->bmt", ap["w1"], h) + ap["b1"][None, :, None])
    e = jnp.einsum("cm,bmt->bct", ap["w2"], a) + ap["b2"][None, :, None]
    alpha = jax.nn.softmax(e, axis=2)
    mean = jnp.sum(alpha * h, axis=2)
    resid = jnp.sum(alpha * h * h, axis=2) - mean ** 2
    std = jnp.sqrt(jnp.maximum(resid, 1e-9))
    pooled = jnp.concatenate([mean, std], axis=1)
    hp = params["head"]
    o = pooled * hp["s5"] + hp["t5"]
    o = o @ hp["wl"] + hp["bl"]
    o = o * hp["s6"] + hp["t6"]
    logits = o @ hp["wf"] + hp["bf"]
    return jax.nn.softmax(logits, axis=-1)


if __name__ == "__main__":
    # Small shapes, same structure as the torch module (which hard-codes GRU
    # size 86 = T - 14 at T=100; here T=30 -> frames = 16).
    cfg = dict(input_size=16, channels=64, embd_dim=32, num_class=10,
               se_reduction=8, asp_bottleneck=32, time=30)
    key = jax.random.PRNGKey(0)
    pkey, xkey = jax.random.split(key)
    params = init_params(pkey, cfg)

    B = 2
    x = jax.random.normal(xkey, (B, 1, cfg["input_size"], cfg["time"]),
                          dtype=jnp.float32)

    fwd = jax.jit(tdnn_gru_se_forward)
    out = jax.block_until_ready(fwd(x, params))

    ref = jax.block_until_ready(jax.jit(reference_forward)(x, params))

    assert out.shape == (B, cfg["num_class"]), out.shape
    # Tolerances account for single-pass bf16 MXU feeds (kernel and reference
    # both run at default matmul precision now) and the EUP approx reciprocal
    # used in the softmax normalisations.
    np.testing.assert_allclose(np.asarray(out), np.asarray(ref),
                               rtol=3e-2, atol=3e-3)
    np.testing.assert_allclose(np.asarray(out).sum(-1), np.ones(B), atol=5e-3)
    print("KERNEL_OK")
</pallas_src>

<mosaic_0001>
module attributes {stable_mosaic.version = 11 : i64} {
  func.func @_tdnn_se_block_kernel(%arg0: i32, %arg1: memref<1x30x16xf32, #tpu.memory_space<vmem>>, %arg2: memref<80x64xbf16, #tpu.memory_space<vmem>>, %arg3: memref<1x64xf32, #tpu.memory_space<vmem>>, %arg4: memref<1x64xf32, #tpu.memory_space<vmem>>, %arg5: memref<1x64xf32, #tpu.memory_space<vmem>>, %arg6: memref<64x8xbf16, #tpu.memory_space<vmem>>, %arg7: memref<1x8xf32, #tpu.memory_space<vmem>>, %arg8: memref<8x64xbf16, #tpu.memory_space<vmem>>, %arg9: memref<1x64xf32, #tpu.memory_space<vmem>>, %arg10: memref<1x26x64xf32, #tpu.memory_space<vmem>>) attributes {dimension_semantics = [#tpu.dimension_semantics<parallel>], iteration_bounds = array<i64: 2>, scalar_prefetch = 0 : i64, scratch_operands = 0 : i64, tpu.core_type = #tpu.core_type<tc>, window_params = [{transform_indices = @transform_0, window_bounds = array<i64: 1, 30, 16>}, {pipeline_mode = #tpu.pipeline_mode<synchronous>, transform_indices = @transform_1, window_bounds = array<i64: 80, 64>}, {pipeline_mode = #tpu.pipeline_mode<synchronous>, transform_indices = @transform_2, window_bounds = array<i64: 1, 64>}, {pipeline_mode = #tpu.pipeline_mode<synchronous>, transform_indices = @transform_3, window_bounds = array<i64: 1, 64>}, {pipeline_mode = #tpu.pipeline_mode<synchronous>, transform_indices = @transform_4, window_bounds = array<i64: 1, 64>}, {pipeline_mode = #tpu.pipeline_mode<synchronous>, transform_indices = @transform_5, window_bounds = array<i64: 64, 8>}, {pipeline_mode = #tpu.pipeline_mode<synchronous>, transform_indices = @transform_6, window_bounds = array<i64: 1, 8>}, {pipeline_mode = #tpu.pipeline_mode<synchronous>, transform_indices = @transform_7, window_bounds = array<i64: 8, 64>}, {pipeline_mode = #tpu.pipeline_mode<synchronous>, transform_indices = @transform_8, window_bounds = array<i64: 1, 64>}, {transform_indices = @transform_9, window_bounds = array<i64: 1, 26, 64>}]} {
    %c0 = arith.constant 0 : index
    %c0_0 = arith.constant 0 : index
    %c0_1 = arith.constant 0 : index
    %0 = vector.load %arg1[%c0, %c0_0, %c0_1] : memref<1x30x16xf32, #tpu.memory_space<vmem>>, vector<1x26x16xf32>
    %1 = vector.shape_cast %0 : vector<1x26x16xf32> to vector<26x16xf32>
    %c0_2 = arith.constant 0 : index
    %c1 = arith.constant 1 : index
    %c0_3 = arith.constant 0 : index
    %2 = vector.load %arg1[%c0_2, %c1, %c0_3] : memref<1x30x16xf32, #tpu.memory_space<vmem>>, vector<1x26x16xf32>
    %3 = vector.shape_cast %2 : vector<1x26x16xf32> to vector<26x16xf32>
    %c0_4 = arith.constant 0 : index
    %c2 = arith.constant 2 : index
    %c0_5 = arith.constant 0 : index
    %4 = vector.load %arg1[%c0_4, %c2, %c0_5] : memref<1x30x16xf32, #tpu.memory_space<vmem>>, vector<1x26x16xf32>
    %5 = vector.shape_cast %4 : vector<1x26x16xf32> to vector<26x16xf32>
    %c0_6 = arith.constant 0 : index
    %c3 = arith.constant 3 : index
    %c0_7 = arith.constant 0 : index
    %6 = vector.load %arg1[%c0_6, %c3, %c0_7] : memref<1x30x16xf32, #tpu.memory_space<vmem>>, vector<1x26x16xf32>
    %7 = vector.shape_cast %6 : vector<1x26x16xf32> to vector<26x16xf32>
    %c0_8 = arith.constant 0 : index
    %c4 = arith.constant 4 : index
    %c0_9 = arith.constant 0 : index
    %8 = vector.load %arg1[%c0_8, %c4, %c0_9] : memref<1x30x16xf32, #tpu.memory_space<vmem>>, vector<1x26x16xf32>
    %9 = vector.shape_cast %8 : vector<1x26x16xf32> to vector<26x16xf32>
    %10 = tpu.concatenate %1, %3, %5, %7, %9 in 1 : vector<26x16xf32>, vector<26x16xf32>, vector<26x16xf32>, vector<26x16xf32>, vector<26x16xf32> -> vector<26x80xf32>
    %11 = arith.truncf %10 : vector<26x80xf32> to vector<26x80xbf16>
    %c0_10 = arith.constant 0 : index
    %c0_11 = arith.constant 0 : index
    %12 = vector.load %arg2[%c0_10, %c0_11] : memref<80x64xbf16, #tpu.memory_space<vmem>>, vector<80x64xbf16>
    %cst = arith.constant dense<0.000000e+00> : vector<26x64xf32>
    %13 = tpu.matmul %11, %12, %cst {dimension_numbers = #tpu.dot_dimension_numbers<[1], [0], [0], [1], [0, 0, 1, 1], [], []>} : vector<26x80xbf16>, vector<80x64xbf16>, vector<26x64xf32> -> vector<26x64xf32>
    %c0_12 = arith.constant 0 : index
    %c0_13 = arith.constant 0 : index
    %14 = vector.load %arg3[%c0_12, %c0_13] : memref<1x64xf32, #tpu.memory_space<vmem>>, vector<1x64xf32>
    %15 = vector.broadcast %14 : vector<1x64xf32> to vector<26x64xf32>
    %16 = arith.addf %13, %15 : vector<26x64xf32>
    %cst_14 = arith.constant 0.000000e+00 : f32
    %17 = vector.broadcast %cst_14 : f32 to vector<26x64xf32>
    %18 = arith.maximumf %16, %17 : vector<26x64xf32>
    %c0_15 = arith.constant 0 : index
    %c0_16 = arith.constant 0 : index
    %19 = vector.load %arg4[%c0_15, %c0_16] : memref<1x64xf32, #tpu.memory_space<vmem>>, vector<1x64xf32>
    %20 = vector.broadcast %19 : vector<1x64xf32> to vector<26x64xf32>
    %21 = arith.mulf %18, %20 : vector<26x64xf32>
    %c0_17 = arith.constant 0 : index
    %c0_18 = arith.constant 0 : index
    %22 = vector.load %arg5[%c0_17, %c0_18] : memref<1x64xf32, #tpu.memory_space<vmem>>, vector<1x64xf32>
    %23 = vector.broadcast %22 : vector<1x64xf32> to vector<26x64xf32>
    %24 = arith.addf %21, %23 : vector<26x64xf32>
    %cst_19 = arith.constant dense<0.000000e+00> : vector<64xf32>
    %25 = vector.multi_reduction <add>, %24, %cst_19 [0] : vector<26x64xf32> to vector<64xf32>
    %26 = vector.shape_cast %25 : vector<64xf32> to vector<1x64xf32>
    %cst_20 = arith.constant 0.0384615399 : f32
    %27 = vector.broadcast %cst_20 : f32 to vector<1x64xf32>
    %28 = arith.mulf %26, %27 : vector<1x64xf32>
    %29 = arith.truncf %28 : vector<1x64xf32> to vector<1x64xbf16>
    %c0_21 = arith.constant 0 : index
    %c0_22 = arith.constant 0 : index
    %30 = vector.load %arg6[%c0_21, %c0_22] : memref<64x8xbf16, #tpu.memory_space<vmem>>, vector<64x8xbf16>
    %cst_23 = arith.constant dense<0.000000e+00> : vector<1x8xf32>
    %31 = tpu.matmul %29, %30, %cst_23 {dimension_numbers = #tpu.dot_dimension_numbers<[1], [0], [0], [1], [0, 0, 1, 1], [], []>} : vector<1x64xbf16>, vector<64x8xbf16>, vector<1x8xf32> -> vector<1x8xf32>
    %c0_24 = arith.constant 0 : index
    %c0_25 = arith.constant 0 : index
    %32 = vector.load %arg7[%c0_24, %c0_25] : memref<1x8xf32, #tpu.memory_space<vmem>>, vector<1x8xf32>
    %33 = arith.addf %31, %32 : vector<1x8xf32>
    %cst_26 = arith.constant 0.000000e+00 : f32
    %34 = vector.broadcast %cst_26 : f32 to vector<1x8xf32>
    %35 = arith.maximumf %33, %34 : vector<1x8xf32>
    %36 = arith.truncf %35 : vector<1x8xf32> to vector<1x8xbf16>
    %c0_27 = arith.constant 0 : index
    %c0_28 = arith.constant 0 : index
    %37 = vector.load %arg8[%c0_27, %c0_28] : memref<8x64xbf16, #tpu.memory_space<vmem>>, vector<8x64xbf16>
    %cst_29 = arith.constant dense<0.000000e+00> : vector<1x64xf32>
    %38 = tpu.matmul %36, %37, %cst_29 {dimension_numbers = #tpu.dot_dimension_numbers<[1], [0], [0], [1], [0, 0, 1, 1], [], []>} : vector<1x8xbf16>, vector<8x64xbf16>, vector<1x64xf32> -> vector<1x64xf32>
    %c0_30 = arith.constant 0 : index
    %c0_31 = arith.constant 0 : index
    %39 = vector.load %arg9[%c0_30, %c0_31] : memref<1x64xf32, #tpu.memory_space<vmem>>, vector<1x64xf32>
    %40 = arith.addf %38, %39 : vector<1x64xf32>
    %cst_32 = arith.constant 0.000000e+00 : f32
    %41 = vector.broadcast %cst_32 : f32 to vector<1x64xf32>
    %42 = arith.subf %41, %40 : vector<1x64xf32>
    %43 = math.exp %42 : vector<1x64xf32>
    %cst_33 = arith.constant 1.000000e+00 : f32
    %44 = vector.broadcast %cst_33 : f32 to vector<1x64xf32>
    %45 = arith.addf %44, %43 : vector<1x64xf32>
    %cst_34 = arith.constant 1.000000e+00 : f32
    %46 = vector.broadcast %cst_34 : f32 to vector<1x64xf32>
    %47 = arith.divf %46, %45 : vector<1x64xf32>
    %48 = vector.broadcast %47 : vector<1x64xf32> to vector<26x64xf32>
    %49 = arith.mulf %24, %48 : vector<26x64xf32>
    %c0_35 = arith.constant 0 : index
    %c0_36 = arith.constant 0 : index
    %c0_37 = arith.constant 0 : index
    %50 = vector.load %arg10[%c0_35, %c0_36, %c0_37] : memref<1x26x64xf32, #tpu.memory_space<vmem>>, vector<1x26x64xf32>
    %51 = vector.shape_cast %50 : vector<1x26x64xf32> to vector<26x64xf32>
    %52 = vector.shape_cast %49 : vector<26x64xf32> to vector<1x26x64xf32>
    tpu.vector_store %arg10[%c0_35, %c0_36, %c0_37], %52 {strides = array<i32>} : memref<1x26x64xf32, #tpu.memory_space<vmem>>, vector<1x26x64xf32>,
    return
  }
  func.func @transform_0(%arg0: i32) -> (i32, i32, i32) {
    %c0_i32 = arith.constant 0 : i32
    %c0_i32_0 = arith.constant 0 : i32
    %c0_i32_1 = arith.constant 0 : i32
    return %arg0, %c0_i32, %c0_i32_0 : i32, i32, i32
  }
  func.func @transform_1(%arg0: i32) -> (i32, i32) {
    %c0_i32 = arith.constant 0 : i32
    %c0_i32_0 = arith.constant 0 : i32
    %c0_i32_1 = arith.constant 0 : i32
    return %c0_i32, %c0_i32_0 : i32, i32
  }
  func.func @transform_2(%arg0: i32) -> (i32, i32) {
    %c0_i32 = arith.constant 0 : i32
    %c0_i32_0 = arith.constant 0 : i32
    %c0_i32_1 = arith.constant 0 : i32
    return %c0_i32, %c0_i32_0 : i32, i32
  }
  func.func @transform_3(%arg0: i32) -> (i32, i32) {
    %c0_i32 = arith.constant 0 : i32
    %c0_i32_0 = arith.constant 0 : i32
    %c0_i32_1 = arith.constant 0 : i32
    return %c0_i32, %c0_i32_0 : i32, i32
  }
  func.func @transform_4(%arg0: i32) -> (i32, i32) {
    %c0_i32 = arith.constant 0 : i32
    %c0_i32_0 = arith.constant 0 : i32
    %c0_i32_1 = arith.constant 0 : i32
    return %c0_i32, %c0_i32_0 : i32, i32
  }
  func.func @transform_5(%arg0: i32) -> (i32, i32) {
    %c0_i32 = arith.constant 0 : i32
    %c0_i32_0 = arith.constant 0 : i32
    %c0_i32_1 = arith.constant 0 : i32
    return %c0_i32, %c0_i32_0 : i32, i32
  }
  func.func @transform_6(%arg0: i32) -> (i32, i32) {
    %c0_i32 = arith.constant 0 : i32
    %c0_i32_0 = arith.constant 0 : i32
    %c0_i32_1 = arith.constant 0 : i32
    return %c0_i32, %c0_i32_0 : i32, i32
  }
  func.func @transform_7(%arg0: i32) -> (i32, i32) {
    %c0_i32 = arith.constant 0 : i32
    %c0_i32_0 = arith.constant 0 : i32
    %c0_i32_1 = arith.constant 0 : i32
    return %c0_i32, %c0_i32_0 : i32, i32
  }
  func.func @transform_8(%arg0: i32) -> (i32, i32) {
    %c0_i32 = arith.constant 0 : i32
    %c0_i32_0 = arith.constant 0 : i32
    %c0_i32_1 = arith.constant 0 : i32
    return %c0_i32, %c0_i32_0 : i32, i32
  }
  func.func @transform_9(%arg0: i32) -> (i32, i32, i32) {
    %c0_i32 = arith.constant 0 : i32
    %c0_i32_0 = arith.constant 0 : i32
    %c0_i32_1 = arith.constant 0 : i32
    return %arg0, %c0_i32, %c0_i32_0 : i32, i32, i32
  }
}

module attributes {stable_mosaic.version = 11 : i64} {
  func.func @_tdnn_se_block_kernel(%arg0: i32, %arg1: memref<1x26x64xf32, #tpu.memory_space<vmem>>, %arg2: memref<192x64xbf16, #tpu.memory_space<vmem>>, %arg3: memref<1x64xf32, #tpu.memory_space<vmem>>, %arg4: memref<1x64xf32, #tpu.memory_space<vmem>>, %arg5: memref<1x64xf32, #tpu.memory_space<vmem>>, %arg6: memref<64x8xbf16, #tpu.memory_space<vmem>>, %arg7: memref<1x8xf32, #tpu.memory_space<vmem>>, %arg8: memref<8x64xbf16, #tpu.memory_space<vmem>>, %arg9: memref<1x64xf32, #tpu.memory_space<vmem>>, %arg10: memref<1x22x64xf32, #tpu.memory_space<vmem>>) attributes {dimension_semantics = [#tpu.dimension_semantics<parallel>], iteration_bounds = array<i64: 2>, scalar_prefetch = 0 : i64, scratch_operands = 0 : i64, tpu.core_type = #tpu.core_type<tc>, window_params = [{transform_indices = @transform_0, window_bounds = array<i64: 1, 26, 64>}, {pipeline_mode = #tpu.pipeline_mode<synchronous>, transform_indices = @transform_1, window_bounds = array<i64: 192, 64>}, {pipeline_mode = #tpu.pipeline_mode<synchronous>, transform_indices = @transform_2, window_bounds = array<i64: 1, 64>}, {pipeline_mode = #tpu.pipeline_mode<synchronous>, transform_indices = @transform_3, window_bounds = array<i64: 1, 64>}, {pipeline_mode = #tpu.pipeline_mode<synchronous>, transform_indices = @transform_4, window_bounds = array<i64: 1, 64>}, {pipeline_mode = #tpu.pipeline_mode<synchronous>, transform_indices = @transform_5, window_bounds = array<i64: 64, 8>}, {pipeline_mode = #tpu.pipeline_mode<synchronous>, transform_indices = @transform_6, window_bounds = array<i64: 1, 8>}, {pipeline_mode = #tpu.pipeline_mode<synchronous>, transform_indices = @transform_7, window_bounds = array<i64: 8, 64>}, {pipeline_mode = #tpu.pipeline_mode<synchronous>, transform_indices = @transform_8, window_bounds = array<i64: 1, 64>}, {transform_indices = @transform_9, window_bounds = array<i64: 1, 22, 64>}]} {
    %c0 = arith.constant 0 : index
    %c0_0 = arith.constant 0 : index
    %c0_1 = arith.constant 0 : index
    %0 = vector.load %arg1[%c0, %c0_0, %c0_1] : memref<1x26x64xf32, #tpu.memory_space<vmem>>, vector<1x22x64xf32>
    %1 = vector.shape_cast %0 : vector<1x22x64xf32> to vector<22x64xf32>
    %c0_2 = arith.constant 0 : index
    %c2 = arith.constant 2 : index
    %c0_3 = arith.constant 0 : index
    %2 = vector.load %arg1[%c0_2, %c2, %c0_3] : memref<1x26x64xf32, #tpu.memory_space<vmem>>, vector<1x22x64xf32>
    %3 = vector.shape_cast %2 : vector<1x22x64xf32> to vector<22x64xf32>
    %c0_4 = arith.constant 0 : index
    %c4 = arith.constant 4 : index
    %c0_5 = arith.constant 0 : index
    %4 = vector.load %arg1[%c0_4, %c4, %c0_5] : memref<1x26x64xf32, #tpu.memory_space<vmem>>, vector<1x22x64xf32>
    %5 = vector.shape_cast %4 : vector<1x22x64xf32> to vector<22x64xf32>
    %6 = tpu.concatenate %1, %3, %5 in 1 : vector<22x64xf32>, vector<22x64xf32>, vector<22x64xf32> -> vector<22x192xf32>
    %7 = arith.truncf %6 : vector<22x192xf32> to vector<22x192xbf16>
    %c0_6 = arith.constant 0 : index
    %c0_7 = arith.constant 0 : index
    %8 = vector.load %arg2[%c0_6, %c0_7] : memref<192x64xbf16, #tpu.memory_space<vmem>>, vector<192x64xbf16>
    %cst = arith.constant dense<0.000000e+00> : vector<22x64xf32>
    %9 = tpu.matmul %7, %8, %cst {dimension_numbers = #tpu.dot_dimension_numbers<[1], [0], [0], [1], [0, 0, 1, 1], [], []>} : vector<22x192xbf16>, vector<192x64xbf16>, vector<22x64xf32> -> vector<22x64xf32>
    %c0_8 = arith.constant 0 : index
    %c0_9 = arith.constant 0 : index
    %10 = vector.load %arg3[%c0_8, %c0_9] : memref<1x64xf32, #tpu.memory_space<vmem>>, vector<1x64xf32>
    %11 = vector.broadcast %10 : vector<1x64xf32> to vector<22x64xf32>
    %12 = arith.addf %9, %11 : vector<22x64xf32>
    %cst_10 = arith.constant 0.000000e+00 : f32
    %13 = vector.broadcast %cst_10 : f32 to vector<22x64xf32>
    %14 = arith.maximumf %12, %13 : vector<22x64xf32>
    %c0_11 = arith.constant 0 : index
    %c0_12 = arith.constant 0 : index
    %15 = vector.load %arg4[%c0_11, %c0_12] : memref<1x64xf32, #tpu.memory_space<vmem>>, vector<1x64xf32>
    %16 = vector.broadcast %15 : vector<1x64xf32> to vector<22x64xf32>
    %17 = arith.mulf %14, %16 : vector<22x64xf32>
    %c0_13 = arith.constant 0 : index
    %c0_14 = arith.constant 0 : index
    %18 = vector.load %arg5[%c0_13, %c0_14] : memref<1x64xf32, #tpu.memory_space<vmem>>, vector<1x64xf32>
    %19 = vector.broadcast %18 : vector<1x64xf32> to vector<22x64xf32>
    %20 = arith.addf %17, %19 : vector<22x64xf32>
    %cst_15 = arith.constant dense<0.000000e+00> : vector<64xf32>
    %21 = vector.multi_reduction <add>, %20, %cst_15 [0] : vector<22x64xf32> to vector<64xf32>
    %22 = vector.shape_cast %21 : vector<64xf32> to vector<1x64xf32>
    %cst_16 = arith.constant 0.0454545468 : f32
    %23 = vector.broadcast %cst_16 : f32 to vector<1x64xf32>
    %24 = arith.mulf %22, %23 : vector<1x64xf32>
    %25 = arith.truncf %24 : vector<1x64xf32> to vector<1x64xbf16>
    %c0_17 = arith.constant 0 : index
    %c0_18 = arith.constant 0 : index
    %26 = vector.load %arg6[%c0_17, %c0_18] : memref<64x8xbf16, #tpu.memory_space<vmem>>, vector<64x8xbf16>
    %cst_19 = arith.constant dense<0.000000e+00> : vector<1x8xf32>
    %27 = tpu.matmul %25, %26, %cst_19 {dimension_numbers = #tpu.dot_dimension_numbers<[1], [0], [0], [1], [0, 0, 1, 1], [], []>} : vector<1x64xbf16>, vector<64x8xbf16>, vector<1x8xf32> -> vector<1x8xf32>
    %c0_20 = arith.constant 0 : index
    %c0_21 = arith.constant 0 : index
    %28 = vector.load %arg7[%c0_20, %c0_21] : memref<1x8xf32, #tpu.memory_space<vmem>>, vector<1x8xf32>
    %29 = arith.addf %27, %28 : vector<1x8xf32>
    %cst_22 = arith.constant 0.000000e+00 : f32
    %30 = vector.broadcast %cst_22 : f32 to vector<1x8xf32>
    %31 = arith.maximumf %29, %30 : vector<1x8xf32>
    %32 = arith.truncf %31 : vector<1x8xf32> to vector<1x8xbf16>
    %c0_23 = arith.constant 0 : index
    %c0_24 = arith.constant 0 : index
    %33 = vector.load %arg8[%c0_23, %c0_24] : memref<8x64xbf16, #tpu.memory_space<vmem>>, vector<8x64xbf16>
    %cst_25 = arith.constant dense<0.000000e+00> : vector<1x64xf32>
    %34 = tpu.matmul %32, %33, %cst_25 {dimension_numbers = #tpu.dot_dimension_numbers<[1], [0], [0], [1], [0, 0, 1, 1], [], []>} : vector<1x8xbf16>, vector<8x64xbf16>, vector<1x64xf32> -> vector<1x64xf32>
    %c0_26 = arith.constant 0 : index
    %c0_27 = arith.constant 0 : index
    %35 = vector.load %arg9[%c0_26, %c0_27] : memref<1x64xf32, #tpu.memory_space<vmem>>, vector<1x64xf32>
    %36 = arith.addf %34, %35 : vector<1x64xf32>
    %cst_28 = arith.constant 0.000000e+00 : f32
    %37 = vector.broadcast %cst_28 : f32 to vector<1x64xf32>
    %38 = arith.subf %37, %36 : vector<1x64xf32>
    %39 = math.exp %38 : vector<1x64xf32>
    %cst_29 = arith.constant 1.000000e+00 : f32
    %40 = vector.broadcast %cst_29 : f32 to vector<1x64xf32>
    %41 = arith.addf %40, %39 : vector<1x64xf32>
    %cst_30 = arith.constant 1.000000e+00 : f32
    %42 = vector.broadcast %cst_30 : f32 to vector<1x64xf32>
    %43 = arith.divf %42, %41 : vector<1x64xf32>
    %44 = vector.broadcast %43 : vector<1x64xf32> to vector<22x64xf32>
    %45 = arith.mulf %20, %44 : vector<22x64xf32>
    %c0_31 = arith.constant 0 : index
    %c0_32 = arith.constant 0 : index
    %c0_33 = arith.constant 0 : index
    %46 = vector.load %arg10[%c0_31, %c0_32, %c0_33] : memref<1x22x64xf32, #tpu.memory_space<vmem>>, vector<1x22x64xf32>
    %47 = vector.shape_cast %46 : vector<1x22x64xf32> to vector<22x64xf32>
    %48 = vector.shape_cast %45 : vector<22x64xf32> to vector<1x22x64xf32>
    tpu.vector_store %arg10[%c0_31, %c0_32, %c0_33], %48 {strides = array<i32>} : memref<1x22x64xf32, #tpu.memory_space<vmem>>, vector<1x22x64xf32>,
    return
  }
  func.func @transform_0(%arg0: i32) -> (i32, i32, i32) {
    %c0_i32 = arith.constant 0 : i32
    %c0_i32_0 = arith.constant 0 : i32
    %c0_i32_1 = arith.constant 0 : i32
    return %arg0, %c0_i32, %c0_i32_0 : i32, i32, i32
  }
  func.func @transform_1(%arg0: i32) -> (i32, i32) {
    %c0_i32 = arith.constant 0 : i32
    %c0_i32_0 = arith.constant 0 : i32
    %c0_i32_1 = arith.constant 0 : i32
    return %c0_i32, %c0_i32_0 : i32, i32
  }
  func.func @transform_2(%arg0: i32) -> (i32, i32) {
    %c0_i32 = arith.constant 0 : i32
    %c0_i32_0 = arith.constant 0 : i32
    %c0_i32_1 = arith.constant 0 : i32
    return %c0_i32, %c0_i32_0 : i32, i32
  }
  func.func @transform_3(%arg0: i32) -> (i32, i32) {
    %c0_i32 = arith.constant 0 : i32
    %c0_i32_0 = arith.constant 0 : i32
    %c0_i32_1 = arith.constant 0 : i32
    return %c0_i32, %c0_i32_0 : i32, i32
  }
  func.func @transform_4(%arg0: i32) -> (i32, i32) {
    %c0_i32 = arith.constant 0 : i32
    %c0_i32_0 = arith.constant 0 : i32
    %c0_i32_1 = arith.constant 0 : i32
    return %c0_i32, %c0_i32_0 : i32, i32
  }
  func.func @transform_5(%arg0: i32) -> (i32, i32) {
    %c0_i32 = arith.constant 0 : i32
    %c0_i32_0 = arith.constant 0 : i32
    %c0_i32_1 = arith.constant 0 : i32
    return %c0_i32, %c0_i32_0 : i32, i32
  }
  func.func @transform_6(%arg0: i32) -> (i32, i32) {
    %c0_i32 = arith.constant 0 : i32
    %c0_i32_0 = arith.constant 0 : i32
    %c0_i32_1 = arith.constant 0 : i32
    return %c0_i32, %c0_i32_0 : i32, i32
  }
  func.func @transform_7(%arg0: i32) -> (i32, i32) {
    %c0_i32 = arith.constant 0 : i32
    %c0_i32_0 = arith.constant 0 : i32
    %c0_i32_1 = arith.constant 0 : i32
    return %c0_i32, %c0_i32_0 : i32, i32
  }
  func.func @transform_8(%arg0: i32) -> (i32, i32) {
    %c0_i32 = arith.constant 0 : i32
    %c0_i32_0 = arith.constant 0 : i32
    %c0_i32_1 = arith.constant 0 : i32
    return %c0_i32, %c0_i32_0 : i32, i32
  }
  func.func @transform_9(%arg0: i32) -> (i32, i32, i32) {
    %c0_i32 = arith.constant 0 : i32
    %c0_i32_0 = arith.constant 0 : i32
    %c0_i32_1 = arith.constant 0 : i32
    return %arg0, %c0_i32, %c0_i32_0 : i32, i32, i32
  }
}

module attributes {stable_mosaic.version = 11 : i64} {
  func.func @_tdnn_se_block_kernel(%arg0: i32, %arg1: memref<1x22x64xf32, #tpu.memory_space<vmem>>, %arg2: memref<192x64xbf16, #tpu.memory_space<vmem>>, %arg3: memref<1x64xf32, #tpu.memory_space<vmem>>, %arg4: memref<1x64xf32, #tpu.memory_space<vmem>>, %arg5: memref<1x64xf32, #tpu.memory_space<vmem>>, %arg6: memref<64x8xbf16, #tpu.memory_space<vmem>>, %arg7: memref<1x8xf32, #tpu.memory_space<vmem>>, %arg8: memref<8x64xbf16, #tpu.memory_space<vmem>>, %arg9: memref<1x64xf32, #tpu.memory_space<vmem>>, %arg10: memref<1x16x64xf32, #tpu.memory_space<vmem>>) attributes {dimension_semantics = [#tpu.dimension_semantics<parallel>], iteration_bounds = array<i64: 2>, scalar_prefetch = 0 : i64, scratch_operands = 0 : i64, tpu.core_type = #tpu.core_type<tc>, window_params = [{transform_indices = @transform_0, window_bounds = array<i64: 1, 22, 64>}, {pipeline_mode = #tpu.pipeline_mode<synchronous>, transform_indices = @transform_1, window_bounds = array<i64: 192, 64>}, {pipeline_mode = #tpu.pipeline_mode<synchronous>, transform_indices = @transform_2, window_bounds = array<i64: 1, 64>}, {pipeline_mode = #tpu.pipeline_mode<synchronous>, transform_indices = @transform_3, window_bounds = array<i64: 1, 64>}, {pipeline_mode = #tpu.pipeline_mode<synchronous>, transform_indices = @transform_4, window_bounds = array<i64: 1, 64>}, {pipeline_mode = #tpu.pipeline_mode<synchronous>, transform_indices = @transform_5, window_bounds = array<i64: 64, 8>}, {pipeline_mode = #tpu.pipeline_mode<synchronous>, transform_indices = @transform_6, window_bounds = array<i64: 1, 8>}, {pipeline_mode = #tpu.pipeline_mode<synchronous>, transform_indices = @transform_7, window_bounds = array<i64: 8, 64>}, {pipeline_mode = #tpu.pipeline_mode<synchronous>, transform_indices = @transform_8, window_bounds = array<i64: 1, 64>}, {transform_indices = @transform_9, window_bounds = array<i64: 1, 16, 64>}]} {
    %c0 = arith.constant 0 : index
    %c0_0 = arith.constant 0 : index
    %c0_1 = arith.constant 0 : index
    %0 = vector.load %arg1[%c0, %c0_0, %c0_1] : memref<1x22x64xf32, #tpu.memory_space<vmem>>, vector<1x16x64xf32>
    %1 = vector.shape_cast %0 : vector<1x16x64xf32> to vector<16x64xf32>
    %c0_2 = arith.constant 0 : index
    %c3 = arith.constant 3 : index
    %c0_3 = arith.constant 0 : index
    %2 = vector.load %arg1[%c0_2, %c3, %c0_3] : memref<1x22x64xf32, #tpu.memory_space<vmem>>, vector<1x16x64xf32>
    %3 = vector.shape_cast %2 : vector<1x16x64xf32> to vector<16x64xf32>
    %c0_4 = arith.constant 0 : index
    %c6 = arith.constant 6 : index
    %c0_5 = arith.constant 0 : index
    %4 = vector.load %arg1[%c0_4, %c6, %c0_5] : memref<1x22x64xf32, #tpu.memory_space<vmem>>, vector<1x16x64xf32>
    %5 = vector.shape_cast %4 : vector<1x16x64xf32> to vector<16x64xf32>
    %6 = tpu.concatenate %1, %3, %5 in 1 : vector<16x64xf32>, vector<16x64xf32>, vector<16x64xf32> -> vector<16x192xf32>
    %7 = arith.truncf %6 : vector<16x192xf32> to vector<16x192xbf16>
    %c0_6 = arith.constant 0 : index
    %c0_7 = arith.constant 0 : index
    %8 = vector.load %arg2[%c0_6, %c0_7] : memref<192x64xbf16, #tpu.memory_space<vmem>>, vector<192x64xbf16>
    %cst = arith.constant dense<0.000000e+00> : vector<16x64xf32>
    %9 = tpu.matmul %7, %8, %cst {dimension_numbers = #tpu.dot_dimension_numbers<[1], [0], [0], [1], [0, 0, 1, 1], [], []>} : vector<16x192xbf16>, vector<192x64xbf16>, vector<16x64xf32> -> vector<16x64xf32>
    %c0_8 = arith.constant 0 : index
    %c0_9 = arith.constant 0 : index
    %10 = vector.load %arg3[%c0_8, %c0_9] : memref<1x64xf32, #tpu.memory_space<vmem>>, vector<1x64xf32>
    %11 = vector.broadcast %10 : vector<1x64xf32> to vector<16x64xf32>
    %12 = arith.addf %9, %11 : vector<16x64xf32>
    %cst_10 = arith.constant 0.000000e+00 : f32
    %13 = vector.broadcast %cst_10 : f32 to vector<16x64xf32>
    %14 = arith.maximumf %12, %13 : vector<16x64xf32>
    %c0_11 = arith.constant 0 : index
    %c0_12 = arith.constant 0 : index
    %15 = vector.load %arg4[%c0_11, %c0_12] : memref<1x64xf32, #tpu.memory_space<vmem>>, vector<1x64xf32>
    %16 = vector.broadcast %15 : vector<1x64xf32> to vector<16x64xf32>
    %17 = arith.mulf %14, %16 : vector<16x64xf32>
    %c0_13 = arith.constant 0 : index
    %c0_14 = arith.constant 0 : index
    %18 = vector.load %arg5[%c0_13, %c0_14] : memref<1x64xf32, #tpu.memory_space<vmem>>, vector<1x64xf32>
    %19 = vector.broadcast %18 : vector<1x64xf32> to vector<16x64xf32>
    %20 = arith.addf %17, %19 : vector<16x64xf32>
    %cst_15 = arith.constant dense<0.000000e+00> : vector<64xf32>
    %21 = vector.multi_reduction <add>, %20, %cst_15 [0] : vector<16x64xf32> to vector<64xf32>
    %22 = vector.shape_cast %21 : vector<64xf32> to vector<1x64xf32>
    %cst_16 = arith.constant 6.250000e-02 : f32
    %23 = vector.broadcast %cst_16 : f32 to vector<1x64xf32>
    %24 = arith.mulf %22, %23 : vector<1x64xf32>
    %25 = arith.truncf %24 : vector<1x64xf32> to vector<1x64xbf16>
    %c0_17 = arith.constant 0 : index
    %c0_18 = arith.constant 0 : index
    %26 = vector.load %arg6[%c0_17, %c0_18] : memref<64x8xbf16, #tpu.memory_space<vmem>>, vector<64x8xbf16>
    %cst_19 = arith.constant dense<0.000000e+00> : vector<1x8xf32>
    %27 = tpu.matmul %25, %26, %cst_19 {dimension_numbers = #tpu.dot_dimension_numbers<[1], [0], [0], [1], [0, 0, 1, 1], [], []>} : vector<1x64xbf16>, vector<64x8xbf16>, vector<1x8xf32> -> vector<1x8xf32>
    %c0_20 = arith.constant 0 : index
    %c0_21 = arith.constant 0 : index
    %28 = vector.load %arg7[%c0_20, %c0_21] : memref<1x8xf32, #tpu.memory_space<vmem>>, vector<1x8xf32>
    %29 = arith.addf %27, %28 : vector<1x8xf32>
    %cst_22 = arith.constant 0.000000e+00 : f32
    %30 = vector.broadcast %cst_22 : f32 to vector<1x8xf32>
    %31 = arith.maximumf %29, %30 : vector<1x8xf32>
    %32 = arith.truncf %31 : vector<1x8xf32> to vector<1x8xbf16>
    %c0_23 = arith.constant 0 : index
    %c0_24 = arith.constant 0 : index
    %33 = vector.load %arg8[%c0_23, %c0_24] : memref<8x64xbf16, #tpu.memory_space<vmem>>, vector<8x64xbf16>
    %cst_25 = arith.constant dense<0.000000e+00> : vector<1x64xf32>
    %34 = tpu.matmul %32, %33, %cst_25 {dimension_numbers = #tpu.dot_dimension_numbers<[1], [0], [0], [1], [0, 0, 1, 1], [], []>} : vector<1x8xbf16>, vector<8x64xbf16>, vector<1x64xf32> -> vector<1x64xf32>
    %c0_26 = arith.constant 0 : index
    %c0_27 = arith.constant 0 : index
    %35 = vector.load %arg9[%c0_26, %c0_27] : memref<1x64xf32, #tpu.memory_space<vmem>>, vector<1x64xf32>
    %36 = arith.addf %34, %35 : vector<1x64xf32>
    %cst_28 = arith.constant 0.000000e+00 : f32
    %37 = vector.broadcast %cst_28 : f32 to vector<1x64xf32>
    %38 = arith.subf %37, %36 : vector<1x64xf32>
    %39 = math.exp %38 : vector<1x64xf32>
    %cst_29 = arith.constant 1.000000e+00 : f32
    %40 = vector.broadcast %cst_29 : f32 to vector<1x64xf32>
    %41 = arith.addf %40, %39 : vector<1x64xf32>
    %cst_30 = arith.constant 1.000000e+00 : f32
    %42 = vector.broadcast %cst_30 : f32 to vector<1x64xf32>
    %43 = arith.divf %42, %41 : vector<1x64xf32>
    %44 = vector.broadcast %43 : vector<1x64xf32> to vector<16x64xf32>
    %45 = arith.mulf %20, %44 : vector<16x64xf32>
    %c0_31 = arith.constant 0 : index
    %c0_32 = arith.constant 0 : index
    %c0_33 = arith.constant 0 : index
    %46 = vector.load %arg10[%c0_31, %c0_32, %c0_33] : memref<1x16x64xf32, #tpu.memory_space<vmem>>, vector<1x16x64xf32>
    %47 = vector.shape_cast %46 : vector<1x16x64xf32> to vector<16x64xf32>
    %48 = vector.shape_cast %45 : vector<16x64xf32> to vector<1x16x64xf32>
    tpu.vector_store %arg10[%c0_31, %c0_32, %c0_33], %48 {strides = array<i32>} : memref<1x16x64xf32, #tpu.memory_space<vmem>>, vector<1x16x64xf32>,
    return
  }
  func.func @transform_0(%arg0: i32) -> (i32, i32, i32) {
    %c0_i32 = arith.constant 0 : i32
    %c0_i32_0 = arith.constant 0 : i32
    %c0_i32_1 = arith.constant 0 : i32
    return %arg0, %c0_i32, %c0_i32_0 : i32, i32, i32
  }
  func.func @transform_1(%arg0: i32) -> (i32, i32) {
    %c0_i32 = arith.constant 0 : i32
    %c0_i32_0 = arith.constant 0 : i32
    %c0_i32_1 = arith.constant 0 : i32
    return %c0_i32, %c0_i32_0 : i32, i32
  }
  func.func @transform_2(%arg0: i32) -> (i32, i32) {
    %c0_i32 = arith.constant 0 : i32
    %c0_i32_0 = arith.constant 0 : i32
    %c0_i32_1 = arith.constant 0 : i32
    return %c0_i32, %c0_i32_0 : i32, i32
  }
  func.func @transform_3(%arg0: i32) -> (i32, i32) {
    %c0_i32 = arith.constant 0 : i32
    %c0_i32_0 = arith.constant 0 : i32
    %c0_i32_1 = arith.constant 0 : i32
    return %c0_i32, %c0_i32_0 : i32, i32
  }
  func.func @transform_4(%arg0: i32) -> (i32, i32) {
    %c0_i32 = arith.constant 0 : i32
    %c0_i32_0 = arith.constant 0 : i32
    %c0_i32_1 = arith.constant 0 : i32
    return %c0_i32, %c0_i32_0 : i32, i32
  }
  func.func @transform_5(%arg0: i32) -> (i32, i32) {
    %c0_i32 = arith.constant 0 : i32
    %c0_i32_0 = arith.constant 0 : i32
    %c0_i32_1 = arith.constant 0 : i32
    return %c0_i32, %c0_i32_0 : i32, i32
  }
  func.func @transform_6(%arg0: i32) -> (i32, i32) {
    %c0_i32 = arith.constant 0 : i32
    %c0_i32_0 = arith.constant 0 : i32
    %c0_i32_1 = arith.constant 0 : i32
    return %c0_i32, %c0_i32_0 : i32, i32
  }
  func.func @transform_7(%arg0: i32) -> (i32, i32) {
    %c0_i32 = arith.constant 0 : i32
    %c0_i32_0 = arith.constant 0 : i32
    %c0_i32_1 = arith.constant 0 : i32
    return %c0_i32, %c0_i32_0 : i32, i32
  }
  func.func @transform_8(%arg0: i32) -> (i32, i32) {
    %c0_i32 = arith.constant 0 : i32
    %c0_i32_0 = arith.constant 0 : i32
    %c0_i32_1 = arith.constant 0 : i32
    return %c0_i32, %c0_i32_0 : i32, i32
  }
  func.func @transform_9(%arg0: i32) -> (i32, i32, i32) {
    %c0_i32 = arith.constant 0 : i32
    %c0_i32_0 = arith.constant 0 : i32
    %c0_i32_1 = arith.constant 0 : i32
    return %arg0, %c0_i32, %c0_i32_0 : i32, i32, i32
  }
}

module attributes {stable_mosaic.version = 11 : i64} {
  func.func @_tdnn_pw2_se_kernel(%arg0: i32, %arg1: memref<1x16x64xf32, #tpu.memory_space<vmem>>, %arg2: memref<64x64xbf16, #tpu.memory_space<vmem>>, %arg3: memref<1x64xf32, #tpu.memory_space<vmem>>, %arg4: memref<1x64xf32, #tpu.memory_space<vmem>>, %arg5: memref<1x64xf32, #tpu.memory_space<vmem>>, %arg6: memref<64x8xbf16, #tpu.memory_space<vmem>>, %arg7: memref<1x8xf32, #tpu.memory_space<vmem>>, %arg8: memref<8x64xbf16, #tpu.memory_space<vmem>>, %arg9: memref<1x64xf32, #tpu.memory_space<vmem>>, %arg10: memref<64x64xbf16, #tpu.memory_space<vmem>>, %arg11: memref<1x64xf32, #tpu.memory_space<vmem>>, %arg12: memref<64x8xbf16, #tpu.memory_space<vmem>>, %arg13: memref<1x8xf32, #tpu.memory_space<vmem>>, %arg14: memref<8x64xbf16, #tpu.memory_space<vmem>>, %arg15: memref<1x64xf32, #tpu.memory_space<vmem>>, %arg16: memref<1x16x64xf32, #tpu.memory_space<vmem>>) attributes {dimension_semantics = [#tpu.dimension_semantics<parallel>], iteration_bounds = array<i64: 2>, scalar_prefetch = 0 : i64, scratch_operands = 0 : i64, tpu.core_type = #tpu.core_type<tc>, window_params = [{transform_indices = @transform_0, window_bounds = array<i64: 1, 16, 64>}, {pipeline_mode = #tpu.pipeline_mode<synchronous>, transform_indices = @transform_1, window_bounds = array<i64: 64, 64>}, {pipeline_mode = #tpu.pipeline_mode<synchronous>, transform_indices = @transform_2, window_bounds = array<i64: 1, 64>}, {pipeline_mode = #tpu.pipeline_mode<synchronous>, transform_indices = @transform_3, window_bounds = array<i64: 1, 64>}, {pipeline_mode = #tpu.pipeline_mode<synchronous>, transform_indices = @transform_4, window_bounds = array<i64: 1, 64>}, {pipeline_mode = #tpu.pipeline_mode<synchronous>, transform_indices = @transform_5, window_bounds = array<i64: 64, 8>}, {pipeline_mode = #tpu.pipeline_mode<synchronous>, transform_indices = @transform_6, window_bounds = array<i64: 1, 8>}, {pipeline_mode = #tpu.pipeline_mode<synchronous>, transform_indices = @transform_7, window_bounds = array<i64: 8, 64>}, {pipeline_mode = #tpu.pipeline_mode<synchronous>, transform_indices = @transform_8, window_bounds = array<i64: 1, 64>}, {pipeline_mode = #tpu.pipeline_mode<synchronous>, transform_indices = @transform_9, window_bounds = array<i64: 64, 64>}, {pipeline_mode = #tpu.pipeline_mode<synchronous>, transform_indices = @transform_10, window_bounds = array<i64: 1, 64>}, {pipeline_mode = #tpu.pipeline_mode<synchronous>, transform_indices = @transform_11, window_bounds = array<i64: 64, 8>}, {pipeline_mode = #tpu.pipeline_mode<synchronous>, transform_indices = @transform_12, window_bounds = array<i64: 1, 8>}, {pipeline_mode = #tpu.pipeline_mode<synchronous>, transform_indices = @transform_13, window_bounds = array<i64: 8, 64>}, {pipeline_mode = #tpu.pipeline_mode<synchronous>, transform_indices = @transform_14, window_bounds = array<i64: 1, 64>}, {transform_indices = @transform_15, window_bounds = array<i64: 1, 16, 64>}]} {
    %c0 = arith.constant 0 : index
    %c0_0 = arith.constant 0 : index
    %c0_1 = arith.constant 0 : index
    %0 = vector.load %arg1[%c0, %c0_0, %c0_1] : memref<1x16x64xf32, #tpu.memory_space<vmem>>, vector<1x16x64xf32>
    %1 = vector.shape_cast %0 : vector<1x16x64xf32> to vector<16x64xf32>
    %2 = arith.truncf %1 : vector<16x64xf32> to vector<16x64xbf16>
    %c0_2 = arith.constant 0 : index
    %c0_3 = arith.constant 0 : index
    %3 = vector.load %arg2[%c0_2, %c0_3] : memref<64x64xbf16, #tpu.memory_space<vmem>>, vector<64x64xbf16>
    %cst = arith.constant dense<0.000000e+00> : vector<16x64xf32>
    %4 = tpu.matmul %2, %3, %cst {dimension_numbers = #tpu.dot_dimension_numbers<[1], [0], [0], [1], [0, 0, 1, 1], [], []>} : vector<16x64xbf16>, vector<64x64xbf16>, vector<16x64xf32> -> vector<16x64xf32>
    %c0_4 = arith.constant 0 : index
    %c0_5 = arith.constant 0 : index
    %5 = vector.load %arg3[%c0_4, %c0_5] : memref<1x64xf32, #tpu.memory_space<vmem>>, vector<1x64xf32>
    %6 = vector.broadcast %5 : vector<1x64xf32> to vector<16x64xf32>
    %7 = arith.addf %4, %6 : vector<16x64xf32>
    %cst_6 = arith.constant 0.000000e+00 : f32
    %8 = vector.broadcast %cst_6 : f32 to vector<16x64xf32>
    %9 = arith.maximumf %7, %8 : vector<16x64xf32>
    %c0_7 = arith.constant 0 : index
    %c0_8 = arith.constant 0 : index
    %10 = vector.load %arg4[%c0_7, %c0_8] : memref<1x64xf32, #tpu.memory_space<vmem>>, vector<1x64xf32>
    %11 = vector.broadcast %10 : vector<1x64xf32> to vector<16x64xf32>
    %12 = arith.mulf %9, %11 : vector<16x64xf32>
    %c0_9 = arith.constant 0 : index
    %c0_10 = arith.constant 0 : index
    %13 = vector.load %arg5[%c0_9, %c0_10] : memref<1x64xf32, #tpu.memory_space<vmem>>, vector<1x64xf32>
    %14 = vector.broadcast %13 : vector<1x64xf32> to vector<16x64xf32>
    %15 = arith.addf %12, %14 : vector<16x64xf32>
    %cst_11 = arith.constant dense<0.000000e+00> : vector<64xf32>
    %16 = vector.multi_reduction <add>, %15, %cst_11 [0] : vector<16x64xf32> to vector<64xf32>
    %17 = vector.shape_cast %16 : vector<64xf32> to vector<1x64xf32>
    %cst_12 = arith.constant 6.250000e-02 : f32
    %18 = vector.broadcast %cst_12 : f32 to vector<1x64xf32>
    %19 = arith.mulf %17, %18 : vector<1x64xf32>
    %20 = arith.truncf %19 : vector<1x64xf32> to vector<1x64xbf16>
    %c0_13 = arith.constant 0 : index
    %c0_14 = arith.constant 0 : index
    %21 = vector.load %arg6[%c0_13, %c0_14] : memref<64x8xbf16, #tpu.memory_space<vmem>>, vector<64x8xbf16>
    %cst_15 = arith.constant dense<0.000000e+00> : vector<1x8xf32>
    %22 = tpu.matmul %20, %21, %cst_15 {dimension_numbers = #tpu.dot_dimension_numbers<[1], [0], [0], [1], [0, 0, 1, 1], [], []>} : vector<1x64xbf16>, vector<64x8xbf16>, vector<1x8xf32> -> vector<1x8xf32>
    %c0_16 = arith.constant 0 : index
    %c0_17 = arith.constant 0 : index
    %23 = vector.load %arg7[%c0_16, %c0_17] : memref<1x8xf32, #tpu.memory_space<vmem>>, vector<1x8xf32>
    %24 = arith.addf %22, %23 : vector<1x8xf32>
    %cst_18 = arith.constant 0.000000e+00 : f32
    %25 = vector.broadcast %cst_18 : f32 to vector<1x8xf32>
    %26 = arith.maximumf %24, %25 : vector<1x8xf32>
    %27 = arith.truncf %26 : vector<1x8xf32> to vector<1x8xbf16>
    %c0_19 = arith.constant 0 : index
    %c0_20 = arith.constant 0 : index
    %28 = vector.load %arg8[%c0_19, %c0_20] : memref<8x64xbf16, #tpu.memory_space<vmem>>, vector<8x64xbf16>
    %cst_21 = arith.constant dense<0.000000e+00> : vector<1x64xf32>
    %29 = tpu.matmul %27, %28, %cst_21 {dimension_numbers = #tpu.dot_dimension_numbers<[1], [0], [0], [1], [0, 0, 1, 1], [], []>} : vector<1x8xbf16>, vector<8x64xbf16>, vector<1x64xf32> -> vector<1x64xf32>
    %c0_22 = arith.constant 0 : index
    %c0_23 = arith.constant 0 : index
    %30 = vector.load %arg9[%c0_22, %c0_23] : memref<1x64xf32, #tpu.memory_space<vmem>>, vector<1x64xf32>
    %31 = arith.addf %29, %30 : vector<1x64xf32>
    %cst_24 = arith.constant 0.000000e+00 : f32
    %32 = vector.broadcast %cst_24 : f32 to vector<1x64xf32>
    %33 = arith.subf %32, %31 : vector<1x64xf32>
    %34 = math.exp %33 : vector<1x64xf32>
    %cst_25 = arith.constant 1.000000e+00 : f32
    %35 = vector.broadcast %cst_25 : f32 to vector<1x64xf32>
    %36 = arith.addf %35, %34 : vector<1x64xf32>
    %cst_26 = arith.constant 1.000000e+00 : f32
    %37 = vector.broadcast %cst_26 : f32 to vector<1x64xf32>
    %38 = arith.divf %37, %36 : vector<1x64xf32>
    %39 = vector.broadcast %38 : vector<1x64xf32> to vector<16x64xf32>
    %40 = arith.mulf %15, %39 : vector<16x64xf32>
    %41 = arith.truncf %40 : vector<16x64xf32> to vector<16x64xbf16>
    %c0_27 = arith.constant 0 : index
    %c0_28 = arith.constant 0 : index
    %42 = vector.load %arg10[%c0_27, %c0_28] : memref<64x64xbf16, #tpu.memory_space<vmem>>, vector<64x64xbf16>
    %cst_29 = arith.constant dense<0.000000e+00> : vector<16x64xf32>
    %43 = tpu.matmul %41, %42, %cst_29 {dimension_numbers = #tpu.dot_dimension_numbers<[1], [0], [0], [1], [0, 0, 1, 1], [], []>} : vector<16x64xbf16>, vector<64x64xbf16>, vector<16x64xf32> -> vector<16x64xf32>
    %c0_30 = arith.constant 0 : index
    %c0_31 = arith.constant 0 : index
    %44 = vector.load %arg11[%c0_30, %c0_31] : memref<1x64xf32, #tpu.memory_space<vmem>>, vector<1x64xf32>
    %45 = vector.broadcast %44 : vector<1x64xf32> to vector<16x64xf32>
    %46 = arith.addf %43, %45 : vector<16x64xf32>
    %cst_32 = arith.constant 0.000000e+00 : f32
    %47 = vector.broadcast %cst_32 : f32 to vector<16x64xf32>
    %48 = arith.maximumf %46, %47 : vector<16x64xf32>
    %cst_33 = arith.constant dense<0.000000e+00> : vector<64xf32>
    %49 = vector.multi_reduction <add>, %48, %cst_33 [0] : vector<16x64xf32> to vector<64xf32>
    %50 = vector.shape_cast %49 : vector<64xf32> to vector<1x64xf32>
    %cst_34 = arith.constant 6.250000e-02 : f32
    %51 = vector.broadcast %cst_34 : f32 to vector<1x64xf32>
    %52 = arith.mulf %50, %51 : vector<1x64xf32>
    %53 = arith.truncf %52 : vector<1x64xf32> to vector<1x64xbf16>
    %c0_35 = arith.constant 0 : index
    %c0_36 = arith.constant 0 : index
    %54 = vector.load %arg12[%c0_35, %c0_36] : memref<64x8xbf16, #tpu.memory_space<vmem>>, vector<64x8xbf16>
    %cst_37 = arith.constant dense<0.000000e+00> : vector<1x8xf32>
    %55 = tpu.matmul %53, %54, %cst_37 {dimension_numbers = #tpu.dot_dimension_numbers<[1], [0], [0], [1], [0, 0, 1, 1], [], []>} : vector<1x64xbf16>, vector<64x8xbf16>, vector<1x8xf32> -> vector<1x8xf32>
    %c0_38 = arith.constant 0 : index
    %c0_39 = arith.constant 0 : index
    %56 = vector.load %arg13[%c0_38, %c0_39] : memref<1x8xf32, #tpu.memory_space<vmem>>, vector<1x8xf32>
    %57 = arith.addf %55, %56 : vector<1x8xf32>
    %cst_40 = arith.constant 0.000000e+00 : f32
    %58 = vector.broadcast %cst_40 : f32 to vector<1x8xf32>
    %59 = arith.maximumf %57, %58 : vector<1x8xf32>
    %60 = arith.truncf %59 : vector<1x8xf32> to vector<1x8xbf16>
    %c0_41 = arith.constant 0 : index
    %c0_42 = arith.constant 0 : index
    %61 = vector.load %arg14[%c0_41, %c0_42] : memref<8x64xbf16, #tpu.memory_space<vmem>>, vector<8x64xbf16>
    %cst_43 = arith.constant dense<0.000000e+00> : vector<1x64xf32>
    %62 = tpu.matmul %60, %61, %cst_43 {dimension_numbers = #tpu.dot_dimension_numbers<[1], [0], [0], [1], [0, 0, 1, 1], [], []>} : vector<1x8xbf16>, vector<8x64xbf16>, vector<1x64xf32> -> vector<1x64xf32>
    %c0_44 = arith.constant 0 : index
    %c0_45 = arith.constant 0 : index
    %63 = vector.load %arg15[%c0_44, %c0_45] : memref<1x64xf32, #tpu.memory_space<vmem>>, vector<1x64xf32>
    %64 = arith.addf %62, %63 : vector<1x64xf32>
    %cst_46 = arith.constant 0.000000e+00 : f32
    %65 = vector.broadcast %cst_46 : f32 to vector<1x64xf32>
    %66 = arith.subf %65, %64 : vector<1x64xf32>
    %67 = math.exp %66 : vector<1x64xf32>
    %cst_47 = arith.constant 1.000000e+00 : f32
    %68 = vector.broadcast %cst_47 : f32 to vector<1x64xf32>
    %69 = arith.addf %68, %67 : vector<1x64xf32>
    %cst_48 = arith.constant 1.000000e+00 : f32
    %70 = vector.broadcast %cst_48 : f32 to vector<1x64xf32>
    %71 = arith.divf %70, %69 : vector<1x64xf32>
    %72 = vector.broadcast %71 : vector<1x64xf32> to vector<16x64xf32>
    %73 = arith.mulf %48, %72 : vector<16x64xf32>
    %c0_49 = arith.constant 0 : index
    %c0_50 = arith.constant 0 : index
    %c0_51 = arith.constant 0 : index
    %74 = vector.load %arg16[%c0_49, %c0_50, %c0_51] : memref<1x16x64xf32, #tpu.memory_space<vmem>>, vector<1x16x64xf32>
    %75 = vector.shape_cast %74 : vector<1x16x64xf32> to vector<16x64xf32>
    %76 = vector.shape_cast %73 : vector<16x64xf32> to vector<1x16x64xf32>
    tpu.vector_store %arg16[%c0_49, %c0_50, %c0_51], %76 {strides = array<i32>} : memref<1x16x64xf32, #tpu.memory_space<vmem>>, vector<1x16x64xf32>,
    return
  }
  func.func @transform_0(%arg0: i32) -> (i32, i32, i32) {
    %c0_i32 = arith.constant 0 : i32
    %c0_i32_0 = arith.constant 0 : i32
    %c0_i32_1 = arith.constant 0 : i32
    return %arg0, %c0_i32, %c0_i32_0 : i32, i32, i32
  }
  func.func @transform_1(%arg0: i32) -> (i32, i32) {
    %c0_i32 = arith.constant 0 : i32
    %c0_i32_0 = arith.constant 0 : i32
    %c0_i32_1 = arith.constant 0 : i32
    return %c0_i32, %c0_i32_0 : i32, i32
  }
  func.func @transform_2(%arg0: i32) -> (i32, i32) {
    %c0_i32 = arith.constant 0 : i32
    %c0_i32_0 = arith.constant 0 : i32
    %c0_i32_1 = arith.constant 0 : i32
    return %c0_i32, %c0_i32_0 : i32, i32
  }
  func.func @transform_3(%arg0: i32) -> (i32, i32) {
    %c0_i32 = arith.constant 0 : i32
    %c0_i32_0 = arith.constant 0 : i32
    %c0_i32_1 = arith.constant 0 : i32
    return %c0_i32, %c0_i32_0 : i32, i32
  }
  func.func @transform_4(%arg0: i32) -> (i32, i32) {
    %c0_i32 = arith.constant 0 : i32
    %c0_i32_0 = arith.constant 0 : i32
    %c0_i32_1 = arith.constant 0 : i32
    return %c0_i32, %c0_i32_0 : i32, i32
  }
  func.func @transform_5(%arg0: i32) -> (i32, i32) {
    %c0_i32 = arith.constant 0 : i32
    %c0_i32_0 = arith.constant 0 : i32
    %c0_i32_1 = arith.constant 0 : i32
    return %c0_i32, %c0_i32_0 : i32, i32
  }
  func.func @transform_6(%arg0: i32) -> (i32, i32) {
    %c0_i32 = arith.constant 0 : i32
    %c0_i32_0 = arith.constant 0 : i32
    %c0_i32_1 = arith.constant 0 : i32
    return %c0_i32, %c0_i32_0 : i32, i32
  }
  func.func @transform_7(%arg0: i32) -> (i32, i32) {
    %c0_i32 = arith.constant 0 : i32
    %c0_i32_0 = arith.constant 0 : i32
    %c0_i32_1 = arith.constant 0 : i32
    return %c0_i32, %c0_i32_0 : i32, i32
  }
  func.func @transform_8(%arg0: i32) -> (i32, i32) {
    %c0_i32 = arith.constant 0 : i32
    %c0_i32_0 = arith.constant 0 : i32
    %c0_i32_1 = arith.constant 0 : i32
    return %c0_i32, %c0_i32_0 : i32, i32
  }
  func.func @transform_9(%arg0: i32) -> (i32, i32) {
    %c0_i32 = arith.constant 0 : i32
    %c0_i32_0 = arith.constant 0 : i32
    %c0_i32_1 = arith.constant 0 : i32
    return %c0_i32, %c0_i32_0 : i32, i32
  }
  func.func @transform_10(%arg0: i32) -> (i32, i32) {
    %c0_i32 = arith.constant 0 : i32
    %c0_i32_0 = arith.constant 0 : i32
    %c0_i32_1 = arith.constant 0 : i32
    return %c0_i32, %c0_i32_0 : i32, i32
  }
  func.func @transform_11(%arg0: i32) -> (i32, i32) {
    %c0_i32 = arith.constant 0 : i32
    %c0_i32_0 = arith.constant 0 : i32
    %c0_i32_1 = arith.constant 0 : i32
    return %c0_i32, %c0_i32_0 : i32, i32
  }
  func.func @transform_12(%arg0: i32) -> (i32, i32) {
    %c0_i32 = arith.constant 0 : i32
    %c0_i32_0 = arith.constant 0 : i32
    %c0_i32_1 = arith.constant 0 : i32
    return %c0_i32, %c0_i32_0 : i32, i32
  }
  func.func @transform_13(%arg0: i32) -> (i32, i32) {
    %c0_i32 = arith.constant 0 : i32
    %c0_i32_0 = arith.constant 0 : i32
    %c0_i32_1 = arith.constant 0 : i32
    return %c0_i32, %c0_i32_0 : i32, i32
  }
  func.func @transform_14(%arg0: i32) -> (i32, i32) {
    %c0_i32 = arith.constant 0 : i32
    %c0_i32_0 = arith.constant 0 : i32
    %c0_i32_1 = arith.constant 0 : i32
    return %c0_i32, %c0_i32_0 : i32, i32
  }
  func.func @transform_15(%arg0: i32) -> (i32, i32, i32) {
    %c0_i32 = arith.constant 0 : i32
    %c0_i32_0 = arith.constant 0 : i32
    %c0_i32_1 = arith.constant 0 : i32
    return %arg0, %c0_i32, %c0_i32_0 : i32, i32, i32
  }
}

module attributes {stable_mosaic.version = 11 : i64} {
  func.func @_gru2_kernel(%arg0: i32, %arg1: memref<64x2x48xf32, #tpu.memory_space<vmem>>, %arg2: memref<16x48xbf16, #tpu.memory_space<vmem>>, %arg3: memref<1x48xf32, #tpu.memory_space<vmem>>, %arg4: memref<16x48xbf16, #tpu.memory_space<vmem>>, %arg5: memref<1x48xf32, #tpu.memory_space<vmem>>, %arg6: memref<16x48xbf16, #tpu.memory_space<vmem>>, %arg7: memref<1x48xf32, #tpu.memory_space<vmem>>, %arg8: memref<64x2x16xf32, #tpu.memory_space<vmem>>) attributes {dimension_semantics = [#tpu.dimension_semantics<arbitrary>], iteration_bounds = array<i64: 1>, scalar_prefetch = 0 : i64, scratch_operands = 0 : i64, tpu.core_type = #tpu.core_type<tc>, window_params = [{pipeline_mode = #tpu.pipeline_mode<synchronous>, transform_indices = @transform_0, window_bounds = array<i64: 64, 2, 48>}, {pipeline_mode = #tpu.pipeline_mode<synchronous>, transform_indices = @transform_1, window_bounds = array<i64: 16, 48>}, {pipeline_mode = #tpu.pipeline_mode<synchronous>, transform_indices = @transform_2, window_bounds = array<i64: 1, 48>}, {pipeline_mode = #tpu.pipeline_mode<synchronous>, transform_indices = @transform_3, window_bounds = array<i64: 16, 48>}, {pipeline_mode = #tpu.pipeline_mode<synchronous>, transform_indices = @transform_4, window_bounds = array<i64: 1, 48>}, {pipeline_mode = #tpu.pipeline_mode<synchronous>, transform_indices = @transform_5, window_bounds = array<i64: 16, 48>}, {pipeline_mode = #tpu.pipeline_mode<synchronous>, transform_indices = @transform_6, window_bounds = array<i64: 1, 48>}, {pipeline_mode = #tpu.pipeline_mode<synchronous>, transform_indices = @transform_7, window_bounds = array<i64: 64, 2, 16>}]} {
    %cst = arith.constant 0.000000e+00 : f32
    %0 = vector.broadcast %cst : f32 to vector<2x16xf32>
    %c0 = arith.constant 0 : index
    %c0_0 = arith.constant 0 : index
    %c0_1 = arith.constant 0 : index
    %1 = vector.load %arg1[%c0, %c0_0, %c0_1] : memref<64x2x48xf32, #tpu.memory_space<vmem>>, vector<1x2x48xf32>
    %2 = vector.shape_cast %1 : vector<1x2x48xf32> to vector<2x48xf32>
    %3 = arith.truncf %0 : vector<2x16xf32> to vector<2x16xbf16>
    %c0_2 = arith.constant 0 : index
    %c0_3 = arith.constant 0 : index
    %4 = vector.load %arg2[%c0_2, %c0_3] : memref<16x48xbf16, #tpu.memory_space<vmem>>, vector<16x48xbf16>
    %cst_4 = arith.constant dense<0.000000e+00> : vector<2x48xf32>
    %5 = tpu.matmul %3, %4, %cst_4 {dimension_numbers = #tpu.dot_dimension_numbers<[1], [0], [0], [1], [0, 0, 1, 1], [], []>} : vector<2x16xbf16>, vector<16x48xbf16>, vector<2x48xf32> -> vector<2x48xf32>
    %c0_5 = arith.constant 0 : index
    %c0_6 = arith.constant 0 : index
    %6 = vector.load %arg3[%c0_5, %c0_6] : memref<1x48xf32, #tpu.memory_space<vmem>>, vector<1x48xf32>
    %7 = vector.broadcast %6 : vector<1x48xf32> to vector<2x48xf32>
    %8 = arith.addf %5, %7 : vector<2x48xf32>
    %9 = vector.extract_strided_slice %2 {offsets = [0, 0], sizes = [2, 16], strides = [1, 1]} : vector<2x48xf32> to vector<2x16xf32>
    %10 = vector.extract_strided_slice %8 {offsets = [0, 0], sizes = [2, 16], strides = [1, 1]} : vector<2x48xf32> to vector<2x16xf32>
    %11 = arith.addf %9, %10 : vector<2x16xf32>
    %cst_7 = arith.constant 0.000000e+00 : f32
    %12 = vector.broadcast %cst_7 : f32 to vector<2x16xf32>
    %13 = arith.subf %12, %11 : vector<2x16xf32>
    %14 = math.exp %13 : vector<2x16xf32>
    %cst_8 = arith.constant 1.000000e+00 : f32
    %15 = vector.broadcast %cst_8 : f32 to vector<2x16xf32>
    %16 = arith.addf %15, %14 : vector<2x16xf32>
    %cst_9 = arith.constant 1.000000e+00 : f32
    %17 = vector.broadcast %cst_9 : f32 to vector<2x16xf32>
    %18 = arith.divf %17, %16 : vector<2x16xf32>
    %19 = vector.extract_strided_slice %2 {offsets = [0, 16], sizes = [2, 16], strides = [1, 1]} : vector<2x48xf32> to vector<2x16xf32>
    %20 = vector.extract_strided_slice %8 {offsets = [0, 16], sizes = [2, 16], strides = [1, 1]} : vector<2x48xf32> to vector<2x16xf32>
    %21 = arith.addf %19, %20 : vector<2x16xf32>
    %cst_10 = arith.constant 0.000000e+00 : f32
    %22 = vector.broadcast %cst_10 : f32 to vector<2x16xf32>
    %23 = arith.subf %22, %21 : vector<2x16xf32>
    %24 = math.exp %23 : vector<2x16xf32>
    %cst_11 = arith.constant 1.000000e+00 : f32
    %25 = vector.broadcast %cst_11 : f32 to vector<2x16xf32>
    %26 = arith.addf %25, %24 : vector<2x16xf32>
    %cst_12 = arith.constant 1.000000e+00 : f32
    %27 = vector.broadcast %cst_12 : f32 to vector<2x16xf32>
    %28 = arith.divf %27, %26 : vector<2x16xf32>
    %29 = vector.extract_strided_slice %2 {offsets = [0, 32], sizes = [2, 16], strides = [1, 1]} : vector<2x48xf32> to vector<2x16xf32>
    %30 = vector.extract_strided_slice %8 {offsets = [0, 32], sizes = [2, 16], strides = [1, 1]} : vector<2x48xf32> to vector<2x16xf32>
    %31 = arith.mulf %18, %30 : vector<2x16xf32>
    %32 = arith.addf %29, %31 : vector<2x16xf32>
    %33 = math.tanh %32 : vector<2x16xf32>
    %cst_13 = arith.constant 1.000000e+00 : f32
    %34 = vector.broadcast %cst_13 : f32 to vector<2x16xf32>
    %35 = arith.subf %34, %28 : vector<2x16xf32>
    %36 = arith.mulf %35, %33 : vector<2x16xf32>
    %37 = arith.mulf %28, %0 : vector<2x16xf32>
    %38 = arith.addf %36, %37 : vector<2x16xf32>
    %c0_i32 = arith.constant 0 : i32
    %c64_i32 = arith.constant 64 : i32
    %39 = arith.addi %c0_i32, %c64_i32 : i32
    %c1_i32 = arith.constant 1 : i32
    %40:2 = scf.for %arg9 = %c0_i32 to %39 step %c1_i32 iter_args(%arg10 = %38, %arg11 = %0) -> (vector<2x16xf32>, vector<2x16xf32>)  : i32 {
      %41 = arith.truncf %arg10 : vector<2x16xf32> to vector<2x16xbf16>
      %c0_15 = arith.constant 0 : index
      %c0_16 = arith.constant 0 : index
      %42 = vector.load %arg4[%c0_15, %c0_16] : memref<16x48xbf16, #tpu.memory_space<vmem>>, vector<16x48xbf16>
      %cst_17 = arith.constant dense<0.000000e+00> : vector<2x48xf32>
      %43 = tpu.matmul %41, %42, %cst_17 {dimension_numbers = #tpu.dot_dimension_numbers<[1], [0], [0], [1], [0, 0, 1, 1], [], []>} : vector<2x16xbf16>, vector<16x48xbf16>, vector<2x48xf32> -> vector<2x48xf32>
      %c0_18 = arith.constant 0 : index
      %c0_19 = arith.constant 0 : index
      %44 = vector.load %arg5[%c0_18, %c0_19] : memref<1x48xf32, #tpu.memory_space<vmem>>, vector<1x48xf32>
      %45 = vector.broadcast %44 : vector<1x48xf32> to vector<2x48xf32>
      %46 = arith.addf %43, %45 : vector<2x48xf32>
      %47 = arith.truncf %arg11 : vector<2x16xf32> to vector<2x16xbf16>
      %c0_20 = arith.constant 0 : index
      %c0_21 = arith.constant 0 : index
      %48 = vector.load %arg6[%c0_20, %c0_21] : memref<16x48xbf16, #tpu.memory_space<vmem>>, vector<16x48xbf16>
      %cst_22 = arith.constant dense<0.000000e+00> : vector<2x48xf32>
      %49 = tpu.matmul %47, %48, %cst_22 {dimension_numbers = #tpu.dot_dimension_numbers<[1], [0], [0], [1], [0, 0, 1, 1], [], []>} : vector<2x16xbf16>, vector<16x48xbf16>, vector<2x48xf32> -> vector<2x48xf32>
      %c0_23 = arith.constant 0 : index
      %c0_24 = arith.constant 0 : index
      %50 = vector.load %arg7[%c0_23, %c0_24] : memref<1x48xf32, #tpu.memory_space<vmem>>, vector<1x48xf32>
      %51 = vector.broadcast %50 : vector<1x48xf32> to vector<2x48xf32>
      %52 = arith.addf %49, %51 : vector<2x48xf32>
      %53 = vector.extract_strided_slice %46 {offsets = [0, 0], sizes = [2, 16], strides = [1, 1]} : vector<2x48xf32> to vector<2x16xf32>
      %54 = vector.extract_strided_slice %52 {offsets = [0, 0], sizes = [2, 16], strides = [1, 1]} : vector<2x48xf32> to vector<2x16xf32>
      %55 = arith.addf %53, %54 : vector<2x16xf32>
      %cst_25 = arith.constant 0.000000e+00 : f32
      %56 = vector.broadcast %cst_25 : f32 to vector<2x16xf32>
      %57 = arith.subf %56, %55 : vector<2x16xf32>
      %58 = math.exp %57 : vector<2x16xf32>
      %cst_26 = arith.constant 1.000000e+00 : f32
      %59 = vector.broadcast %cst_26 : f32 to vector<2x16xf32>
      %60 = arith.addf %59, %58 : vector<2x16xf32>
      %cst_27 = arith.constant 1.000000e+00 : f32
      %61 = vector.broadcast %cst_27 : f32 to vector<2x16xf32>
      %62 = arith.divf %61, %60 : vector<2x16xf32>
      %63 = vector.extract_strided_slice %46 {offsets = [0, 16], sizes = [2, 16], strides = [1, 1]} : vector<2x48xf32> to vector<2x16xf32>
      %64 = vector.extract_strided_slice %52 {offsets = [0, 16], sizes = [2, 16], strides = [1, 1]} : vector<2x48xf32> to vector<2x16xf32>
      %65 = arith.addf %63, %64 : vector<2x16xf32>
      %cst_28 = arith.constant 0.000000e+00 : f32
      %66 = vector.broadcast %cst_28 : f32 to vector<2x16xf32>
      %67 = arith.subf %66, %65 : vector<2x16xf32>
      %68 = math.exp %67 : vector<2x16xf32>
      %cst_29 = arith.constant 1.000000e+00 : f32
      %69 = vector.broadcast %cst_29 : f32 to vector<2x16xf32>
      %70 = arith.addf %69, %68 : vector<2x16xf32>
      %cst_30 = arith.constant 1.000000e+00 : f32
      %71 = vector.broadcast %cst_30 : f32 to vector<2x16xf32>
      %72 = arith.divf %71, %70 : vector<2x16xf32>
      %73 = vector.extract_strided_slice %46 {offsets = [0, 32], sizes = [2, 16], strides = [1, 1]} : vector<2x48xf32> to vector<2x16xf32>
      %74 = vector.extract_strided_slice %52 {offsets = [0, 32], sizes = [2, 16], strides = [1, 1]} : vector<2x48xf32> to vector<2x16xf32>
      %75 = arith.mulf %62, %74 : vector<2x16xf32>
      %76 = arith.addf %73, %75 : vector<2x16xf32>
      %77 = math.tanh %76 : vector<2x16xf32>
      %cst_31 = arith.constant 1.000000e+00 : f32
      %78 = vector.broadcast %cst_31 : f32 to vector<2x16xf32>
      %79 = arith.subf %78, %72 : vector<2x16xf32>
      %80 = arith.mulf %79, %77 : vector<2x16xf32>
      %81 = arith.mulf %72, %arg11 : vector<2x16xf32>
      %82 = arith.addf %80, %81 : vector<2x16xf32>
      %83 = arith.index_cast %arg9 : i32 to index
      %c0_32 = arith.constant 0 : index
      %c0_33 = arith.constant 0 : index
      %84 = vector.load %arg8[%83, %c0_32, %c0_33] : memref<64x2x16xf32, #tpu.memory_space<vmem>>, vector<1x2x16xf32>
      %85 = vector.shape_cast %84 : vector<1x2x16xf32> to vector<2x16xf32>
      %86 = vector.shape_cast %82 : vector<2x16xf32> to vector<1x2x16xf32>
      tpu.vector_store %arg8[%83, %c0_32, %c0_33], %86 {strides = array<i32>} : memref<64x2x16xf32, #tpu.memory_space<vmem>>, vector<1x2x16xf32>,
      %c1_i32_34 = arith.constant 1 : i32
      %87 = arith.addi %arg9, %c1_i32_34 : i32
      %c63_i32 = arith.constant 63 : i32
      %88 = arith.minsi %87, %c63_i32 : i32
      %89 = arith.index_cast %88 : i32 to index
      %c0_35 = arith.constant 0 : index
      %c0_36 = arith.constant 0 : index
      %90 = vector.load %arg1[%89, %c0_35, %c0_36] : memref<64x2x48xf32, #tpu.memory_space<vmem>>, vector<1x2x48xf32>
      %91 = vector.shape_cast %90 : vector<1x2x48xf32> to vector<2x48xf32>
      %92 = arith.truncf %arg10 : vector<2x16xf32> to vector<2x16xbf16>
      %c0_37 = arith.constant 0 : index
      %c0_38 = arith.constant 0 : index
      %93 = vector.load %arg2[%c0_37, %c0_38] : memref<16x48xbf16, #tpu.memory_space<vmem>>, vector<16x48xbf16>
      %cst_39 = arith.constant dense<0.000000e+00> : vector<2x48xf32>
      %94 = tpu.matmul %92, %93, %cst_39 {dimension_numbers = #tpu.dot_dimension_numbers<[1], [0], [0], [1], [0, 0, 1, 1], [], []>} : vector<2x16xbf16>, vector<16x48xbf16>, vector<2x48xf32> -> vector<2x48xf32>
      %c0_40 = arith.constant 0 : index
      %c0_41 = arith.constant 0 : index
      %95 = vector.load %arg3[%c0_40, %c0_41] : memref<1x48xf32, #tpu.memory_space<vmem>>, vector<1x48xf32>
      %96 = vector.broadcast %95 : vector<1x48xf32> to vector<2x48xf32>
      %97 = arith.addf %94, %96 : vector<2x48xf32>
      %98 = vector.extract_strided_slice %91 {offsets = [0, 0], sizes = [2, 16], strides = [1, 1]} : vector<2x48xf32> to vector<2x16xf32>
      %99 = vector.extract_strided_slice %97 {offsets = [0, 0], sizes = [2, 16], strides = [1, 1]} : vector<2x48xf32> to vector<2x16xf32>
      %100 = arith.addf %98, %99 : vector<2x16xf32>
      %cst_42 = arith.constant 0.000000e+00 : f32
      %101 = vector.broadcast %cst_42 : f32 to vector<2x16xf32>
      %102 = arith.subf %101, %100 : vector<2x16xf32>
      %103 = math.exp %102 : vector<2x16xf32>
      %cst_43 = arith.constant 1.000000e+00 : f32
      %104 = vector.broadcast %cst_43 : f32 to vector<2x16xf32>
      %105 = arith.addf %104, %103 : vector<2x16xf32>
      %cst_44 = arith.constant 1.000000e+00 : f32
      %106 = vector.broadcast %cst_44 : f32 to vector<2x16xf32>
      %107 = arith.divf %106, %105 : vector<2x16xf32>
      %108 = vector.extract_strided_slice %91 {offsets = [0, 16], sizes = [2, 16], strides = [1, 1]} : vector<2x48xf32> to vector<2x16xf32>
      %109 = vector.extract_strided_slice %97 {offsets = [0, 16], sizes = [2, 16], strides = [1, 1]} : vector<2x48xf32> to vector<2x16xf32>
      %110 = arith.addf %108, %109 : vector<2x16xf32>
      %cst_45 = arith.constant 0.000000e+00 : f32
      %111 = vector.broadcast %cst_45 : f32 to vector<2x16xf32>
      %112 = arith.subf %111, %110 : vector<2x16xf32>
      %113 = math.exp %112 : vector<2x16xf32>
      %cst_46 = arith.constant 1.000000e+00 : f32
      %114 = vector.broadcast %cst_46 : f32 to vector<2x16xf32>
      %115 = arith.addf %114, %113 : vector<2x16xf32>
      %cst_47 = arith.constant 1.000000e+00 : f32
      %116 = vector.broadcast %cst_47 : f32 to vector<2x16xf32>
      %117 = arith.divf %116, %115 : vector<2x16xf32>
      %118 = vector.extract_strided_slice %91 {offsets = [0, 32], sizes = [2, 16], strides = [1, 1]} : vector<2x48xf32> to vector<2x16xf32>
      %119 = vector.extract_strided_slice %97 {offsets = [0, 32], sizes = [2, 16], strides = [1, 1]} : vector<2x48xf32> to vector<2x16xf32>
      %120 = arith.mulf %107, %119 : vector<2x16xf32>
      %121 = arith.addf %118, %120 : vector<2x16xf32>
      %122 = math.tanh %121 : vector<2x16xf32>
      %cst_48 = arith.constant 1.000000e+00 : f32
      %123 = vector.broadcast %cst_48 : f32 to vector<2x16xf32>
      %124 = arith.subf %123, %117 : vector<2x16xf32>
      %125 = arith.mulf %124, %122 : vector<2x16xf32>
      %126 = arith.mulf %117, %arg10 : vector<2x16xf32>
      %127 = arith.addf %125, %126 : vector<2x16xf32>
      scf.yield %127, %82 : vector<2x16xf32>, vector<2x16xf32>
    }
    %c64_i32_14 = arith.constant 64 : i32
    return
  }
  func.func @transform_0(%arg0: i32) -> (i32, i32, i32) {
    %c0_i32 = arith.constant 0 : i32
    %c0_i32_0 = arith.constant 0 : i32
    %c0_i32_1 = arith.constant 0 : i32
    %c0_i32_2 = arith.constant 0 : i32
    return %c0_i32, %c0_i32_0, %c0_i32_1 : i32, i32, i32
  }
  func.func @transform_1(%arg0: i32) -> (i32, i32) {
    %c0_i32 = arith.constant 0 : i32
    %c0_i32_0 = arith.constant 0 : i32
    %c0_i32_1 = arith.constant 0 : i32
    return %c0_i32, %c0_i32_0 : i32, i32
  }
  func.func @transform_2(%arg0: i32) -> (i32, i32) {
    %c0_i32 = arith.constant 0 : i32
    %c0_i32_0 = arith.constant 0 : i32
    %c0_i32_1 = arith.constant 0 : i32
    return %c0_i32, %c0_i32_0 : i32, i32
  }
  func.func @transform_3(%arg0: i32) -> (i32, i32) {
    %c0_i32 = arith.constant 0 : i32
    %c0_i32_0 = arith.constant 0 : i32
    %c0_i32_1 = arith.constant 0 : i32
    return %c0_i32, %c0_i32_0 : i32, i32
  }
  func.func @transform_4(%arg0: i32) -> (i32, i32) {
    %c0_i32 = arith.constant 0 : i32
    %c0_i32_0 = arith.constant 0 : i32
    %c0_i32_1 = arith.constant 0 : i32
    return %c0_i32, %c0_i32_0 : i32, i32
  }
  func.func @transform_5(%arg0: i32) -> (i32, i32) {
    %c0_i32 = arith.constant 0 : i32
    %c0_i32_0 = arith.constant 0 : i32
    %c0_i32_1 = arith.constant 0 : i32
    return %c0_i32, %c0_i32_0 : i32, i32
  }
  func.func @transform_6(%arg0: i32) -> (i32, i32) {
    %c0_i32 = arith.constant 0 : i32
    %c0_i32_0 = arith.constant 0 : i32
    %c0_i32_1 = arith.constant 0 : i32
    return %c0_i32, %c0_i32_0 : i32, i32
  }
  func.func @transform_7(%arg0: i32) -> (i32, i32, i32) {
    %c0_i32 = arith.constant 0 : i32
    %c0_i32_0 = arith.constant 0 : i32
    %c0_i32_1 = arith.constant 0 : i32
    %c0_i32_2 = arith.constant 0 : i32
    return %c0_i32, %c0_i32_0, %c0_i32_1 : i32, i32, i32
  }
}

module attributes {stable_mosaic.version = 11 : i64} {
  func.func @_asp_head_kernel(%arg0: i32, %arg1: memref<1x16x64xf32, #tpu.memory_space<vmem>>, %arg2: memref<64x32xbf16, #tpu.memory_space<vmem>>, %arg3: memref<1x32xf32, #tpu.memory_space<vmem>>, %arg4: memref<32x64xbf16, #tpu.memory_space<vmem>>, %arg5: memref<1x64xf32, #tpu.memory_space<vmem>>, %arg6: memref<128x32xbf16, #tpu.memory_space<vmem>>, %arg7: memref<1x32xf32, #tpu.memory_space<vmem>>, %arg8: memref<32x10xbf16, #tpu.memory_space<vmem>>, %arg9: memref<1x10xf32, #tpu.memory_space<vmem>>, %arg10: memref<1x1x10xf32, #tpu.memory_space<vmem>>) attributes {dimension_semantics = [#tpu.dimension_semantics<parallel>], iteration_bounds = array<i64: 2>, scalar_prefetch = 0 : i64, scratch_operands = 0 : i64, tpu.core_type = #tpu.core_type<tc>, window_params = [{transform_indices = @transform_0, window_bounds = array<i64: 1, 16, 64>}, {pipeline_mode = #tpu.pipeline_mode<synchronous>, transform_indices = @transform_1, window_bounds = array<i64: 64, 32>}, {pipeline_mode = #tpu.pipeline_mode<synchronous>, transform_indices = @transform_2, window_bounds = array<i64: 1, 32>}, {pipeline_mode = #tpu.pipeline_mode<synchronous>, transform_indices = @transform_3, window_bounds = array<i64: 32, 64>}, {pipeline_mode = #tpu.pipeline_mode<synchronous>, transform_indices = @transform_4, window_bounds = array<i64: 1, 64>}, {pipeline_mode = #tpu.pipeline_mode<synchronous>, transform_indices = @transform_5, window_bounds = array<i64: 128, 32>}, {pipeline_mode = #tpu.pipeline_mode<synchronous>, transform_indices = @transform_6, window_bounds = array<i64: 1, 32>}, {pipeline_mode = #tpu.pipeline_mode<synchronous>, transform_indices = @transform_7, window_bounds = array<i64: 32, 10>}, {pipeline_mode = #tpu.pipeline_mode<synchronous>, transform_indices = @transform_8, window_bounds = array<i64: 1, 10>}, {transform_indices = @transform_9, window_bounds = array<i64: 1, 1, 10>}]} {
    %c0 = arith.constant 0 : index
    %c0_0 = arith.constant 0 : index
    %c0_1 = arith.constant 0 : index
    %0 = vector.load %arg1[%c0, %c0_0, %c0_1] : memref<1x16x64xf32, #tpu.memory_space<vmem>>, vector<1x16x64xf32>
    %1 = vector.shape_cast %0 : vector<1x16x64xf32> to vector<16x64xf32>
    %2 = arith.truncf %1 : vector<16x64xf32> to vector<16x64xbf16>
    %c0_2 = arith.constant 0 : index
    %c0_3 = arith.constant 0 : index
    %3 = vector.load %arg2[%c0_2, %c0_3] : memref<64x32xbf16, #tpu.memory_space<vmem>>, vector<64x32xbf16>
    %cst = arith.constant dense<0.000000e+00> : vector<16x32xf32>
    %4 = tpu.matmul %2, %3, %cst {dimension_numbers = #tpu.dot_dimension_numbers<[1], [0], [0], [1], [0, 0, 1, 1], [], []>} : vector<16x64xbf16>, vector<64x32xbf16>, vector<16x32xf32> -> vector<16x32xf32>
    %c0_4 = arith.constant 0 : index
    %c0_5 = arith.constant 0 : index
    %5 = vector.load %arg3[%c0_4, %c0_5] : memref<1x32xf32, #tpu.memory_space<vmem>>, vector<1x32xf32>
    %6 = vector.broadcast %5 : vector<1x32xf32> to vector<16x32xf32>
    %7 = arith.addf %4, %6 : vector<16x32xf32>
    %8 = math.tanh %7 : vector<16x32xf32>
    %9 = arith.truncf %8 : vector<16x32xf32> to vector<16x32xbf16>
    %c0_6 = arith.constant 0 : index
    %c0_7 = arith.constant 0 : index
    %10 = vector.load %arg4[%c0_6, %c0_7] : memref<32x64xbf16, #tpu.memory_space<vmem>>, vector<32x64xbf16>
    %cst_8 = arith.constant dense<0.000000e+00> : vector<16x64xf32>
    %11 = tpu.matmul %9, %10, %cst_8 {dimension_numbers = #tpu.dot_dimension_numbers<[1], [0], [0], [1], [0, 0, 1, 1], [], []>} : vector<16x32xbf16>, vector<32x64xbf16>, vector<16x64xf32> -> vector<16x64xf32>
    %c0_9 = arith.constant 0 : index
    %c0_10 = arith.constant 0 : index
    %12 = vector.load %arg5[%c0_9, %c0_10] : memref<1x64xf32, #tpu.memory_space<vmem>>, vector<1x64xf32>
    %13 = vector.broadcast %12 : vector<1x64xf32> to vector<16x64xf32>
    %14 = arith.addf %11, %13 : vector<16x64xf32>
    %cst_11 = arith.constant dense<0xFF800000> : vector<64xf32>
    %15 = vector.multi_reduction <maximumf>, %14, %cst_11 [0] : vector<16x64xf32> to vector<64xf32>
    %16 = vector.shape_cast %15 : vector<64xf32> to vector<1x64xf32>
    %17 = vector.broadcast %16 : vector<1x64xf32> to vector<16x64xf32>
    %18 = arith.subf %14, %17 : vector<16x64xf32>
    %19 = math.exp %18 : vector<16x64xf32>
    %cst_12 = arith.constant dense<0.000000e+00> : vector<64xf32>
    %20 = vector.multi_reduction <add>, %19, %cst_12 [0] : vector<16x64xf32> to vector<64xf32>
    %21 = vector.shape_cast %20 : vector<64xf32> to vector<1x64xf32>
    %22 = tpu.reciprocal %21 {approx = true} : vector<1x64xf32> -> vector<1x64xf32>
    %23 = vector.broadcast %22 : vector<1x64xf32> to vector<16x64xf32>
    %24 = arith.mulf %19, %23 : vector<16x64xf32>
    %25 = arith.mulf %24, %1 : vector<16x64xf32>
    %cst_13 = arith.constant dense<0.000000e+00> : vector<64xf32>
    %26 = vector.multi_reduction <add>, %25, %cst_13 [0] : vector<16x64xf32> to vector<64xf32>
    %27 = vector.shape_cast %26 : vector<64xf32> to vector<1x64xf32>
    %28 = arith.mulf %25, %1 : vector<16x64xf32>
    %cst_14 = arith.constant dense<0.000000e+00> : vector<64xf32>
    %29 = vector.multi_reduction <add>, %28, %cst_14 [0] : vector<16x64xf32> to vector<64xf32>
    %30 = vector.shape_cast %29 : vector<64xf32> to vector<1x64xf32>
    %31 = arith.mulf %27, %27 : vector<1x64xf32>
    %32 = arith.subf %30, %31 : vector<1x64xf32>
    %cst_15 = arith.constant 9.99999971E-10 : f32
    %33 = vector.broadcast %cst_15 : f32 to vector<1x64xf32>
    %34 = arith.maximumf %32, %33 : vector<1x64xf32>
    %35 = math.sqrt %34 : vector<1x64xf32>
    %36 = tpu.concatenate %27, %35 in 1 : vector<1x64xf32>, vector<1x64xf32> -> vector<1x128xf32>
    %37 = arith.truncf %36 : vector<1x128xf32> to vector<1x128xbf16>
    %c0_16 = arith.constant 0 : index
    %c0_17 = arith.constant 0 : index
    %38 = vector.load %arg6[%c0_16, %c0_17] : memref<128x32xbf16, #tpu.memory_space<vmem>>, vector<128x32xbf16>
    %cst_18 = arith.constant dense<0.000000e+00> : vector<1x32xf32>
    %39 = tpu.matmul %37, %38, %cst_18 {dimension_numbers = #tpu.dot_dimension_numbers<[1], [0], [0], [1], [0, 0, 1, 1], [], []>} : vector<1x128xbf16>, vector<128x32xbf16>, vector<1x32xf32> -> vector<1x32xf32>
    %c0_19 = arith.constant 0 : index
    %c0_20 = arith.constant 0 : index
    %40 = vector.load %arg7[%c0_19, %c0_20] : memref<1x32xf32, #tpu.memory_space<vmem>>, vector<1x32xf32>
    %41 = arith.addf %39, %40 : vector<1x32xf32>
    %42 = arith.truncf %41 : vector<1x32xf32> to vector<1x32xbf16>
    %c0_21 = arith.constant 0 : index
    %c0_22 = arith.constant 0 : index
    %43 = vector.load %arg8[%c0_21, %c0_22] : memref<32x10xbf16, #tpu.memory_space<vmem>>, vector<32x10xbf16>
    %cst_23 = arith.constant dense<0.000000e+00> : vector<1x10xf32>
    %44 = tpu.matmul %42, %43, %cst_23 {dimension_numbers = #tpu.dot_dimension_numbers<[1], [0], [0], [1], [0, 0, 1, 1], [], []>} : vector<1x32xbf16>, vector<32x10xbf16>, vector<1x10xf32> -> vector<1x10xf32>
    %c0_24 = arith.constant 0 : index
    %c0_25 = arith.constant 0 : index
    %45 = vector.load %arg9[%c0_24, %c0_25] : memref<1x10xf32, #tpu.memory_space<vmem>>, vector<1x10xf32>
    %46 = arith.addf %44, %45 : vector<1x10xf32>
    %cst_26 = arith.constant dense<0xFF800000> : vector<1xf32>
    %47 = vector.multi_reduction <maximumf>, %46, %cst_26 [1] : vector<1x10xf32> to vector<1xf32>
    %48 = vector.shape_cast %47 : vector<1xf32> to vector<1x1xf32>
    %49 = vector.broadcast %48 : vector<1x1xf32> to vector<1x10xf32>
    %50 = arith.subf %46, %49 : vector<1x10xf32>
    %51 = math.exp %50 : vector<1x10xf32>
    %cst_27 = arith.constant dense<0.000000e+00> : vector<1xf32>
    %52 = vector.multi_reduction <add>, %51, %cst_27 [1] : vector<1x10xf32> to vector<1xf32>
    %53 = vector.shape_cast %52 : vector<1xf32> to vector<1x1xf32>
    %54 = tpu.reciprocal %53 {approx = true} : vector<1x1xf32> -> vector<1x1xf32>
    %55 = vector.broadcast %54 : vector<1x1xf32> to vector<1x10xf32>
    %56 = arith.mulf %51, %55 : vector<1x10xf32>
    %c0_28 = arith.constant 0 : index
    %c0_29 = arith.constant 0 : index
    %c0_30 = arith.constant 0 : index
    %57 = vector.load %arg10[%c0_28, %c0_29, %c0_30] : memref<1x1x10xf32, #tpu.memory_space<vmem>>, vector<1x1x10xf32>
    %58 = vector.shape_cast %57 : vector<1x1x10xf32> to vector<1x10xf32>
    %59 = vector.shape_cast %56 : vector<1x10xf32> to vector<1x1x10xf32>
    tpu.vector_store %arg10[%c0_28, %c0_29, %c0_30], %59 {strides = array<i32>} : memref<1x1x10xf32, #tpu.memory_space<vmem>>, vector<1x1x10xf32>,
    return
  }
  func.func @transform_0(%arg0: i32) -> (i32, i32, i32) {
    %c0_i32 = arith.constant 0 : i32
    %c0_i32_0 = arith.constant 0 : i32
    %c0_i32_1 = arith.constant 0 : i32
    return %arg0, %c0_i32, %c0_i32_0 : i32, i32, i32
  }
  func.func @transform_1(%arg0: i32) -> (i32, i32) {
    %c0_i32 = arith.constant 0 : i32
    %c0_i32_0 = arith.constant 0 : i32
    %c0_i32_1 = arith.constant 0 : i32
    return %c0_i32, %c0_i32_0 : i32, i32
  }
  func.func @transform_2(%arg0: i32) -> (i32, i32) {
    %c0_i32 = arith.constant 0 : i32
    %c0_i32_0 = arith.constant 0 : i32
    %c0_i32_1 = arith.constant 0 : i32
    return %c0_i32, %c0_i32_0 : i32, i32
  }
  func.func @transform_3(%arg0: i32) -> (i32, i32) {
    %c0_i32 = arith.constant 0 : i32
    %c0_i32_0 = arith.constant 0 : i32
    %c0_i32_1 = arith.constant 0 : i32
    return %c0_i32, %c0_i32_0 : i32, i32
  }
  func.func @transform_4(%arg0: i32) -> (i32, i32) {
    %c0_i32 = arith.constant 0 : i32
    %c0_i32_0 = arith.constant 0 : i32
    %c0_i32_1 = arith.constant 0 : i32
    return %c0_i32, %c0_i32_0 : i32, i32
  }
  func.func @transform_5(%arg0: i32) -> (i32, i32) {
    %c0_i32 = arith.constant 0 : i32
    %c0_i32_0 = arith.constant 0 : i32
    %c0_i32_1 = arith.constant 0 : i32
    return %c0_i32, %c0_i32_0 : i32, i32
  }
  func.func @transform_6(%arg0: i32) -> (i32, i32) {
    %c0_i32 = arith.constant 0 : i32
    %c0_i32_0 = arith.constant 0 : i32
    %c0_i32_1 = arith.constant 0 : i32
    return %c0_i32, %c0_i32_0 : i32, i32
  }
  func.func @transform_7(%arg0: i32) -> (i32, i32) {
    %c0_i32 = arith.constant 0 : i32
    %c0_i32_0 = arith.constant 0 : i32
    %c0_i32_1 = arith.constant 0 : i32
    return %c0_i32, %c0_i32_0 : i32, i32
  }
  func.func @transform_8(%arg0: i32) -> (i32, i32) {
    %c0_i32 = arith.constant 0 : i32
    %c0_i32_0 = arith.constant 0 : i32
    %c0_i32_1 = arith.constant 0 : i32
    return %c0_i32, %c0_i32_0 : i32, i32
  }
  func.func @transform_9(%arg0: i32) -> (i32, i32, i32) {
    %c0_i32 = arith.constant 0 : i32
    %c0_i32_0 = arith.constant 0 : i32
    %c0_i32_1 = arith.constant 0 : i32
    return %arg0, %c0_i32, %c0_i32_0 : i32, i32, i32
  }
}

</mosaic_0001>

<llo_original>
// kernel: tdnn_gru_se_forward.6
$region0: #{tdnn_gru_se_forward.6}
  #allocation0 [shape = 'u32[]', space=smem, size = 0x4, offset = 0x4, fixed_abs, tag = 'smem constant byte address 0x4 - core index']
  #allocation1 [shape = 'u32[144,128]{1,0:T(1,128)}', space=vmem, size = 0x12000, scoped, tag = 'internal scratch']
  %s0 = inlined_call_operand.vmem [shape: f32[2,30,16], index: 0, kind: input, shape index: {}]
  %s1 = inlined_call_operand.vmem [shape: bf16[80,64], index: 1, kind: input, shape index: {}]
  %s2 = inlined_call_operand.vmem [shape: f32[1,64], index: 2, kind: input, shape index: {}]
  %s3 = inlined_call_operand.vmem [shape: f32[1,64], index: 3, kind: input, shape index: {}]
  %s4 = inlined_call_operand.vmem [shape: f32[1,64], index: 4, kind: input, shape index: {}]
  %s5 = inlined_call_operand.vmem [shape: bf16[64,8], index: 5, kind: input, shape index: {}]
  %s6 = inlined_call_operand.vmem [shape: f32[1,8], index: 6, kind: input, shape index: {}]
  %s7 = inlined_call_operand.vmem [shape: bf16[8,64], index: 7, kind: input, shape index: {}]
  %s8 = inlined_call_operand.vmem [shape: f32[1,64], index: 8, kind: input, shape index: {}]
  %s9 = inlined_call_operand.vmem [shape: f32[2,26,64], index: 9, kind: output, shape index: {}]
  %s10 = sld [smem:[#allocation0]]
  $region69: #{tdnn_gru_se_forward.6} parent=0
    _
  %s12 = ssub.s32 1, %s10
  %s13 = scalar_select 0, %s12, %s10
  loop: start=0, step=1, limit=4
  $region2: #{tdnn_gru_se_forward.6} parent=0 // loop_pre_header
    _
  $region3: #{tdnn_gru_se_forward.6} parent=0 // loop_header
    %s15 = sphi 0, %s19
    %p16 = scmp.ge.s32.totalorder %s15, 4
    %s25 = sphi 0, %s27
    %s28 = sphi 0, %s25
    %s29 = sphi 0, %s28
    %s45 = sphi 0, %s29
    %s49 = sphi 0, %s49
    %s51 = sphi 0, %s49
    %s52 = sphi 0, %s51
    %s66 = sphi 0, %s52
    %s70 = sphi 0, %s70
    %s72 = sphi 0, %s70
    %s73 = sphi 0, %s72
    %s87 = sphi 0, %s73
    %s91 = sphi 0, %s91
    %s93 = sphi 0, %s91
    %s94 = sphi 0, %s93
    %s108 = sphi 0, %s94
    %s112 = sphi 0, %s112
    %s114 = sphi 0, %s112
    %s115 = sphi 0, %s114
    %s129 = sphi 0, %s115
    %s133 = sphi 0, %s133
    %s135 = sphi 0, %s133
    %s136 = sphi 0, %s135
    %s150 = sphi 0, %s136
    %s154 = sphi 0, %s154
    %s156 = sphi 0, %s154
    %s157 = sphi 0, %s156
    %s171 = sphi 0, %s157
    %s175 = sphi 0, %s175
    %s177 = sphi 0, %s175
    %s178 = sphi 0, %s177
    %s192 = sphi 0, %s178
    %s196 = sphi 0, %s196
    %s198 = sphi 0, %s196
    %s199 = sphi 0, %s198
    %s213 = sphi 0, %s199
    %s219 = sphi 0, %s221
    %s222 = sphi 0, %s219
    %s223 = sphi 0, %s222
    %s239 = sphi 0, %s223
  $region4: #{tdnn_gru_se_forward.6} parent=0 // loop_header_branch
    %18 = sbr.rel (%p16) target = $region8
  $region5: #{tdnn_gru_se_forward.6} parent=0 // loop_body
    %s20 = ssub.s32 %s15, 1
    %s21 = ssub.s32 %s15, 2
    %s22 = sadd.s32 %s15, 1
    %s23 = ssub.s32 %s15, %s22
    %p24 = scmp.eq.s32.totalorder %s23, 0
    %s26 = sadd.s32 %s25, 1
    %s27 = scalar_select %p24, %s25, %s26
    %p30 = pneg %p24
    %p31 = scmp.eq.s32.totalorder %s15, 1
    %p32 = por %p30, %p31
    %p33 = scmp.ne.s32.totalorder %s25, %s28
    %p34 = scmp.eq.s32.totalorder %s15, 0
    %p35 = por %p33, %p34
    %p36 = scmp.ne.s32.totalorder %s25, %s28
    %p37 = scmp.eq.s32.totalorder %s20, 1
    %p38 = por %p36, %p37
    %p39 = scmp.ne.s32.totalorder %s28, %s29
    %p40 = scmp.eq.s32.totalorder %s20, 0
    %p41 = por %p39, %p40
    %p42 = scmp.ne.s32.totalorder %s28, %s29
    %p43 = scmp.eq.s32.totalorder %s21, 1
    %p44 = por %p42, %p43
    %p46 = scmp.ne.s32.totalorder %s29, %s45
    %p47 = scmp.eq.s32.totalorder %s21, 0
    %p48 = por %p46, %p47
    %s50 = sadd.s32 %s49, 1
    %p53 = scmp.eq.s32.totalorder %s15, 1
    %p54 = scmp.ne.s32.totalorder %s49, %s51
    %p55 = scmp.eq.s32.totalorder %s15, 0
    %p56 = por %p54, %p55
    %p57 = scmp.ne.s32.totalorder %s49, %s51
    %p58 = scmp.eq.s32.totalorder %s20, 1
    %p59 = por %p57, %p58
    %p60 = scmp.ne.s32.totalorder %s51, %s52
    %p61 = scmp.eq.s32.totalorder %s20, 0
    %p62 = por %p60, %p61
    %p63 = scmp.ne.s32.totalorder %s51, %s52
    %p64 = scmp.eq.s32.totalorder %s21, 1
    %p65 = por %p63, %p64
    %p67 = scmp.ne.s32.totalorder %s52, %s66
    %p68 = scmp.eq.s32.totalorder %s21, 0
    %p69 = por %p67, %p68
    %s71 = sadd.s32 %s70, 1
    %p74 = scmp.eq.s32.totalorder %s15, 1
    %p75 = scmp.ne.s32.totalorder %s70, %s72
    %p76 = scmp.eq.s32.totalorder %s15, 0
    %p77 = por %p75, %p76
    %p78 = scmp.ne.s32.totalorder %s70, %s72
    %p79 = scmp.eq.s32.totalorder %s20, 1
    %p80 = por %p78, %p79
    %p81 = scmp.ne.s32.totalorder %s72, %s73
    %p82 = scmp.eq.s32.totalorder %s20, 0
    %p83 = por %p81, %p82
    %p84 = scmp.ne.s32.totalorder %s72, %s73
    %p85 = scmp.eq.s32.totalorder %s21, 1
    %p86 = por %p84, %p85
    %p88 = scmp.ne.s32.totalorder %s73, %s87
    %p89 = scmp.eq.s32.totalorder %s21, 0
    %p90 = por %p88, %p89
    %s92 = sadd.s32 %s91, 1
    %p95 = scmp.eq.s32.totalorder %s15, 1
    %p96 = scmp.ne.s32.totalorder %s91, %s93
    %p97 = scmp.eq.s32.totalorder %s15, 0
    %p98 = por %p96, %p97
    %p99 = scmp.ne.s32.totalorder %s91, %s93
    %p100 = scmp.eq.s32.totalorder %s20, 1
    %p101 = por %p99, %p100
    %p102 = scmp.ne.s32.totalorder %s93, %s94
    %p103 = scmp.eq.s32.totalorder %s20, 0
    %p104 = por %p102, %p103
    %p105 = scmp.ne.s32.totalorder %s93, %s94
    %p106 = scmp.eq.s32.totalorder %s21, 1
    %p107 = por %p105, %p106
    %p109 = scmp.ne.s32.totalorder %s94, %s108
    %p110 = scmp.eq.s32.totalorder %s21, 0
    %p111 = por %p109, %p110
    %s113 = sadd.s32 %s112, 1
    %p116 = scmp.eq.s32.totalorder %s15, 1
    %p117 = scmp.ne.s32.totalorder %s112, %s114
    %p118 = scmp.eq.s32.totalorder %s15, 0
    %p119 = por %p117, %p118
    %p120 = scmp.ne.s32.totalorder %s112, %s114
    %p121 = scmp.eq.s32.totalorder %s20, 1
    %p122 = por %p120, %p121
    %p123 = scmp.ne.s32.totalorder %s114, %s115
    %p124 = scmp.eq.s32.totalorder %s20, 0
    %p125 = por %p123, %p124
    %p126 = scmp.ne.s32.totalorder %s114, %s115
    %p127 = scmp.eq.s32.totalorder %s21, 1
    %p128 = por %p126, %p127
    %p130 = scmp.ne.s32.totalorder %s115, %s129
    %p131 = scmp.eq.s32.totalorder %s21, 0
    %p132 = por %p130, %p131
    %s134 = sadd.s32 %s133, 1
    %p137 = scmp.eq.s32.totalorder %s15, 1
    %p138 = scmp.ne.s32.totalorder %s133, %s135
    %p139 = scmp.eq.s32.totalorder %s15, 0
    %p140 = por %p138, %p139
    %p141 = scmp.ne.s32.totalorder %s133, %s135
    %p142 = scmp.eq.s32.totalorder %s20, 1
    %p143 = por %p141, %p142
    %p144 = scmp.ne.s32.totalorder %s135, %s136
    %p145 = scmp.eq.s32.totalorder %s20, 0
    %p146 = por %p144, %p145
    %p147 = scmp.ne.s32.totalorder %s135, %s136
    %p148 = scmp.eq.s32.totalorder %s21, 1
    %p149 = por %p147, %p148
    %p151 = scmp.ne.s32.totalorder %s136, %s150
    %p152 = scmp.eq.s32.totalorder %s21, 0
    %p153 = por %p151, %p152
    %s155 = sadd.s32 %s154, 1
    %p158 = scmp.eq.s32.totalorder %s15, 1
    %p159 = scmp.ne.s32.totalorder %s154, %s156
    %p160 = scmp.eq.s32.totalorder %s15, 0
    %p161 = por %p159, %p160
    %p162 = scmp.ne.s32.totalorder %s154, %s156
    %p163 = scmp.eq.s32.totalorder %s20, 1
    %p164 = por %p162, %p163
    %p165 = scmp.ne.s32.totalorder %s156, %s157
    %p166 = scmp.eq.s32.totalorder %s20, 0
    %p167 = por %p165, %p166
    %p168 = scmp.ne.s32.totalorder %s156, %s157
    %p169 = scmp.eq.s32.totalorder %s21, 1
    %p170 = por %p168, %p169
    %p172 = scmp.ne.s32.totalorder %s157, %s171
    %p173 = scmp.eq.s32.totalorder %s21, 0
    %p174 = por %p172, %p173
    %s176 = sadd.s32 %s175, 1
    %p179 = scmp.eq.s32.totalorder %s15, 1
    %p180 = scmp.ne.s32.totalorder %s175, %s177
    %p181 = scmp.eq.s32.totalorder %s15, 0
    %p182 = por %p180, %p181
    %p183 = scmp.ne.s32.totalorder %s175, %s177
    %p184 = scmp.eq.s32.totalorder %s20, 1
    %p185 = por %p183, %p184
    %p186 = scmp.ne.s32.totalorder %s177, %s178
    %p187 = scmp.eq.s32.totalorder %s20, 0
    %p188 = por %p186, %p187
    %p189 = scmp.ne.s32.totalorder %s177, %s178
    %p190 = scmp.eq.s32.totalorder %s21, 1
    %p191 = por %p189, %p190
    %p193 = scmp.ne.s32.totalorder %s178, %s192
    %p194 = scmp.eq.s32.totalorder %s21, 0
    %p195 = por %p193, %p194
    %s197 = sadd.s32 %s196, 1
    %p200 = scmp.eq.s32.totalorder %s15, 1
    %p201 = scmp.ne.s32.totalorder %s196, %s198
    %p202 = scmp.eq.s32.totalorder %s15, 0
    %p203 = por %p201, %p202
    %p204 = scmp.ne.s32.totalorder %s196, %s198
    %p205 = scmp.eq.s32.totalorder %s20, 1
    %p206 = por %p204, %p205
    %p207 = scmp.ne.s32.totalorder %s198, %s199
    %p208 = scmp.eq.s32.totalorder %s20, 0
    %p209 = por %p207, %p208
    %p210 = scmp.ne.s32.totalorder %s198, %s199
    %p211 = scmp.eq.s32.totalorder %s21, 1
    %p212 = por %p210, %p211
    %p214 = scmp.ne.s32.totalorder %s199, %s213
    %p215 = scmp.eq.s32.totalorder %s21, 0
    %p216 = por %p214, %p215
    %s217 = ssub.s32 %s15, %s22
    %p218 = scmp.eq.s32.totalorder %s217, 0
    %s220 = sadd.s32 %s219, 1
    %s221 = scalar_select %p218, %s219, %s220
    %p224 = pneg %p218
    %p225 = scmp.eq.s32.totalorder %s15, 1
    %p226 = por %p224, %p225
    %p227 = scmp.ne.s32.totalorder %s219, %s222
    %p228 = scmp.eq.s32.totalorder %s15, 0
    %p229 = por %p227, %p228
    %p230 = scmp.ne.s32.totalorder %s219, %s222
    %p231 = scmp.eq.s32.totalorder %s20, 1
    %p232 = por %p230, %p231
    %p233 = scmp.ne.s32.totalorder %s222, %s223
    %p234 = scmp.eq.s32.totalorder %s20, 0
    %p235 = por %p233, %p234
    %p236 = scmp.ne.s32.totalorder %s222, %s223
    %p237 = scmp.eq.s32.totalorder %s21, 1
    %p238 = por %p236, %p237
    %p240 = scmp.ne.s32.totalorder %s223, %s239
    %p241 = scmp.eq.s32.totalorder %s21, 0
    %p242 = por %p240, %p241
    %p243 = scmp.le.s32.totalorder 1, %s15
    %p244 = scmp.lt.s32.totalorder %s15, 3
    %p245 = pnand %p243, %p244
    %p246 = pneg %p245
    // Predicated region
    $region9: #{tdnn_gru_se_forward.6} parent=5 // pred_check
      _
    $region10: #{tdnn_gru_se_forward.6} parent=5 // pred_check_branch
      %248 = sbr.rel (%p245) target = $region12
    $region11: #{tdnn_gru_se_forward.6} parent=5 // pred_region
      %s249 = ssub.s32 %s15, 1
      // Predicated region
      $region13: #{tdnn_gru_se_forward.6} parent=11 // pred_check
        %p250 = pneg %p62
      $region14: #{tdnn_gru_se_forward.6} parent=11 // pred_check_branch
        %252 = sbr.rel (%p250) target = $region16
      $region15: #{tdnn_gru_se_forward.6} parent=11 // pred_region
        _
      $region16: #{tdnn_gru_se_forward.6} parent=11 // pred_fallthru
        _
      // Predicated region
      $region17: #{tdnn_gru_se_forward.6} parent=11 // pred_check
        %p253 = pneg %p83
      $region18: #{tdnn_gru_se_forward.6} parent=11 // pred_check_branch
        %255 = sbr.rel (%p253) target = $region20
      $region19: #{tdnn_gru_se_forward.6} parent=11 // pred_region
        _
      $region20: #{tdnn_gru_se_forward.6} parent=11 // pred_fallthru
        _
      // Predicated region
      $region21: #{tdnn_gru_se_forward.6} parent=11 // pred_check
        %p256 = pneg %p104
      $region22: #{tdnn_gru_se_forward.6} parent=11 // pred_check_branch
        %258 = sbr.rel (%p256) target = $region24
      $region23: #{tdnn_gru_se_forward.6} parent=11 // pred_region
        _
      $region24: #{tdnn_gru_se_forward.6} parent=11 // pred_fallthru
        _
      // Predicated region
      $region25: #{tdnn_gru_se_forward.6} parent=11 // pred_check
        %p259 = pneg %p125
      $region26: #{tdnn_gru_se_forward.6} parent=11 // pred_check_branch
        %261 = sbr.rel (%p259) target = $region28
      $region27: #{tdnn_gru_se_forward.6} parent=11 // pred_region
        _
      $region28: #{tdnn_gru_se_forward.6} parent=11 // pred_fallthru
        _
      // Predicated region
      $region29: #{tdnn_gru_se_forward.6} parent=11 // pred_check
        %p262 = pneg %p146
      $region30: #{tdnn_gru_se_forward.6} parent=11 // pred_check_branch
        %264 = sbr.rel (%p262) target = $region32
      $region31: #{tdnn_gru_se_forward.6} parent=11 // pred_region
        _
      $region32: #{tdnn_gru_se_forward.6} parent=11 // pred_fallthru
        _
      // Predicated region
      $region33: #{tdnn_gru_se_forward.6} parent=11 // pred_check
        %p265 = pneg %p167
      $region34: #{tdnn_gru_se_forward.6} parent=11 // pred_check_branch
        %267 = sbr.rel (%p265) target = $region36
      $region35: #{tdnn_gru_se_forward.6} parent=11 // pred_region
        _
      $region36: #{tdnn_gru_se_forward.6} parent=11 // pred_fallthru
        _
      // Predicated region
      $region37: #{tdnn_gru_se_forward.6} parent=11 // pred_check
        %p268 = pneg %p188
      $region38: #{tdnn_gru_se_forward.6} parent=11 // pred_check_branch
        %270 = sbr.rel (%p268) target = $region40
      $region39: #{tdnn_gru_se_forward.6} parent=11 // pred_region
        _
      $region40: #{tdnn_gru_se_forward.6} parent=11 // pred_fallthru
        _
      // Predicated region
      $region41: #{tdnn_gru_se_forward.6} parent=11 // pred_check
        %p271 = pneg %p209
      $region42: #{tdnn_gru_se_forward.6} parent=11 // pred_check_branch
        %273 = sbr.rel (%p271) target = $region44
      $region43: #{tdnn_gru_se_forward.6} parent=11 // pred_region
        _
      $region44: #{tdnn_gru_se_forward.6} parent=11 // pred_fallthru
        _
    $region12: #{tdnn_gru_se_forward.6} parent=5 // pred_fallthru
      _
    %p274 = scmp.lt.s32.totalorder %s15, 2
    // Predicated region
    $region45: #{tdnn_gru_se_forward.6} parent=5 // pred_check
      %p275 = pneg %p274
    $region46: #{tdnn_gru_se_forward.6} parent=5 // pred_check_branch
      %277 = sbr.rel (%p275) target = $region48
    $region47: #{tdnn_gru_se_forward.6} parent=5 // pred_region
      // Predicated region
      $region49: #{tdnn_gru_se_forward.6} parent=47 // pred_check
        %p278 = pneg %p35
      $region50: #{tdnn_gru_se_forward.6} parent=47 // pred_check_branch
        %280 = sbr.rel (%p278) target = $region52
      $region51: #{tdnn_gru_se_forward.6} parent=47 // pred_region
        %p281 = scmp.lt.s32.totalorder %s15, 1
        %s282 = scalar_select %p281, %s15, 1
        %s283 = smul.addr %s282, 4
        %s284 = smul.addr %s283, 8
        %s285 = scalar_lea.vmem %s0, %s284
      $region52: #{tdnn_gru_se_forward.6} parent=47 // pred_fallthru
        _
    $region48: #{tdnn_gru_se_forward.6} parent=5 // pred_fallthru
      _
    %p286 = scmp.le.s32.totalorder 1, %s15
    %p287 = scmp.lt.s32.totalorder %s15, 3
    %p288 = pnand %p286, %p287
    %p289 = pneg %p288
    // Predicated region
    $region53: #{tdnn_gru_se_forward.6} parent=5 // pred_check
      _
    $region54: #{tdnn_gru_se_forward.6} parent=5 // pred_check_branch
      %291 = sbr.rel (%p288) target = $region56
    $region55: #{tdnn_gru_se_forward.6} parent=5 // pred_region
      %s292 = ssub.s32 %s15, 1
      %p293 = scmp.lt.s32.totalorder %s20, 1
      %s294 = scalar_select %p293, %s20, 1
      %s295 = smul.addr %s294, 4
      %s296 = smul.addr %s295, 8
      %s297 = scalar_lea.vmem %s0, %s296
      %p298 = pneg %p41
      %p299 = pneg %p38
      %p300 = pneg %p62
      %p301 = pneg %p59
      %p302 = pneg %p83
      %p303 = pneg %p80
      %p304 = pneg %p104
      %p305 = pneg %p101
      %p306 = pneg %p125
      %p307 = pneg %p122
      %p308 = pneg %p146
      %p309 = pneg %p143
      %p310 = pneg %p167
      %p311 = pneg %p164
      %p312 = pneg %p188
      %p313 = pneg %p185
      %p314 = pneg %p209
      %p315 = pneg %p206
      %p316 = pneg %p235
      %p317 = pneg %p232
      %p318 = scmp.lt.s32.totalorder %s20, 1
      %s319 = scalar_select %p318, %s20, 1
      %s320 = smul.addr %s319, 4
      %s321 = smul.addr %s320, 8
      %s322 = scalar_lea.vmem %s9, %s321
      %p323 = scmp.lt.s32.totalorder %s20, 1
      %s324 = scalar_select %p323, %s20, 1
      %s325 = smul.addr %s324, 4
      %s326 = smul.addr %s325, 8
      %s327 = scalar_lea.vmem %s0, %s326
      %p328 = scmp.lt.s32.totalorder %s20, 1
      %s329 = scalar_select %p328, %s20, 1
      %s330 = smul.addr %s329, 4
      %s331 = smul.addr %s330, 8
      %s332 = scalar_lea.vmem %s9, %s331
      %v334 = vld [vmem:[%s327] sm:$0xff]
      %v335 = vld [vmem:[%s327 + $0x8] sm:$0xff]
      %v336 = vld [vmem:[%s327 + $0x10] sm:$0xff]
      %v337 = vld [vmem:[%s327 + $0x18] sm:$0x3]
      %v338 = vld [vmem:[%s327 + $0x1] sm:$0xff]
      %v339 = vld [vmem:[%s327 + $0x9] sm:$0xff]
      %v340 = vld [vmem:[%s327 + $0x11] sm:$0xff]
      %v341 = vld [vmem:[%s327 + $0x19] sm:$0x3]
      %v342 = vld [vmem:[%s327 + $0x2] sm:$0xff]
      %v343 = vld [vmem:[%s327 + $0xa] sm:$0xff]
      %v344 = vld [vmem:[%s327 + $0x12] sm:$0xff]
      %v345 = vld [vmem:[%s327 + $0x1a] sm:$0x3]
      %v346 = vld [vmem:[%s327 + $0x3] sm:$0xff]
      %v347 = vld [vmem:[%s327 + $0xb] sm:$0xff]
      %v348 = vld [vmem:[%s327 + $0x13] sm:$0xff]
      %v349 = vld [vmem:[%s327 + $0x1b] sm:$0x3]
      %v350 = vld [vmem:[%s327 + $0x4] sm:$0xff]
      %v351 = vld [vmem:[%s327 + $0xc] sm:$0xff]
      %v352 = vld [vmem:[%s327 + $0x14] sm:$0xff]
      %v353 = vld [vmem:[%s327 + $0x1c] sm:$0x3]
      %358 = vrot.lane.b32.xlu0 %v338, 16
      %v359 = vpop.permute.xlu0 %358
      %360 = vrot.lane.b32.xlu0 %v339, 16
      %v361 = vpop.permute.xlu0 %360
      %362 = vrot.lane.b32.xlu0 %v340, 16
      %v363 = vpop.permute.xlu0 %362
      %364 = vrot.lane.b32.xlu0 %v341, 16
      %v365 = vpop.permute.xlu0 %364
      %374 = vrot.lane.b32.xlu0 %v342, 32
      %v375 = vpop.permute.xlu0 %374
      %376 = vrot.lane.b32.xlu0 %v343, 32
      %v377 = vpop.permute.xlu0 %376
      %378 = vrot.lane.b32.xlu0 %v344, 32
      %v379 = vpop.permute.xlu0 %378
      %380 = vrot.lane.b32.xlu0 %v345, 32
      %v381 = vpop.permute.xlu0 %380
      %390 = vrot.lane.b32.xlu0 %v346, 48
      %v391 = vpop.permute.xlu0 %390
      %392 = vrot.lane.b32.xlu0 %v347, 48
      %v393 = vpop.permute.xlu0 %392
      %394 = vrot.lane.b32.xlu0 %v348, 48
      %v395 = vpop.permute.xlu0 %394
      %396 = vrot.lane.b32.xlu0 %v349, 48
      %v397 = vpop.permute.xlu0 %396
      %406 = vrot.lane.b32.xlu0 %v350, 64
      %v407 = vpop.permute.xlu0 %406
      %408 = vrot.lane.b32.xlu0 %v351, 64
      %v409 = vpop.permute.xlu0 %408
      %410 = vrot.lane.b32.xlu0 %v352, 64
      %v411 = vpop.permute.xlu0 %410
      %412 = vrot.lane.b32.xlu0 %v353, 64
      %v413 = vpop.permute.xlu0 %412
      %vm418 = vcmask 130048
      %v419 = vsel %vm418, %v334, %v359
      %v420 = vsel %vm418, %v335, %v361
      %v421 = vsel %vm418, %v336, %v363
      %v422 = vsel %vm418, %v337, %v365
      %vm423 = vcmask 261120
      %v424 = vsel %vm423, %v419, %v375
      %v425 = vsel %vm423, %v420, %v377
      %v426 = vsel %vm423, %v421, %v379
      %v427 = vsel %vm423, %v422, %v381
      %vm428 = vcmask 392192
      %v429 = vsel %vm428, %v424, %v391
      %v430 = vsel %vm428, %v425, %v393
      %v431 = vsel %vm428, %v426, %v395
      %v432 = vsel %vm428, %v427, %v397
      %vm433 = vcmask 523264
      %v434 = vsel %vm433, %v429, %v407
      %v435 = vsel %vm433, %v430, %v409
      %v436 = vsel %vm433, %v431, %v411
      %v437 = vsel %vm433, %v432, %v413
      %v438 = vpack.c.bf16 %v435, %v434
      %v439 = vpack.c.bf16 %v437, %v436
      %v440 = vld [vmem:[%s1] sm:$0xf]
      %v441 = vld [vmem:[%s1 + $0x4] sm:$0xf]
      %v442 = vld [vmem:[%s1 + $0x8] sm:$0xf]
      %v443 = vld [vmem:[%s1 + $0xc] sm:$0xf]
      %v444 = vld [vmem:[%s1 + $0x10] sm:$0xf]
      %v445 = vld [vmem:[%s1 + $0x14] sm:$0xf]
      %v446 = vld [vmem:[%s1 + $0x18] sm:$0xf]
      %v447 = vld [vmem:[%s1 + $0x1c] sm:$0xf]
      %v448 = vld [vmem:[%s1 + $0x20] sm:$0xf]
      %v449 = vld [vmem:[%s1 + $0x24] sm:$0xf]
      %v450 = vld [vmem:[%s2] sm:$0x1]
      %v452 = vlaneseq
      %v453 = vshrl.u32 %v452, 7
      %v454 = vsub.s32 0, %v453
      %v455 = vrot.slane %v450, %v454
      %v467 = vunpack.c.l.b16 %v440
      %v468 = vunpack.c.l.b16 %v441
      %v469 = vunpack.c.l.b16 %v442
      %v470 = vunpack.c.l.b16 %v443
      %v471 = vunpack.c.l.b16 %v444
      %v472 = vunpack.c.l.b16 %v445
      %v473 = vunpack.c.l.b16 %v446
      %v474 = vunpack.c.l.b16 %v447
      %v475 = vunpack.c.l.b16 %v448
      %v476 = vunpack.c.l.b16 %v449
      %v477 = vpack.c.b16 %v468, %v467
      %v478 = vpack.c.b16 %v470, %v469
      %v479 = vpack.c.b16 %v472, %v471
      %v480 = vpack.c.b16 %v474, %v473
      %v481 = vpack.c.b16 %v476, %v475
      %vm487 = vcmask 654336
      %v489 = vsel %vm487, %v438, 0
      %v492 = vsel %vm487, %v439, 0
      %494 = vmatprep.subr.bf16.mxu0 0
      %495 = vmatpush1.bf16.msra.mxu0 %v477
      %496 = vmatprep.subr.bf16.mxu0 0
      %497 = vmatpush1.bf16.msra.mxu0 %v478
      %498 = vmatprep.subr.bf16.mxu0 0
      %499 = vmatpush1.bf16.msra.mxu0 %v479
      %500 = vmatprep.subr.bf16.mxu0 0
      %501 = vmatpush1.bf16.msra.mxu0 %v480
      %502 = vmatprep.subr.bf16.mxu0 0
      %503 = vmatpush1.bf16.msra.mxu0 %v481
      %504 = vmatprep.subr.bf16.mxu0 0
      %505 = vmatpush1.bf16.msra.mxu0 0
      %506 = vmatprep.subr.bf16.mxu0 0
      %507 = vmatpush1.bf16.msra.mxu0 0
      %508 = vmatprep.subr.bf16.mxu0 0
      %509 = vmatpush1.bf16.msra.mxu0 0
      %510 = vmatprep.subr.bf16.mxu0 0
      %511 = vmatpush1.bf16.msra.mxu0 0
      %512 = vmatprep.subr.bf16.mxu0 0
      %513 = vmatpush1.bf16.msra.mxu0 0
      %514 = vmatprep.subr.bf16.mxu0 0
      %515 = vmatpush1.bf16.msra.mxu0 0
      %516 = vmatprep.subr.bf16.mxu0 0
      %517 = vmatpush1.bf16.msra.mxu0 0
      %518 = vmatprep.subr.bf16.mxu0 0
      %519 = vmatpush1.bf16.msra.mxu0 0
      %520 = vmatprep.subr.bf16.mxu0 0
      %521 = vmatpush1.bf16.msra.mxu0 0
      %522 = vmatprep.subr.bf16.mxu0 0
      %523 = vmatpush1.bf16.msra.mxu0 0
      %524 = vmatprep.subr.bf16.mxu0 0
      %525 = vmatpush1.bf16.msra.mxu0 0
      %526 = vmatprep.mubr.bf16.mxu0 0
      %527 = vmatmul.mubr.bf16.gmra.mrb[0].mxu0 %v489
      %v528 = vpop.f32.mrb[0].mxu0
      %v529 = vadd.f32 %v455, %v528
      %v530 = vpop.f32.mrb[0].mxu0
      %v531 = vpop.f32.mrb[0].mxu0
      %v532 = vadd.f32 %v455, %v531
      %v533 = vpop.f32.mrb[0].mxu0
      %534 = vmatprep.mubr.bf16.mxu0 0
      %535 = vmatmul.mubr.bf16.gmra.mrb[0].mxu0 %v492
      %v536 = vpop.f32.mrb[0].mxu0
      %v537 = vadd.f32 %v455, %v536
      %v538 = vpop.f32.mrb[0].mxu0
      %v539 = vpop.f32.mrb[0].mxu0
      %v540 = vadd.f32 %v455, %v539
      %v541 = vpop.f32.mrb[0].mxu0
      %542 = vdwg.mxu0
      %v543 = vmax.f32 %v529, 0.0
      %v544 = vmax.f32 %v532, 0.0
      %v545 = vmax.f32 %v537, 0.0
      %v546 = vmax.f32 %v540, 0.0
      %v547 = vld [vmem:[%s3] sm:$0x1]
      %v549 = vlaneseq
      %v550 = vshrl.u32 %v549, 7
      %v551 = vsub.s32 0, %v550
      %v552 = vrot.slane %v547, %v551
      %v554 = vmul.f32 %v543, %v552
      %v555 = vmul.f32 %v544, %v552
      %v556 = vmul.f32 %v545, %v552
      %v557 = vmul.f32 %v546, %v552
      %v558 = vld [vmem:[%s4] sm:$0x1]
      %v560 = vlaneseq
      %v561 = vshrl.u32 %v560, 7
      %v562 = vsub.s32 0, %v561
      %v563 = vrot.slane %v558, %v562
      %v565 = vadd.f32 %v554, %v563
      %v566 = vadd.f32 %v555, %v563
      %v567 = vadd.f32 %v556, %v563
      %v568 = vadd.f32 %v557, %v563
      %v569 = vsel %vm433, %v565, 0.0
      %v570 = vsel %vm433, %v566, 0.0
      %v571 = vadd.f32 %v569, %v570
      %v572 = vsel %vm433, %v567, 0.0
      %v573 = vadd.f32 %v571, %v572
      %vm574 = vcmask 517120
      %v575 = vsel %vm574, %v568, 0.0
      %v576 = vadd.f32 %v573, %v575
      %v577 = vrot.slane %v576, 4
      %v578 = vadd.f32 %v576, %v577
      %v579 = vrot.slane %v578, 2
      %v580 = vadd.f32 %v578, %v579
      %v581 = vrot.slane %v580, 1
      %v582 = vadd.f32 %v580, %v581
      %v583 = vmul.f32 %v582, 0.03846154
      %v584 = vpack.c.bf16 %v583, %v583
      %v585 = vld [vmem:[%s5] sm:$0xf]
      %v586 = vld [vmem:[%s5 + $0x4] sm:$0xf]
      %v587 = vld [vmem:[%s5 + $0x8] sm:$0xf]
      %v588 = vld [vmem:[%s5 + $0xc] sm:$0xf]
      %v589 = vld [vmem:[%s5 + $0x10] sm:$0xf]
      %v590 = vld [vmem:[%s5 + $0x14] sm:$0xf]
      %v591 = vld [vmem:[%s5 + $0x18] sm:$0xf]
      %v592 = vld [vmem:[%s5 + $0x1c] sm:$0xf]
      %v593 = vld [vmem:[%s6] sm:$0x1]
      %v602 = vunpack.c.l.b16 %v585
      %v603 = vunpack.c.l.b16 %v586
      %v604 = vunpack.c.l.b16 %v587
      %v605 = vunpack.c.l.b16 %v588
      %v606 = vunpack.c.l.b16 %v589
      %v607 = vunpack.c.l.b16 %v590
      %v608 = vunpack.c.l.b16 %v591
      %v609 = vunpack.c.l.b16 %v592
      %v610 = vpack.c.b16 %v603, %v602
      %v611 = vpack.c.b16 %v605, %v604
      %v612 = vpack.c.b16 %v607, %v606
      %v613 = vpack.c.b16 %v609, %v608
      %v619 = vsel %vm433, %v584, 0
      %621 = vmatprep.subr.bf16.mxu0 0
      %622 = vmatpush1.bf16.msra.mxu0 %v610
      %623 = vmatprep.subr.bf16.mxu0 0
      %624 = vmatpush1.bf16.msra.mxu0 %v611
      %625 = vmatprep.subr.bf16.mxu0 0
      %626 = vmatpush1.bf16.msra.mxu0 %v612
      %627 = vmatprep.subr.bf16.mxu0 0
      %628 = vmatpush1.bf16.msra.mxu0 %v613
      %629 = vmatprep.subr.bf16.mxu0 0
      %630 = vmatpush1.bf16.msra.mxu0 0
      %631 = vmatprep.subr.bf16.mxu0 0
      %632 = vmatpush1.bf16.msra.mxu0 0
      %633 = vmatprep.subr.bf16.mxu0 0
      %634 = vmatpush1.bf16.msra.mxu0 0
      %635 = vmatprep.subr.bf16.mxu0 0
      %636 = vmatpush1.bf16.msra.mxu0 0
      %637 = vmatprep.subr.bf16.mxu0 0
      %638 = vmatpush1.bf16.msra.mxu0 0
      %639 = vmatprep.subr.bf16.mxu0 0
      %640 = vmatpush1.bf16.msra.mxu0 0
      %641 = vmatprep.subr.bf16.mxu0 0
      %642 = vmatpush1.bf16.msra.mxu0 0
      %643 = vmatprep.subr.bf16.mxu0 0
      %644 = vmatpush1.bf16.msra.mxu0 0
      %645 = vmatprep.subr.bf16.mxu0 0
      %646 = vmatpush1.bf16.msra.mxu0 0
      %647 = vmatprep.subr.bf16.mxu0 0
      %648 = vmatpush1.bf16.msra.mxu0 0
      %649 = vmatprep.subr.bf16.mxu0 0
      %650 = vmatpush1.bf16.msra.mxu0 0
      %651 = vmatprep.subr.bf16.mxu0 0
      %652 = vmatpush1.bf16.msra.mxu0 0
      %653 = vmatprep.mubr.bf16.mxu0 0
      %654 = vmatmul.mubr.bf16.gmra.mrb[0].mxu0 %v619
      %v655 = vpop.f32.mrb[0].mxu0
      %v656 = vadd.f32 %v593, %v655
      %v657 = vpop.f32.mrb[0].mxu0
      %v658 = vpop.f32.mrb[0].mxu0
      %v659 = vpop.f32.mrb[0].mxu0
      %660 = vdwg.mxu0
      %v661 = vmax.f32 %v656, 0.0
      %v662 = vpack.c.bf16 %v661, %v661
      %v663 = vld [vmem:[%s7] sm:$0xf]
      %v664 = vld [vmem:[%s8] sm:$0x1]
      %vm665 = vcmask 64512
      %v667 = vsel %vm665, %v662, 0
      %vm669 = vcmask 1043456
      %v671 = vsel %vm669, %v663, 0
      %673 = vmatprep.subr.bf16.mxu0 0
      %674 = vmatpush1.bf16.msra.mxu0 %v671
      %675 = vmatprep.subr.bf16.mxu0 0
      %676 = vmatpush1.bf16.msra.mxu0 0
      %677 = vmatprep.subr.bf16.mxu0 0
      %678 = vmatpush1.bf16.msra.mxu0 0
      %679 = vmatprep.subr.bf16.mxu0 0
      %680 = vmatpush1.bf16.msra.mxu0 0
      %681 = vmatprep.subr.bf16.mxu0 0
      %682 = vmatpush1.bf16.msra.mxu0 0
      %683 = vmatprep.subr.bf16.mxu0 0
      %684 = vmatpush1.bf16.msra.mxu0 0
      %685 = vmatprep.subr.bf16.mxu0 0
      %686 = vmatpush1.bf16.msra.mxu0 0
      %687 = vmatprep.subr.bf16.mxu0 0
      %688 = vmatpush1.bf16.msra.mxu0 0
      %689 = vmatprep.subr.bf16.mxu0 0
      %690 = vmatpush1.bf16.msra.mxu0 0
      %691 = vmatprep.subr.bf16.mxu0 0
      %692 = vmatpush1.bf16.msra.mxu0 0
      %693 = vmatprep.subr.bf16.mxu0 0
      %694 = vmatpush1.bf16.msra.mxu0 0
      %695 = vmatprep.subr.bf16.mxu0 0
      %696 = vmatpush1.bf16.msra.mxu0 0
      %697 = vmatprep.subr.bf16.mxu0 0
      %698 = vmatpush1.bf16.msra.mxu0 0
      %699 = vmatprep.subr.bf16.mxu0 0
      %700 = vmatpush1.bf16.msra.mxu0 0
      %701 = vmatprep.subr.bf16.mxu0 0
      %702 = vmatpush1.bf16.msra.mxu0 0
      %703 = vmatprep.subr.bf16.mxu0 0
      %704 = vmatpush1.bf16.msra.mxu0 0
      %705 = vmatprep.mubr.bf16.mxu0 0
      %706 = vmatmul.mubr.bf16.gmra.mrb[0].mxu0 %v667
      %v707 = vpop.f32.mrb[0].mxu0
      %v708 = vadd.f32 %v664, %v707
      %v709 = vpop.f32.mrb[0].mxu0
      %v710 = vpop.f32.mrb[0].mxu0
      %v711 = vpop.f32.mrb[0].mxu0
      %712 = vdwg.mxu0
      %v713 = vsub.f32 0.0, %v708
      %v714 = vmul.f32 %v713, 1.442695
      %v715 = vpow.pop %v714
      %v716 = vadd.f32 %v715, 1.0
      %v717 = vrcp.pop %v716
      %v718 = vmul.f32 1.0, %v717
      %v719 = vlaneseq
      %v720 = vshrl.u32 %v719, 7
      %v721 = vsub.s32 0, %v720
      %v722 = vrot.slane %v718, %v721
      %v723 = vmul.f32 %v565, %v722
      %v724 = vmul.f32 %v566, %v722
      %v725 = vmul.f32 %v567, %v722
      %v726 = vmul.f32 %v568, %v722
      %727 = vst.msk [vmem:[%s332] sm:$0xff] %vm433, %v723
      %728 = vst.msk [vmem:[%s332 + $0x8] sm:$0xff] %vm433, %v724
      %729 = vst.msk [vmem:[%s332 + $0x10] sm:$0xff] %vm433, %v725
      %730 = vst.msk [vmem:[%s332 + $0x18] sm:$0x3] %vm574, %v726
      %p731 = scmp.lt.s32.totalorder %s20, 1
      %s732 = scalar_select %p731, %s20, 1
      %s733 = smul.addr %s732, 4
      %s734 = smul.addr %s733, 8
      %s735 = scalar_lea.vmem %s9, %s734
      // Predicated region
      $region57: #{tdnn_gru_se_forward.6} parent=55 // pred_check
        %p736 = pneg %p232
      $region58: #{tdnn_gru_se_forward.6} parent=55 // pred_check_branch
        %738 = sbr.rel (%p736) target = $region60
      $region59: #{tdnn_gru_se_forward.6} parent=55 // pred_region
        _
      $region60: #{tdnn_gru_se_forward.6} parent=55 // pred_fallthru
        _
    $region56: #{tdnn_gru_se_forward.6} parent=5 // pred_fallthru
      _
    %p739 = scmp.le.s32.totalorder 2, %s15
    // Predicated region
    $region61: #{tdnn_gru_se_forward.6} parent=5 // pred_check
      %p740 = pneg %p739
    $region62: #{tdnn_gru_se_forward.6} parent=5 // pred_check_branch
      %742 = sbr.rel (%p740) target = $region64
    $region63: #{tdnn_gru_se_forward.6} parent=5 // pred_region
      %s743 = ssub.s32 %s15, 2
      // Predicated region
      $region65: #{tdnn_gru_se_forward.6} parent=63 // pred_check
        %p744 = pneg %p238
      $region66: #{tdnn_gru_se_forward.6} parent=63 // pred_check_branch
        %746 = sbr.rel (%p744) target = $region68
      $region67: #{tdnn_gru_se_forward.6} parent=63 // pred_region
        %p747 = scmp.lt.s32.totalorder %s21, 1
        %s748 = scalar_select %p747, %s21, 1
        %s749 = smul.addr %s748, 4
        %s750 = smul.addr %s749, 8
        %s751 = scalar_lea.vmem %s9, %s750
      $region68: #{tdnn_gru_se_forward.6} parent=63 // pred_fallthru
        _
    $region64: #{tdnn_gru_se_forward.6} parent=5 // pred_fallthru
      _
  $region6: #{tdnn_gru_se_forward.6} parent=0 // loop_footer
    %s19 = sadd.s32 1, %s15
  $region7: #{tdnn_gru_se_forward.6} parent=0 // loop_footer_branch
    %14 = sbr.rel target = $region3
  $region8: #{tdnn_gru_se_forward.6} parent=0 // loop_exit
    _

// kernel: tdnn_gru_se_forward.8
$region0: #{tdnn_gru_se_forward.8}
  #allocation0 [shape = 'u32[]', space=smem, size = 0x4, offset = 0x4, fixed_abs, tag = 'smem constant byte address 0x4 - core index']
  #allocation1 [shape = 'u32[144,128]{1,0:T(1,128)}', space=vmem, size = 0x12000, scoped, tag = 'internal scratch']
  %s0 = inlined_call_operand.vmem [shape: f32[2,22,64], index: 0, kind: input, shape index: {}]
  %s1 = inlined_call_operand.vmem [shape: bf16[192,64], index: 1, kind: input, shape index: {}]
  %s2 = inlined_call_operand.vmem [shape: f32[1,64], index: 2, kind: input, shape index: {}]
  %s3 = inlined_call_operand.vmem [shape: f32[1,64], index: 3, kind: input, shape index: {}]
  %s4 = inlined_call_operand.vmem [shape: f32[1,64], index: 4, kind: input, shape index: {}]
  %s5 = inlined_call_operand.vmem [shape: bf16[64,8], index: 5, kind: input, shape index: {}]
  %s6 = inlined_call_operand.vmem [shape: f32[1,8], index: 6, kind: input, shape index: {}]
  %s7 = inlined_call_operand.vmem [shape: bf16[8,64], index: 7, kind: input, shape index: {}]
  %s8 = inlined_call_operand.vmem [shape: f32[1,64], index: 8, kind: input, shape index: {}]
  %s9 = inlined_call_operand.vmem [shape: f32[2,16,64], index: 9, kind: output, shape index: {}]
  %s10 = sld [smem:[#allocation0]]
  $region69: #{tdnn_gru_se_forward.8} parent=0
    _
  %s12 = ssub.s32 1, %s10
  %s13 = scalar_select 0, %s12, %s10
  loop: start=0, step=1, limit=4
  $region2: #{tdnn_gru_se_forward.8} parent=0 // loop_pre_header
    _
  $region3: #{tdnn_gru_se_forward.8} parent=0 // loop_header
    %s15 = sphi 0, %s19
    %p16 = scmp.ge.s32.totalorder %s15, 4
    %s25 = sphi 0, %s27
    %s28 = sphi 0, %s25
    %s29 = sphi 0, %s28
    %s45 = sphi 0, %s29
    %s49 = sphi 0, %s49
    %s51 = sphi 0, %s49
    %s52 = sphi 0, %s51
    %s66 = sphi 0, %s52
    %s70 = sphi 0, %s70
    %s72 = sphi 0, %s70
    %s73 = sphi 0, %s72
    %s87 = sphi 0, %s73
    %s91 = sphi 0, %s91
    %s93 = sphi 0, %s91
    %s94 = sphi 0, %s93
    %s108 = sphi 0, %s94
    %s112 = sphi 0, %s112
    %s114 = sphi 0, %s112
    %s115 = sphi 0, %s114
    %s129 = sphi 0, %s115
    %s133 = sphi 0, %s133
    %s135 = sphi 0, %s133
    %s136 = sphi 0, %s135
    %s150 = sphi 0, %s136
    %s154 = sphi 0, %s154
    %s156 = sphi 0, %s154
    %s157 = sphi 0, %s156
    %s171 = sphi 0, %s157
    %s175 = sphi 0, %s175
    %s177 = sphi 0, %s175
    %s178 = sphi 0, %s177
    %s192 = sphi 0, %s178
    %s196 = sphi 0, %s196
    %s198 = sphi 0, %s196
    %s199 = sphi 0, %s198
    %s213 = sphi 0, %s199
    %s219 = sphi 0, %s221
    %s222 = sphi 0, %s219
    %s223 = sphi 0, %s222
    %s239 = sphi 0, %s223
  $region4: #{tdnn_gru_se_forward.8} parent=0 // loop_header_branch
    %18 = sbr.rel (%p16) target = $region8
  $region5: #{tdnn_gru_se_forward.8} parent=0 // loop_body
    %s20 = ssub.s32 %s15, 1
    %s21 = ssub.s32 %s15, 2
    %s22 = sadd.s32 %s15, 1
    %s23 = ssub.s32 %s15, %s22
    %p24 = scmp.eq.s32.totalorder %s23, 0
    %s26 = sadd.s32 %s25, 1
    %s27 = scalar_select %p24, %s25, %s26
    %p30 = pneg %p24
    %p31 = scmp.eq.s32.totalorder %s15, 1
    %p32 = por %p30, %p31
    %p33 = scmp.ne.s32.totalorder %s25, %s28
    %p34 = scmp.eq.s32.totalorder %s15, 0
    %p35 = por %p33, %p34
    %p36 = scmp.ne.s32.totalorder %s25, %s28
    %p37 = scmp.eq.s32.totalorder %s20, 1
    %p38 = por %p36, %p37
    %p39 = scmp.ne.s32.totalorder %s28, %s29
    %p40 = scmp.eq.s32.totalorder %s20, 0
    %p41 = por %p39, %p40
    %p42 = scmp.ne.s32.totalorder %s28, %s29
    %p43 = scmp.eq.s32.totalorder %s21, 1
    %p44 = por %p42, %p43
    %p46 = scmp.ne.s32.totalorder %s29, %s45
    %p47 = scmp.eq.s32.totalorder %s21, 0
    %p48 = por %p46, %p47
    %s50 = sadd.s32 %s49, 1
    %p53 = scmp.eq.s32.totalorder %s15, 1
    %p54 = scmp.ne.s32.totalorder %s49, %s51
    %p55 = scmp.eq.s32.totalorder %s15, 0
    %p56 = por %p54, %p55
    %p57 = scmp.ne.s32.totalorder %s49, %s51
    %p58 = scmp.eq.s32.totalorder %s20, 1
    %p59 = por %p57, %p58
    %p60 = scmp.ne.s32.totalorder %s51, %s52
    %p61 = scmp.eq.s32.totalorder %s20, 0
    %p62 = por %p60, %p61
    %p63 = scmp.ne.s32.totalorder %s51, %s52
    %p64 = scmp.eq.s32.totalorder %s21, 1
    %p65 = por %p63, %p64
    %p67 = scmp.ne.s32.totalorder %s52, %s66
    %p68 = scmp.eq.s32.totalorder %s21, 0
    %p69 = por %p67, %p68
    %s71 = sadd.s32 %s70, 1
    %p74 = scmp.eq.s32.totalorder %s15, 1
    %p75 = scmp.ne.s32.totalorder %s70, %s72
    %p76 = scmp.eq.s32.totalorder %s15, 0
    %p77 = por %p75, %p76
    %p78 = scmp.ne.s32.totalorder %s70, %s72
    %p79 = scmp.eq.s32.totalorder %s20, 1
    %p80 = por %p78, %p79
    %p81 = scmp.ne.s32.totalorder %s72, %s73
    %p82 = scmp.eq.s32.totalorder %s20, 0
    %p83 = por %p81, %p82
    %p84 = scmp.ne.s32.totalorder %s72, %s73
    %p85 = scmp.eq.s32.totalorder %s21, 1
    %p86 = por %p84, %p85
    %p88 = scmp.ne.s32.totalorder %s73, %s87
    %p89 = scmp.eq.s32.totalorder %s21, 0
    %p90 = por %p88, %p89
    %s92 = sadd.s32 %s91, 1
    %p95 = scmp.eq.s32.totalorder %s15, 1
    %p96 = scmp.ne.s32.totalorder %s91, %s93
    %p97 = scmp.eq.s32.totalorder %s15, 0
    %p98 = por %p96, %p97
    %p99 = scmp.ne.s32.totalorder %s91, %s93
    %p100 = scmp.eq.s32.totalorder %s20, 1
    %p101 = por %p99, %p100
    %p102 = scmp.ne.s32.totalorder %s93, %s94
    %p103 = scmp.eq.s32.totalorder %s20, 0
    %p104 = por %p102, %p103
    %p105 = scmp.ne.s32.totalorder %s93, %s94
    %p106 = scmp.eq.s32.totalorder %s21, 1
    %p107 = por %p105, %p106
    %p109 = scmp.ne.s32.totalorder %s94, %s108
    %p110 = scmp.eq.s32.totalorder %s21, 0
    %p111 = por %p109, %p110
    %s113 = sadd.s32 %s112, 1
    %p116 = scmp.eq.s32.totalorder %s15, 1
    %p117 = scmp.ne.s32.totalorder %s112, %s114
    %p118 = scmp.eq.s32.totalorder %s15, 0
    %p119 = por %p117, %p118
    %p120 = scmp.ne.s32.totalorder %s112, %s114
    %p121 = scmp.eq.s32.totalorder %s20, 1
    %p122 = por %p120, %p121
    %p123 = scmp.ne.s32.totalorder %s114, %s115
    %p124 = scmp.eq.s32.totalorder %s20, 0
    %p125 = por %p123, %p124
    %p126 = scmp.ne.s32.totalorder %s114, %s115
    %p127 = scmp.eq.s32.totalorder %s21, 1
    %p128 = por %p126, %p127
    %p130 = scmp.ne.s32.totalorder %s115, %s129
    %p131 = scmp.eq.s32.totalorder %s21, 0
    %p132 = por %p130, %p131
    %s134 = sadd.s32 %s133, 1
    %p137 = scmp.eq.s32.totalorder %s15, 1
    %p138 = scmp.ne.s32.totalorder %s133, %s135
    %p139 = scmp.eq.s32.totalorder %s15, 0
    %p140 = por %p138, %p139
    %p141 = scmp.ne.s32.totalorder %s133, %s135
    %p142 = scmp.eq.s32.totalorder %s20, 1
    %p143 = por %p141, %p142
    %p144 = scmp.ne.s32.totalorder %s135, %s136
    %p145 = scmp.eq.s32.totalorder %s20, 0
    %p146 = por %p144, %p145
    %p147 = scmp.ne.s32.totalorder %s135, %s136
    %p148 = scmp.eq.s32.totalorder %s21, 1
    %p149 = por %p147, %p148
    %p151 = scmp.ne.s32.totalorder %s136, %s150
    %p152 = scmp.eq.s32.totalorder %s21, 0
    %p153 = por %p151, %p152
    %s155 = sadd.s32 %s154, 1
    %p158 = scmp.eq.s32.totalorder %s15, 1
    %p159 = scmp.ne.s32.totalorder %s154, %s156
    %p160 = scmp.eq.s32.totalorder %s15, 0
    %p161 = por %p159, %p160
    %p162 = scmp.ne.s32.totalorder %s154, %s156
    %p163 = scmp.eq.s32.totalorder %s20, 1
    %p164 = por %p162, %p163
    %p165 = scmp.ne.s32.totalorder %s156, %s157
    %p166 = scmp.eq.s32.totalorder %s20, 0
    %p167 = por %p165, %p166
    %p168 = scmp.ne.s32.totalorder %s156, %s157
    %p169 = scmp.eq.s32.totalorder %s21, 1
    %p170 = por %p168, %p169
    %p172 = scmp.ne.s32.totalorder %s157, %s171
    %p173 = scmp.eq.s32.totalorder %s21, 0
    %p174 = por %p172, %p173
    %s176 = sadd.s32 %s175, 1
    %p179 = scmp.eq.s32.totalorder %s15, 1
    %p180 = scmp.ne.s32.totalorder %s175, %s177
    %p181 = scmp.eq.s32.totalorder %s15, 0
    %p182 = por %p180, %p181
    %p183 = scmp.ne.s32.totalorder %s175, %s177
    %p184 = scmp.eq.s32.totalorder %s20, 1
    %p185 = por %p183, %p184
    %p186 = scmp.ne.s32.totalorder %s177, %s178
    %p187 = scmp.eq.s32.totalorder %s20, 0
    %p188 = por %p186, %p187
    %p189 = scmp.ne.s32.totalorder %s177, %s178
    %p190 = scmp.eq.s32.totalorder %s21, 1
    %p191 = por %p189, %p190
    %p193 = scmp.ne.s32.totalorder %s178, %s192
    %p194 = scmp.eq.s32.totalorder %s21, 0
    %p195 = por %p193, %p194
    %s197 = sadd.s32 %s196, 1
    %p200 = scmp.eq.s32.totalorder %s15, 1
    %p201 = scmp.ne.s32.totalorder %s196, %s198
    %p202 = scmp.eq.s32.totalorder %s15, 0
    %p203 = por %p201, %p202
    %p204 = scmp.ne.s32.totalorder %s196, %s198
    %p205 = scmp.eq.s32.totalorder %s20, 1
    %p206 = por %p204, %p205
    %p207 = scmp.ne.s32.totalorder %s198, %s199
    %p208 = scmp.eq.s32.totalorder %s20, 0
    %p209 = por %p207, %p208
    %p210 = scmp.ne.s32.totalorder %s198, %s199
    %p211 = scmp.eq.s32.totalorder %s21, 1
    %p212 = por %p210, %p211
    %p214 = scmp.ne.s32.totalorder %s199, %s213
    %p215 = scmp.eq.s32.totalorder %s21, 0
    %p216 = por %p214, %p215
    %s217 = ssub.s32 %s15, %s22
    %p218 = scmp.eq.s32.totalorder %s217, 0
    %s220 = sadd.s32 %s219, 1
    %s221 = scalar_select %p218, %s219, %s220
    %p224 = pneg %p218
    %p225 = scmp.eq.s32.totalorder %s15, 1
    %p226 = por %p224, %p225
    %p227 = scmp.ne.s32.totalorder %s219, %s222
    %p228 = scmp.eq.s32.totalorder %s15, 0
    %p229 = por %p227, %p228
    %p230 = scmp.ne.s32.totalorder %s219, %s222
    %p231 = scmp.eq.s32.totalorder %s20, 1
    %p232 = por %p230, %p231
    %p233 = scmp.ne.s32.totalorder %s222, %s223
    %p234 = scmp.eq.s32.totalorder %s20, 0
    %p235 = por %p233, %p234
    %p236 = scmp.ne.s32.totalorder %s222, %s223
    %p237 = scmp.eq.s32.totalorder %s21, 1
    %p238 = por %p236, %p237
    %p240 = scmp.ne.s32.totalorder %s223, %s239
    %p241 = scmp.eq.s32.totalorder %s21, 0
    %p242 = por %p240, %p241
    %p243 = scmp.le.s32.totalorder 1, %s15
    %p244 = scmp.lt.s32.totalorder %s15, 3
    %p245 = pnand %p243, %p244
    %p246 = pneg %p245
    // Predicated region
    $region9: #{tdnn_gru_se_forward.8} parent=5 // pred_check
      _
    $region10: #{tdnn_gru_se_forward.8} parent=5 // pred_check_branch
      %248 = sbr.rel (%p245) target = $region12
    $region11: #{tdnn_gru_se_forward.8} parent=5 // pred_region
      %s249 = ssub.s32 %s15, 1
      // Predicated region
      $region13: #{tdnn_gru_se_forward.8} parent=11 // pred_check
        %p250 = pneg %p62
      $region14: #{tdnn_gru_se_forward.8} parent=11 // pred_check_branch
        %252 = sbr.rel (%p250) target = $region16
      $region15: #{tdnn_gru_se_forward.8} parent=11 // pred_region
        _
      $region16: #{tdnn_gru_se_forward.8} parent=11 // pred_fallthru
        _
      // Predicated region
      $region17: #{tdnn_gru_se_forward.8} parent=11 // pred_check
        %p253 = pneg %p83
      $region18: #{tdnn_gru_se_forward.8} parent=11 // pred_check_branch
        %255 = sbr.rel (%p253) target = $region20
      $region19: #{tdnn_gru_se_forward.8} parent=11 // pred_region
        _
      $region20: #{tdnn_gru_se_forward.8} parent=11 // pred_fallthru
        _
      // Predicated region
      $region21: #{tdnn_gru_se_forward.8} parent=11 // pred_check
        %p256 = pneg %p104
      $region22: #{tdnn_gru_se_forward.8} parent=11 // pred_check_branch
        %258 = sbr.rel (%p256) target = $region24
      $region23: #{tdnn_gru_se_forward.8} parent=11 // pred_region
        _
      $region24: #{tdnn_gru_se_forward.8} parent=11 // pred_fallthru
        _
      // Predicated region
      $region25: #{tdnn_gru_se_forward.8} parent=11 // pred_check
        %p259 = pneg %p125
      $region26: #{tdnn_gru_se_forward.8} parent=11 // pred_check_branch
        %261 = sbr.rel (%p259) target = $region28
      $region27: #{tdnn_gru_se_forward.8} parent=11 // pred_region
        _
      $region28: #{tdnn_gru_se_forward.8} parent=11 // pred_fallthru
        _
      // Predicated region
      $region29: #{tdnn_gru_se_forward.8} parent=11 // pred_check
        %p262 = pneg %p146
      $region30: #{tdnn_gru_se_forward.8} parent=11 // pred_check_branch
        %264 = sbr.rel (%p262) target = $region32
      $region31: #{tdnn_gru_se_forward.8} parent=11 // pred_region
        _
      $region32: #{tdnn_gru_se_forward.8} parent=11 // pred_fallthru
        _
      // Predicated region
      $region33: #{tdnn_gru_se_forward.8} parent=11 // pred_check
        %p265 = pneg %p167
      $region34: #{tdnn_gru_se_forward.8} parent=11 // pred_check_branch
        %267 = sbr.rel (%p265) target = $region36
      $region35: #{tdnn_gru_se_forward.8} parent=11 // pred_region
        _
      $region36: #{tdnn_gru_se_forward.8} parent=11 // pred_fallthru
        _
      // Predicated region
      $region37: #{tdnn_gru_se_forward.8} parent=11 // pred_check
        %p268 = pneg %p188
      $region38: #{tdnn_gru_se_forward.8} parent=11 // pred_check_branch
        %270 = sbr.rel (%p268) target = $region40
      $region39: #{tdnn_gru_se_forward.8} parent=11 // pred_region
        _
      $region40: #{tdnn_gru_se_forward.8} parent=11 // pred_fallthru
        _
      // Predicated region
      $region41: #{tdnn_gru_se_forward.8} parent=11 // pred_check
        %p271 = pneg %p209
      $region42: #{tdnn_gru_se_forward.8} parent=11 // pred_check_branch
        %273 = sbr.rel (%p271) target = $region44
      $region43: #{tdnn_gru_se_forward.8} parent=11 // pred_region
        _
      $region44: #{tdnn_gru_se_forward.8} parent=11 // pred_fallthru
        _
    $region12: #{tdnn_gru_se_forward.8} parent=5 // pred_fallthru
      _
    %p274 = scmp.lt.s32.totalorder %s15, 2
    // Predicated region
    $region45: #{tdnn_gru_se_forward.8} parent=5 // pred_check
      %p275 = pneg %p274
    $region46: #{tdnn_gru_se_forward.8} parent=5 // pred_check_branch
      %277 = sbr.rel (%p275) target = $region48
    $region47: #{tdnn_gru_se_forward.8} parent=5 // pred_region
      // Predicated region
      $region49: #{tdnn_gru_se_forward.8} parent=47 // pred_check
        %p278 = pneg %p35
      $region50: #{tdnn_gru_se_forward.8} parent=47 // pred_check_branch
        %280 = sbr.rel (%p278) target = $region52
      $region51: #{tdnn_gru_se_forward.8} parent=47 // pred_region
        %p281 = scmp.lt.s32.totalorder %s15, 1
        %s282 = scalar_select %p281, %s15, 1
        %s283 = smul.addr %s282, 3
        %s284 = smul.addr %s283, 8
        %s285 = scalar_lea.vmem %s0, %s284
      $region52: #{tdnn_gru_se_forward.8} parent=47 // pred_fallthru
        _
    $region48: #{tdnn_gru_se_forward.8} parent=5 // pred_fallthru
      _
    %p286 = scmp.le.s32.totalorder 1, %s15
    %p287 = scmp.lt.s32.totalorder %s15, 3
    %p288 = pnand %p286, %p287
    %p289 = pneg %p288
    // Predicated region
    $region53: #{tdnn_gru_se_forward.8} parent=5 // pred_check
      _
    $region54: #{tdnn_gru_se_forward.8} parent=5 // pred_check_branch
      %291 = sbr.rel (%p288) target = $region56
    $region55: #{tdnn_gru_se_forward.8} parent=5 // pred_region
      %s292 = ssub.s32 %s15, 1
      %p293 = scmp.lt.s32.totalorder %s20, 1
      %s294 = scalar_select %p293, %s20, 1
      %s295 = smul.addr %s294, 3
      %s296 = smul.addr %s295, 8
      %s297 = scalar_lea.vmem %s0, %s296
      %p298 = pneg %p41
      %p299 = pneg %p38
      %p300 = pneg %p62
      %p301 = pneg %p59
      %p302 = pneg %p83
      %p303 = pneg %p80
      %p304 = pneg %p104
      %p305 = pneg %p101
      %p306 = pneg %p125
      %p307 = pneg %p122
      %p308 = pneg %p146
      %p309 = pneg %p143
      %p310 = pneg %p167
      %p311 = pneg %p164
      %p312 = pneg %p188
      %p313 = pneg %p185
      %p314 = pneg %p209
      %p315 = pneg %p206
      %p316 = pneg %p235
      %p317 = pneg %p232
      %p318 = scmp.lt.s32.totalorder %s20, 1
      %s319 = scalar_select %p318, %s20, 1
      %s320 = smul.addr %s319, 2
      %s321 = smul.addr %s320, 8
      %s322 = scalar_lea.vmem %s9, %s321
      %p323 = scmp.lt.s32.totalorder %s20, 1
      %s324 = scalar_select %p323, %s20, 1
      %s325 = smul.addr %s324, 3
      %s326 = smul.addr %s325, 8
      %s327 = scalar_lea.vmem %s0, %s326
      %p328 = scmp.lt.s32.totalorder %s20, 1
      %s329 = scalar_select %p328, %s20, 1
      %s330 = smul.addr %s329, 2
      %s331 = smul.addr %s330, 8
      %s332 = scalar_lea.vmem %s9, %s331
      %v334 = vld [vmem:[%s327] sm:$0xff]
      %v335 = vld [vmem:[%s327 + $0x8] sm:$0xff]
      %v336 = vld [vmem:[%s327 + $0x3] sm:$0xff]
      %v337 = vld [vmem:[%s327 + $0xb] sm:$0xff]
      %v338 = vld [vmem:[%s327 + $0x6] sm:$0xff]
      %v339 = vld [vmem:[%s327 + $0xe] sm:$0xff]
      %342 = vrot.lane.b32.xlu0 %v336, 64
      %v343 = vpop.permute.xlu0 %342
      %344 = vrot.lane.b32.xlu0 %v337, 64
      %v345 = vpop.permute.xlu0 %344
      %vm348 = vcmask 523264
      %v349 = vsel %vm348, %v334, %v343
      %v350 = vsel %vm348, %v335, %v345
      %v351 = vpack.c.bf16 %v350, %v349
      %v352 = vpack.c.bf16 %v339, %v338
      %v353 = vld [vmem:[%s1] sm:$0xf]
      %v354 = vld [vmem:[%s1 + $0x4] sm:$0xf]
      %v355 = vld [vmem:[%s1 + $0x8] sm:$0xf]
      %v356 = vld [vmem:[%s1 + $0xc] sm:$0xf]
      %v357 = vld [vmem:[%s1 + $0x10] sm:$0xf]
      %v358 = vld [vmem:[%s1 + $0x14] sm:$0xf]
      %v359 = vld [vmem:[%s1 + $0x18] sm:$0xf]
      %v360 = vld [vmem:[%s1 + $0x1c] sm:$0xf]
      %v361 = vld [vmem:[%s1 + $0x20] sm:$0xf]
      %v362 = vld [vmem:[%s1 + $0x24] sm:$0xf]
      %v363 = vld [vmem:[%s1 + $0x28] sm:$0xf]
      %v364 = vld [vmem:[%s1 + $0x2c] sm:$0xf]
      %v365 = vld [vmem:[%s1 + $0x30] sm:$0xf]
      %v366 = vld [vmem:[%s1 + $0x34] sm:$0xf]
      %v367 = vld [vmem:[%s1 + $0x38] sm:$0xf]
      %v368 = vld [vmem:[%s1 + $0x3c] sm:$0xf]
      %v369 = vld [vmem:[%s1 + $0x40] sm:$0xf]
      %v370 = vld [vmem:[%s1 + $0x44] sm:$0xf]
      %v371 = vld [vmem:[%s1 + $0x48] sm:$0xf]
      %v372 = vld [vmem:[%s1 + $0x4c] sm:$0xf]
      %v373 = vld [vmem:[%s1 + $0x50] sm:$0xf]
      %v374 = vld [vmem:[%s1 + $0x54] sm:$0xf]
      %v375 = vld [vmem:[%s1 + $0x58] sm:$0xf]
      %v376 = vld [vmem:[%s1 + $0x5c] sm:$0xf]
      %v377 = vld [vmem:[%s2] sm:$0x1]
      %v379 = vlaneseq
      %v380 = vshrl.u32 %v379, 7
      %v381 = vsub.s32 0, %v380
      %v382 = vrot.slane %v377, %v381
      %v408 = vunpack.c.l.b16 %v353
      %v409 = vunpack.c.l.b16 %v354
      %v410 = vunpack.c.l.b16 %v355
      %v411 = vunpack.c.l.b16 %v356
      %v412 = vunpack.c.l.b16 %v357
      %v413 = vunpack.c.l.b16 %v358
      %v414 = vunpack.c.l.b16 %v359
      %v415 = vunpack.c.l.b16 %v360
      %v416 = vunpack.c.l.b16 %v361
      %v417 = vunpack.c.l.b16 %v362
      %v418 = vunpack.c.l.b16 %v363
      %v419 = vunpack.c.l.b16 %v364
      %v420 = vunpack.c.l.b16 %v365
      %v421 = vunpack.c.l.b16 %v366
      %v422 = vunpack.c.l.b16 %v367
      %v423 = vunpack.c.l.b16 %v368
      %v424 = vunpack.c.l.b16 %v369
      %v425 = vunpack.c.l.b16 %v370
      %v426 = vunpack.c.l.b16 %v371
      %v427 = vunpack.c.l.b16 %v372
      %v428 = vunpack.c.l.b16 %v373
      %v429 = vunpack.c.l.b16 %v374
      %v430 = vunpack.c.l.b16 %v375
      %v431 = vunpack.c.l.b16 %v376
      %v432 = vpack.c.b16 %v409, %v408
      %v433 = vpack.c.b16 %v411, %v410
      %v434 = vpack.c.b16 %v413, %v412
      %v435 = vpack.c.b16 %v415, %v414
      %v436 = vpack.c.b16 %v417, %v416
      %v437 = vpack.c.b16 %v419, %v418
      %v438 = vpack.c.b16 %v421, %v420
      %v439 = vpack.c.b16 %v423, %v422
      %v440 = vpack.c.b16 %v425, %v424
      %v441 = vpack.c.b16 %v427, %v426
      %v442 = vpack.c.b16 %v429, %v428
      %v443 = vpack.c.b16 %v431, %v430
      %v457 = vsel %vm348, %v352, 0
      %459 = vmatprep.subr.bf16.mxu0 0
      %460 = vmatpush1.bf16.msra.mxu0 %v432
      %461 = vmatprep.subr.bf16.mxu0 0
      %462 = vmatpush1.bf16.msra.mxu0 %v433
      %463 = vmatprep.subr.bf16.mxu0 0
      %464 = vmatpush1.bf16.msra.mxu0 %v434
      %465 = vmatprep.subr.bf16.mxu0 0
      %466 = vmatpush1.bf16.msra.mxu0 %v435
      %467 = vmatprep.subr.bf16.mxu0 0
      %468 = vmatpush1.bf16.msra.mxu0 %v436
      %469 = vmatprep.subr.bf16.mxu0 0
      %470 = vmatpush1.bf16.msra.mxu0 %v437
      %471 = vmatprep.subr.bf16.mxu0 0
      %472 = vmatpush1.bf16.msra.mxu0 %v438
      %473 = vmatprep.subr.bf16.mxu0 0
      %474 = vmatpush1.bf16.msra.mxu0 %v439
      %475 = vmatprep.subr.bf16.mxu0 0
      %476 = vmatpush1.bf16.msra.mxu0 %v440
      %477 = vmatprep.subr.bf16.mxu0 0
      %478 = vmatpush1.bf16.msra.mxu0 %v441
      %479 = vmatprep.subr.bf16.mxu0 0
      %480 = vmatpush1.bf16.msra.mxu0 %v442
      %481 = vmatprep.subr.bf16.mxu0 0
      %482 = vmatpush1.bf16.msra.mxu0 %v443
      %483 = vmatprep.subr.bf16.mxu0 0
      %484 = vmatpush1.bf16.msra.mxu0 0
      %485 = vmatprep.subr.bf16.mxu0 0
      %486 = vmatpush1.bf16.msra.mxu0 0
      %487 = vmatprep.subr.bf16.mxu0 0
      %488 = vmatpush1.bf16.msra.mxu0 0
      %489 = vmatprep.subr.bf16.mxu0 0
      %490 = vmatpush1.bf16.msra.mxu0 0
      %491 = vmatprep.mubr.bf16.mxu0 %v457
      %492 = vmatmul.mubr.bf16.gmra.mrb[0].mxu0 %v351
      %v493 = vpop.f32.mrb[0].mxu0
      %v494 = vadd.f32 %v382, %v493
      %v495 = vpop.f32.mrb[0].mxu0
      %v496 = vpop.f32.mrb[0].mxu0
      %v497 = vadd.f32 %v382, %v496
      %v498 = vpop.f32.mrb[0].mxu0
      %499 = vdwg.mxu0
      %v500 = vmax.f32 %v494, 0.0
      %v501 = vmax.f32 %v497, 0.0
      %v502 = vld [vmem:[%s3] sm:$0x1]
      %v504 = vlaneseq
      %v505 = vshrl.u32 %v504, 7
      %v506 = vsub.s32 0, %v505
      %v507 = vrot.slane %v502, %v506
      %v509 = vmul.f32 %v500, %v507
      %v510 = vmul.f32 %v501, %v507
      %v511 = vld [vmem:[%s4] sm:$0x1]
      %v513 = vlaneseq
      %v514 = vshrl.u32 %v513, 7
      %v515 = vsub.s32 0, %v514
      %v516 = vrot.slane %v511, %v515
      %v518 = vadd.f32 %v509, %v516
      %v519 = vadd.f32 %v510, %v516
      %v520 = vsel %vm348, %v518, 0.0
      %v521 = vsel %vm348, %v519, 0.0
      %v522 = vadd.f32 %v520, %v521
      %v523 = vrot.slane %v522, 4
      %v524 = vadd.f32 %v522, %v523
      %v525 = vrot.slane %v524, 2
      %v526 = vadd.f32 %v524, %v525
      %v527 = vrot.slane %v526, 1
      %v528 = vadd.f32 %v526, %v527
      %v529 = vmul.f32 %v528, 0.0625
      %v530 = vpack.c.bf16 %v529, %v529
      %v531 = vld [vmem:[%s5] sm:$0xf]
      %v532 = vld [vmem:[%s5 + $0x4] sm:$0xf]
      %v533 = vld [vmem:[%s5 + $0x8] sm:$0xf]
      %v534 = vld [vmem:[%s5 + $0xc] sm:$0xf]
      %v535 = vld [vmem:[%s5 + $0x10] sm:$0xf]
      %v536 = vld [vmem:[%s5 + $0x14] sm:$0xf]
      %v537 = vld [vmem:[%s5 + $0x18] sm:$0xf]
      %v538 = vld [vmem:[%s5 + $0x1c] sm:$0xf]
      %v539 = vld [vmem:[%s6] sm:$0x1]
      %v548 = vunpack.c.l.b16 %v531
      %v549 = vunpack.c.l.b16 %v532
      %v550 = vunpack.c.l.b16 %v533
      %v551 = vunpack.c.l.b16 %v534
      %v552 = vunpack.c.l.b16 %v535
      %v553 = vunpack.c.l.b16 %v536
      %v554 = vunpack.c.l.b16 %v537
      %v555 = vunpack.c.l.b16 %v538
      %v556 = vpack.c.b16 %v549, %v548
      %v557 = vpack.c.b16 %v551, %v550
      %v558 = vpack.c.b16 %v553, %v552
      %v559 = vpack.c.b16 %v555, %v554
      %v565 = vsel %vm348, %v530, 0
      %567 = vmatprep.subr.bf16.mxu0 0
      %568 = vmatpush1.bf16.msra.mxu0 %v556
      %569 = vmatprep.subr.bf16.mxu0 0
      %570 = vmatpush1.bf16.msra.mxu0 %v557
      %571 = vmatprep.subr.bf16.mxu0 0
      %572 = vmatpush1.bf16.msra.mxu0 %v558
      %573 = vmatprep.subr.bf16.mxu0 0
      %574 = vmatpush1.bf16.msra.mxu0 %v559
      %575 = vmatprep.subr.bf16.mxu0 0
      %576 = vmatpush1.bf16.msra.mxu0 0
      %577 = vmatprep.subr.bf16.mxu0 0
      %578 = vmatpush1.bf16.msra.mxu0 0
      %579 = vmatprep.subr.bf16.mxu0 0
      %580 = vmatpush1.bf16.msra.mxu0 0
      %581 = vmatprep.subr.bf16.mxu0 0
      %582 = vmatpush1.bf16.msra.mxu0 0
      %583 = vmatprep.subr.bf16.mxu0 0
      %584 = vmatpush1.bf16.msra.mxu0 0
      %585 = vmatprep.subr.bf16.mxu0 0
      %586 = vmatpush1.bf16.msra.mxu0 0
      %587 = vmatprep.subr.bf16.mxu0 0
      %588 = vmatpush1.bf16.msra.mxu0 0
      %589 = vmatprep.subr.bf16.mxu0 0
      %590 = vmatpush1.bf16.msra.mxu0 0
      %591 = vmatprep.subr.bf16.mxu0 0
      %592 = vmatpush1.bf16.msra.mxu0 0
      %593 = vmatprep.subr.bf16.mxu0 0
      %594 = vmatpush1.bf16.msra.mxu0 0
      %595 = vmatprep.subr.bf16.mxu0 0
      %596 = vmatpush1.bf16.msra.mxu0 0
      %597 = vmatprep.subr.bf16.mxu0 0
      %598 = vmatpush1.bf16.msra.mxu0 0
      %599 = vmatprep.mubr.bf16.mxu0 0
      %600 = vmatmul.mubr.bf16.gmra.mrb[0].mxu0 %v565
      %v601 = vpop.f32.mrb[0].mxu0
      %v602 = vadd.f32 %v539, %v601
      %v603 = vpop.f32.mrb[0].mxu0
      %v604 = vpop.f32.mrb[0].mxu0
      %v605 = vpop.f32.mrb[0].mxu0
      %606 = vdwg.mxu0
      %v607 = vmax.f32 %v602, 0.0
      %v608 = vpack.c.bf16 %v607, %v607
      %v609 = vld [vmem:[%s7] sm:$0xf]
      %v610 = vld [vmem:[%s8] sm:$0x1]
      %vm611 = vcmask 64512
      %v613 = vsel %vm611, %v608, 0
      %vm615 = vcmask 1043456
      %v617 = vsel %vm615, %v609, 0
      %619 = vmatprep.subr.bf16.mxu0 0
      %620 = vmatpush1.bf16.msra.mxu0 %v617
      %621 = vmatprep.subr.bf16.mxu0 0
      %622 = vmatpush1.bf16.msra.mxu0 0
      %623 = vmatprep.subr.bf16.mxu0 0
      %624 = vmatpush1.bf16.msra.mxu0 0
      %625 = vmatprep.subr.bf16.mxu0 0
      %626 = vmatpush1.bf16.msra.mxu0 0
      %627 = vmatprep.subr.bf16.mxu0 0
      %628 = vmatpush1.bf16.msra.mxu0 0
      %629 = vmatprep.subr.bf16.mxu0 0
      %630 = vmatpush1.bf16.msra.mxu0 0
      %631 = vmatprep.subr.bf16.mxu0 0
      %632 = vmatpush1.bf16.msra.mxu0 0
      %633 = vmatprep.subr.bf16.mxu0 0
      %634 = vmatpush1.bf16.msra.mxu0 0
      %635 = vmatprep.subr.bf16.mxu0 0
      %636 = vmatpush1.bf16.msra.mxu0 0
      %637 = vmatprep.subr.bf16.mxu0 0
      %638 = vmatpush1.bf16.msra.mxu0 0
      %639 = vmatprep.subr.bf16.mxu0 0
      %640 = vmatpush1.bf16.msra.mxu0 0
      %641 = vmatprep.subr.bf16.mxu0 0
      %642 = vmatpush1.bf16.msra.mxu0 0
      %643 = vmatprep.subr.bf16.mxu0 0
      %644 = vmatpush1.bf16.msra.mxu0 0
      %645 = vmatprep.subr.bf16.mxu0 0
      %646 = vmatpush1.bf16.msra.mxu0 0
      %647 = vmatprep.subr.bf16.mxu0 0
      %648 = vmatpush1.bf16.msra.mxu0 0
      %649 = vmatprep.subr.bf16.mxu0 0
      %650 = vmatpush1.bf16.msra.mxu0 0
      %651 = vmatprep.mubr.bf16.mxu0 0
      %652 = vmatmul.mubr.bf16.gmra.mrb[0].mxu0 %v613
      %v653 = vpop.f32.mrb[0].mxu0
      %v654 = vadd.f32 %v610, %v653
      %v655 = vpop.f32.mrb[0].mxu0
      %v656 = vpop.f32.mrb[0].mxu0
      %v657 = vpop.f32.mrb[0].mxu0
      %658 = vdwg.mxu0
      %v659 = vsub.f32 0.0, %v654
      %v660 = vmul.f32 %v659, 1.442695
      %v661 = vpow.pop %v660
      %v662 = vadd.f32 %v661, 1.0
      %v663 = vrcp.pop %v662
      %v664 = vmul.f32 1.0, %v663
      %v665 = vlaneseq
      %v666 = vshrl.u32 %v665, 7
      %v667 = vsub.s32 0, %v666
      %v668 = vrot.slane %v664, %v667
      %v669 = vmul.f32 %v518, %v668
      %v670 = vmul.f32 %v519, %v668
      %671 = vst.msk [vmem:[%s332] sm:$0xff] %vm348, %v669
      %672 = vst.msk [vmem:[%s332 + $0x8] sm:$0xff] %vm348, %v670
      %p673 = scmp.lt.s32.totalorder %s20, 1
      %s674 = scalar_select %p673, %s20, 1
      %s675 = smul.addr %s674, 2
      %s676 = smul.addr %s675, 8
      %s677 = scalar_lea.vmem %s9, %s676
      // Predicated region
      $region57: #{tdnn_gru_se_forward.8} parent=55 // pred_check
        %p678 = pneg %p232
      $region58: #{tdnn_gru_se_forward.8} parent=55 // pred_check_branch
        %680 = sbr.rel (%p678) target = $region60
      $region59: #{tdnn_gru_se_forward.8} parent=55 // pred_region
        _
      $region60: #{tdnn_gru_se_forward.8} parent=55 // pred_fallthru
        _
    $region56: #{tdnn_gru_se_forward.8} parent=5 // pred_fallthru
      _
    %p681 = scmp.le.s32.totalorder 2, %s15
    // Predicated region
    $region61: #{tdnn_gru_se_forward.8} parent=5 // pred_check
      %p682 = pneg %p681
    $region62: #{tdnn_gru_se_forward.8} parent=5 // pred_check_branch
      %684 = sbr.rel (%p682) target = $region64
    $region63: #{tdnn_gru_se_forward.8} parent=5 // pred_region
      %s685 = ssub.s32 %s15, 2
      // Predicated region
      $region65: #{tdnn_gru_se_forward.8} parent=63 // pred_check
        %p686 = pneg %p238
      $region66: #{tdnn_gru_se_forward.8} parent=63 // pred_check_branch
        %688 = sbr.rel (%p686) target = $region68
      $region67: #{tdnn_gru_se_forward.8} parent=63 // pred_region
        %p689 = scmp.lt.s32.totalorder %s21, 1
        %s690 = scalar_select %p689, %s21, 1
        %s691 = smul.addr %s690, 2
        %s692 = smul.addr %s691, 8
        %s693 = scalar_lea.vmem %s9, %s692
      $region68: #{tdnn_gru_se_forward.8} parent=63 // pred_fallthru
        _
    $region64: #{tdnn_gru_se_forward.8} parent=5 // pred_fallthru
      _
  $region6: #{tdnn_gru_se_forward.8} parent=0 // loop_footer
    %s19 = sadd.s32 1, %s15
  $region7: #{tdnn_gru_se_forward.8} parent=0 // loop_footer_branch
    %14 = sbr.rel target = $region3
  $region8: #{tdnn_gru_se_forward.8} parent=0 // loop_exit
    _

// kernel: tdnn_gru_se_forward.7
$region0: #{tdnn_gru_se_forward.7}
  #allocation0 [shape = 'u32[]', space=smem, size = 0x4, offset = 0x4, fixed_abs, tag = 'smem constant byte address 0x4 - core index']
  #allocation1 [shape = 'u32[144,128]{1,0:T(1,128)}', space=vmem, size = 0x12000, scoped, tag = 'internal scratch']
  %s0 = inlined_call_operand.vmem [shape: f32[2,26,64], index: 0, kind: input, shape index: {}]
  %s1 = inlined_call_operand.vmem [shape: bf16[192,64], index: 1, kind: input, shape index: {}]
  %s2 = inlined_call_operand.vmem [shape: f32[1,64], index: 2, kind: input, shape index: {}]
  %s3 = inlined_call_operand.vmem [shape: f32[1,64], index: 3, kind: input, shape index: {}]
  %s4 = inlined_call_operand.vmem [shape: f32[1,64], index: 4, kind: input, shape index: {}]
  %s5 = inlined_call_operand.vmem [shape: bf16[64,8], index: 5, kind: input, shape index: {}]
  %s6 = inlined_call_operand.vmem [shape: f32[1,8], index: 6, kind: input, shape index: {}]
  %s7 = inlined_call_operand.vmem [shape: bf16[8,64], index: 7, kind: input, shape index: {}]
  %s8 = inlined_call_operand.vmem [shape: f32[1,64], index: 8, kind: input, shape index: {}]
  %s9 = inlined_call_operand.vmem [shape: f32[2,22,64], index: 9, kind: output, shape index: {}]
  %s10 = sld [smem:[#allocation0]]
  $region69: #{tdnn_gru_se_forward.7} parent=0
    _
  %s12 = ssub.s32 1, %s10
  %s13 = scalar_select 0, %s12, %s10
  loop: start=0, step=1, limit=4
  $region2: #{tdnn_gru_se_forward.7} parent=0 // loop_pre_header
    _
  $region3: #{tdnn_gru_se_forward.7} parent=0 // loop_header
    %s15 = sphi 0, %s19
    %p16 = scmp.ge.s32.totalorder %s15, 4
    %s25 = sphi 0, %s27
    %s28 = sphi 0, %s25
    %s29 = sphi 0, %s28
    %s45 = sphi 0, %s29
    %s49 = sphi 0, %s49
    %s51 = sphi 0, %s49
    %s52 = sphi 0, %s51
    %s66 = sphi 0, %s52
    %s70 = sphi 0, %s70
    %s72 = sphi 0, %s70
    %s73 = sphi 0, %s72
    %s87 = sphi 0, %s73
    %s91 = sphi 0, %s91
    %s93 = sphi 0, %s91
    %s94 = sphi 0, %s93
    %s108 = sphi 0, %s94
    %s112 = sphi 0, %s112
    %s114 = sphi 0, %s112
    %s115 = sphi 0, %s114
    %s129 = sphi 0, %s115
    %s133 = sphi 0, %s133
    %s135 = sphi 0, %s133
    %s136 = sphi 0, %s135
    %s150 = sphi 0, %s136
    %s154 = sphi 0, %s154
    %s156 = sphi 0, %s154
    %s157 = sphi 0, %s156
    %s171 = sphi 0, %s157
    %s175 = sphi 0, %s175
    %s177 = sphi 0, %s175
    %s178 = sphi 0, %s177
    %s192 = sphi 0, %s178
    %s196 = sphi 0, %s196
    %s198 = sphi 0, %s196
    %s199 = sphi 0, %s198
    %s213 = sphi 0, %s199
    %s219 = sphi 0, %s221
    %s222 = sphi 0, %s219
    %s223 = sphi 0, %s222
    %s239 = sphi 0, %s223
  $region4: #{tdnn_gru_se_forward.7} parent=0 // loop_header_branch
    %18 = sbr.rel (%p16) target = $region8
  $region5: #{tdnn_gru_se_forward.7} parent=0 // loop_body
    %s20 = ssub.s32 %s15, 1
    %s21 = ssub.s32 %s15, 2
    %s22 = sadd.s32 %s15, 1
    %s23 = ssub.s32 %s15, %s22
    %p24 = scmp.eq.s32.totalorder %s23, 0
    %s26 = sadd.s32 %s25, 1
    %s27 = scalar_select %p24, %s25, %s26
    %p30 = pneg %p24
    %p31 = scmp.eq.s32.totalorder %s15, 1
    %p32 = por %p30, %p31
    %p33 = scmp.ne.s32.totalorder %s25, %s28
    %p34 = scmp.eq.s32.totalorder %s15, 0
    %p35 = por %p33, %p34
    %p36 = scmp.ne.s32.totalorder %s25, %s28
    %p37 = scmp.eq.s32.totalorder %s20, 1
    %p38 = por %p36, %p37
    %p39 = scmp.ne.s32.totalorder %s28, %s29
    %p40 = scmp.eq.s32.totalorder %s20, 0
    %p41 = por %p39, %p40
    %p42 = scmp.ne.s32.totalorder %s28, %s29
    %p43 = scmp.eq.s32.totalorder %s21, 1
    %p44 = por %p42, %p43
    %p46 = scmp.ne.s32.totalorder %s29, %s45
    %p47 = scmp.eq.s32.totalorder %s21, 0
    %p48 = por %p46, %p47
    %s50 = sadd.s32 %s49, 1
    %p53 = scmp.eq.s32.totalorder %s15, 1
    %p54 = scmp.ne.s32.totalorder %s49, %s51
    %p55 = scmp.eq.s32.totalorder %s15, 0
    %p56 = por %p54, %p55
    %p57 = scmp.ne.s32.totalorder %s49, %s51
    %p58 = scmp.eq.s32.totalorder %s20, 1
    %p59 = por %p57, %p58
    %p60 = scmp.ne.s32.totalorder %s51, %s52
    %p61 = scmp.eq.s32.totalorder %s20, 0
    %p62 = por %p60, %p61
    %p63 = scmp.ne.s32.totalorder %s51, %s52
    %p64 = scmp.eq.s32.totalorder %s21, 1
    %p65 = por %p63, %p64
    %p67 = scmp.ne.s32.totalorder %s52, %s66
    %p68 = scmp.eq.s32.totalorder %s21, 0
    %p69 = por %p67, %p68
    %s71 = sadd.s32 %s70, 1
    %p74 = scmp.eq.s32.totalorder %s15, 1
    %p75 = scmp.ne.s32.totalorder %s70, %s72
    %p76 = scmp.eq.s32.totalorder %s15, 0
    %p77 = por %p75, %p76
    %p78 = scmp.ne.s32.totalorder %s70, %s72
    %p79 = scmp.eq.s32.totalorder %s20, 1
    %p80 = por %p78, %p79
    %p81 = scmp.ne.s32.totalorder %s72, %s73
    %p82 = scmp.eq.s32.totalorder %s20, 0
    %p83 = por %p81, %p82
    %p84 = scmp.ne.s32.totalorder %s72, %s73
    %p85 = scmp.eq.s32.totalorder %s21, 1
    %p86 = por %p84, %p85
    %p88 = scmp.ne.s32.totalorder %s73, %s87
    %p89 = scmp.eq.s32.totalorder %s21, 0
    %p90 = por %p88, %p89
    %s92 = sadd.s32 %s91, 1
    %p95 = scmp.eq.s32.totalorder %s15, 1
    %p96 = scmp.ne.s32.totalorder %s91, %s93
    %p97 = scmp.eq.s32.totalorder %s15, 0
    %p98 = por %p96, %p97
    %p99 = scmp.ne.s32.totalorder %s91, %s93
    %p100 = scmp.eq.s32.totalorder %s20, 1
    %p101 = por %p99, %p100
    %p102 = scmp.ne.s32.totalorder %s93, %s94
    %p103 = scmp.eq.s32.totalorder %s20, 0
    %p104 = por %p102, %p103
    %p105 = scmp.ne.s32.totalorder %s93, %s94
    %p106 = scmp.eq.s32.totalorder %s21, 1
    %p107 = por %p105, %p106
    %p109 = scmp.ne.s32.totalorder %s94, %s108
    %p110 = scmp.eq.s32.totalorder %s21, 0
    %p111 = por %p109, %p110
    %s113 = sadd.s32 %s112, 1
    %p116 = scmp.eq.s32.totalorder %s15, 1
    %p117 = scmp.ne.s32.totalorder %s112, %s114
    %p118 = scmp.eq.s32.totalorder %s15, 0
    %p119 = por %p117, %p118
    %p120 = scmp.ne.s32.totalorder %s112, %s114
    %p121 = scmp.eq.s32.totalorder %s20, 1
    %p122 = por %p120, %p121
    %p123 = scmp.ne.s32.totalorder %s114, %s115
    %p124 = scmp.eq.s32.totalorder %s20, 0
    %p125 = por %p123, %p124
    %p126 = scmp.ne.s32.totalorder %s114, %s115
    %p127 = scmp.eq.s32.totalorder %s21, 1
    %p128 = por %p126, %p127
    %p130 = scmp.ne.s32.totalorder %s115, %s129
    %p131 = scmp.eq.s32.totalorder %s21, 0
    %p132 = por %p130, %p131
    %s134 = sadd.s32 %s133, 1
    %p137 = scmp.eq.s32.totalorder %s15, 1
    %p138 = scmp.ne.s32.totalorder %s133, %s135
    %p139 = scmp.eq.s32.totalorder %s15, 0
    %p140 = por %p138, %p139
    %p141 = scmp.ne.s32.totalorder %s133, %s135
    %p142 = scmp.eq.s32.totalorder %s20, 1
    %p143 = por %p141, %p142
    %p144 = scmp.ne.s32.totalorder %s135, %s136
    %p145 = scmp.eq.s32.totalorder %s20, 0
    %p146 = por %p144, %p145
    %p147 = scmp.ne.s32.totalorder %s135, %s136
    %p148 = scmp.eq.s32.totalorder %s21, 1
    %p149 = por %p147, %p148
    %p151 = scmp.ne.s32.totalorder %s136, %s150
    %p152 = scmp.eq.s32.totalorder %s21, 0
    %p153 = por %p151, %p152
    %s155 = sadd.s32 %s154, 1
    %p158 = scmp.eq.s32.totalorder %s15, 1
    %p159 = scmp.ne.s32.totalorder %s154, %s156
    %p160 = scmp.eq.s32.totalorder %s15, 0
    %p161 = por %p159, %p160
    %p162 = scmp.ne.s32.totalorder %s154, %s156
    %p163 = scmp.eq.s32.totalorder %s20, 1
    %p164 = por %p162, %p163
    %p165 = scmp.ne.s32.totalorder %s156, %s157
    %p166 = scmp.eq.s32.totalorder %s20, 0
    %p167 = por %p165, %p166
    %p168 = scmp.ne.s32.totalorder %s156, %s157
    %p169 = scmp.eq.s32.totalorder %s21, 1
    %p170 = por %p168, %p169
    %p172 = scmp.ne.s32.totalorder %s157, %s171
    %p173 = scmp.eq.s32.totalorder %s21, 0
    %p174 = por %p172, %p173
    %s176 = sadd.s32 %s175, 1
    %p179 = scmp.eq.s32.totalorder %s15, 1
    %p180 = scmp.ne.s32.totalorder %s175, %s177
    %p181 = scmp.eq.s32.totalorder %s15, 0
    %p182 = por %p180, %p181
    %p183 = scmp.ne.s32.totalorder %s175, %s177
    %p184 = scmp.eq.s32.totalorder %s20, 1
    %p185 = por %p183, %p184
    %p186 = scmp.ne.s32.totalorder %s177, %s178
    %p187 = scmp.eq.s32.totalorder %s20, 0
    %p188 = por %p186, %p187
    %p189 = scmp.ne.s32.totalorder %s177, %s178
    %p190 = scmp.eq.s32.totalorder %s21, 1
    %p191 = por %p189, %p190
    %p193 = scmp.ne.s32.totalorder %s178, %s192
    %p194 = scmp.eq.s32.totalorder %s21, 0
    %p195 = por %p193, %p194
    %s197 = sadd.s32 %s196, 1
    %p200 = scmp.eq.s32.totalorder %s15, 1
    %p201 = scmp.ne.s32.totalorder %s196, %s198
    %p202 = scmp.eq.s32.totalorder %s15, 0
    %p203 = por %p201, %p202
    %p204 = scmp.ne.s32.totalorder %s196, %s198
    %p205 = scmp.eq.s32.totalorder %s20, 1
    %p206 = por %p204, %p205
    %p207 = scmp.ne.s32.totalorder %s198, %s199
    %p208 = scmp.eq.s32.totalorder %s20, 0
    %p209 = por %p207, %p208
    %p210 = scmp.ne.s32.totalorder %s198, %s199
    %p211 = scmp.eq.s32.totalorder %s21, 1
    %p212 = por %p210, %p211
    %p214 = scmp.ne.s32.totalorder %s199, %s213
    %p215 = scmp.eq.s32.totalorder %s21, 0
    %p216 = por %p214, %p215
    %s217 = ssub.s32 %s15, %s22
    %p218 = scmp.eq.s32.totalorder %s217, 0
    %s220 = sadd.s32 %s219, 1
    %s221 = scalar_select %p218, %s219, %s220
    %p224 = pneg %p218
    %p225 = scmp.eq.s32.totalorder %s15, 1
    %p226 = por %p224, %p225
    %p227 = scmp.ne.s32.totalorder %s219, %s222
    %p228 = scmp.eq.s32.totalorder %s15, 0
    %p229 = por %p227, %p228
    %p230 = scmp.ne.s32.totalorder %s219, %s222
    %p231 = scmp.eq.s32.totalorder %s20, 1
    %p232 = por %p230, %p231
    %p233 = scmp.ne.s32.totalorder %s222, %s223
    %p234 = scmp.eq.s32.totalorder %s20, 0
    %p235 = por %p233, %p234
    %p236 = scmp.ne.s32.totalorder %s222, %s223
    %p237 = scmp.eq.s32.totalorder %s21, 1
    %p238 = por %p236, %p237
    %p240 = scmp.ne.s32.totalorder %s223, %s239
    %p241 = scmp.eq.s32.totalorder %s21, 0
    %p242 = por %p240, %p241
    %p243 = scmp.le.s32.totalorder 1, %s15
    %p244 = scmp.lt.s32.totalorder %s15, 3
    %p245 = pnand %p243, %p244
    %p246 = pneg %p245
    // Predicated region
    $region9: #{tdnn_gru_se_forward.7} parent=5 // pred_check
      _
    $region10: #{tdnn_gru_se_forward.7} parent=5 // pred_check_branch
      %248 = sbr.rel (%p245) target = $region12
    $region11: #{tdnn_gru_se_forward.7} parent=5 // pred_region
      %s249 = ssub.s32 %s15, 1
      // Predicated region
      $region13: #{tdnn_gru_se_forward.7} parent=11 // pred_check
        %p250 = pneg %p62
      $region14: #{tdnn_gru_se_forward.7} parent=11 // pred_check_branch
        %252 = sbr.rel (%p250) target = $region16
      $region15: #{tdnn_gru_se_forward.7} parent=11 // pred_region
        _
      $region16: #{tdnn_gru_se_forward.7} parent=11 // pred_fallthru
        _
      // Predicated region
      $region17: #{tdnn_gru_se_forward.7} parent=11 // pred_check
        %p253 = pneg %p83
      $region18: #{tdnn_gru_se_forward.7} parent=11 // pred_check_branch
        %255 = sbr.rel (%p253) target = $region20
      $region19: #{tdnn_gru_se_forward.7} parent=11 // pred_region
        _
      $region20: #{tdnn_gru_se_forward.7} parent=11 // pred_fallthru
        _
      // Predicated region
      $region21: #{tdnn_gru_se_forward.7} parent=11 // pred_check
        %p256 = pneg %p104
      $region22: #{tdnn_gru_se_forward.7} parent=11 // pred_check_branch
        %258 = sbr.rel (%p256) target = $region24
      $region23: #{tdnn_gru_se_forward.7} parent=11 // pred_region
        _
      $region24: #{tdnn_gru_se_forward.7} parent=11 // pred_fallthru
        _
      // Predicated region
      $region25: #{tdnn_gru_se_forward.7} parent=11 // pred_check
        %p259 = pneg %p125
      $region26: #{tdnn_gru_se_forward.7} parent=11 // pred_check_branch
        %261 = sbr.rel (%p259) target = $region28
      $region27: #{tdnn_gru_se_forward.7} parent=11 // pred_region
        _
      $region28: #{tdnn_gru_se_forward.7} parent=11 // pred_fallthru
        _
      // Predicated region
      $region29: #{tdnn_gru_se_forward.7} parent=11 // pred_check
        %p262 = pneg %p146
      $region30: #{tdnn_gru_se_forward.7} parent=11 // pred_check_branch
        %264 = sbr.rel (%p262) target = $region32
      $region31: #{tdnn_gru_se_forward.7} parent=11 // pred_region
        _
      $region32: #{tdnn_gru_se_forward.7} parent=11 // pred_fallthru
        _
      // Predicated region
      $region33: #{tdnn_gru_se_forward.7} parent=11 // pred_check
        %p265 = pneg %p167
      $region34: #{tdnn_gru_se_forward.7} parent=11 // pred_check_branch
        %267 = sbr.rel (%p265) target = $region36
      $region35: #{tdnn_gru_se_forward.7} parent=11 // pred_region
        _
      $region36: #{tdnn_gru_se_forward.7} parent=11 // pred_fallthru
        _
      // Predicated region
      $region37: #{tdnn_gru_se_forward.7} parent=11 // pred_check
        %p268 = pneg %p188
      $region38: #{tdnn_gru_se_forward.7} parent=11 // pred_check_branch
        %270 = sbr.rel (%p268) target = $region40
      $region39: #{tdnn_gru_se_forward.7} parent=11 // pred_region
        _
      $region40: #{tdnn_gru_se_forward.7} parent=11 // pred_fallthru
        _
      // Predicated region
      $region41: #{tdnn_gru_se_forward.7} parent=11 // pred_check
        %p271 = pneg %p209
      $region42: #{tdnn_gru_se_forward.7} parent=11 // pred_check_branch
        %273 = sbr.rel (%p271) target = $region44
      $region43: #{tdnn_gru_se_forward.7} parent=11 // pred_region
        _
      $region44: #{tdnn_gru_se_forward.7} parent=11 // pred_fallthru
        _
    $region12: #{tdnn_gru_se_forward.7} parent=5 // pred_fallthru
      _
    %p274 = scmp.lt.s32.totalorder %s15, 2
    // Predicated region
    $region45: #{tdnn_gru_se_forward.7} parent=5 // pred_check
      %p275 = pneg %p274
    $region46: #{tdnn_gru_se_forward.7} parent=5 // pred_check_branch
      %277 = sbr.rel (%p275) target = $region48
    $region47: #{tdnn_gru_se_forward.7} parent=5 // pred_region
      // Predicated region
      $region49: #{tdnn_gru_se_forward.7} parent=47 // pred_check
        %p278 = pneg %p35
      $region50: #{tdnn_gru_se_forward.7} parent=47 // pred_check_branch
        %280 = sbr.rel (%p278) target = $region52
      $region51: #{tdnn_gru_se_forward.7} parent=47 // pred_region
        %p281 = scmp.lt.s32.totalorder %s15, 1
        %s282 = scalar_select %p281, %s15, 1
        %s283 = smul.addr %s282, 4
        %s284 = smul.addr %s283, 8
        %s285 = scalar_lea.vmem %s0, %s284
      $region52: #{tdnn_gru_se_forward.7} parent=47 // pred_fallthru
        _
    $region48: #{tdnn_gru_se_forward.7} parent=5 // pred_fallthru
      _
    %p286 = scmp.le.s32.totalorder 1, %s15
    %p287 = scmp.lt.s32.totalorder %s15, 3
    %p288 = pnand %p286, %p287
    %p289 = pneg %p288
    // Predicated region
    $region53: #{tdnn_gru_se_forward.7} parent=5 // pred_check
      _
    $region54: #{tdnn_gru_se_forward.7} parent=5 // pred_check_branch
      %291 = sbr.rel (%p288) target = $region56
    $region55: #{tdnn_gru_se_forward.7} parent=5 // pred_region
      %s292 = ssub.s32 %s15, 1
      %p293 = scmp.lt.s32.totalorder %s20, 1
      %s294 = scalar_select %p293, %s20, 1
      %s295 = smul.addr %s294, 4
      %s296 = smul.addr %s295, 8
      %s297 = scalar_lea.vmem %s0, %s296
      %p298 = pneg %p41
      %p299 = pneg %p38
      %p300 = pneg %p62
      %p301 = pneg %p59
      %p302 = pneg %p83
      %p303 = pneg %p80
      %p304 = pneg %p104
      %p305 = pneg %p101
      %p306 = pneg %p125
      %p307 = pneg %p122
      %p308 = pneg %p146
      %p309 = pneg %p143
      %p310 = pneg %p167
      %p311 = pneg %p164
      %p312 = pneg %p188
      %p313 = pneg %p185
      %p314 = pneg %p209
      %p315 = pneg %p206
      %p316 = pneg %p235
      %p317 = pneg %p232
      %p318 = scmp.lt.s32.totalorder %s20, 1
      %s319 = scalar_select %p318, %s20, 1
      %s320 = smul.addr %s319, 3
      %s321 = smul.addr %s320, 8
      %s322 = scalar_lea.vmem %s9, %s321
      %p323 = scmp.lt.s32.totalorder %s20, 1
      %s324 = scalar_select %p323, %s20, 1
      %s325 = smul.addr %s324, 4
      %s326 = smul.addr %s325, 8
      %s327 = scalar_lea.vmem %s0, %s326
      %p328 = scmp.lt.s32.totalorder %s20, 1
      %s329 = scalar_select %p328, %s20, 1
      %s330 = smul.addr %s329, 3
      %s331 = smul.addr %s330, 8
      %s332 = scalar_lea.vmem %s9, %s331
      %v334 = vld [vmem:[%s327] sm:$0xff]
      %v335 = vld [vmem:[%s327 + $0x8] sm:$0xff]
      %v336 = vld [vmem:[%s327 + $0x10] sm:$0x3f]
      %v337 = vld [vmem:[%s327 + $0x2] sm:$0xff]
      %v338 = vld [vmem:[%s327 + $0xa] sm:$0xff]
      %v339 = vld [vmem:[%s327 + $0x12] sm:$0x3f]
      %v340 = vld [vmem:[%s327 + $0x4] sm:$0xff]
      %v341 = vld [vmem:[%s327 + $0xc] sm:$0xff]
      %v342 = vld [vmem:[%s327 + $0x14] sm:$0x3f]
      %346 = vrot.lane.b32.xlu0 %v337, 64
      %v347 = vpop.permute.xlu0 %346
      %348 = vrot.lane.b32.xlu0 %v338, 64
      %v349 = vpop.permute.xlu0 %348
      %350 = vrot.lane.b32.xlu0 %v339, 64
      %v351 = vpop.permute.xlu0 %350
      %vm355 = vcmask 523264
      %v356 = vsel %vm355, %v334, %v347
      %v357 = vsel %vm355, %v335, %v349
      %v358 = vsel %vm355, %v336, %v351
      %v359 = vpack.c.bf16 %v357, %v356
      %v360 = vpack.c.bf16 %v341, %v340
      %v361 = vpack.c.bf16 %v358, %v358
      %v362 = vpack.c.bf16 %v342, %v342
      %v363 = vld [vmem:[%s1] sm:$0xf]
      %v364 = vld [vmem:[%s1 + $0x4] sm:$0xf]
      %v365 = vld [vmem:[%s1 + $0x8] sm:$0xf]
      %v366 = vld [vmem:[%s1 + $0xc] sm:$0xf]
      %v367 = vld [vmem:[%s1 + $0x10] sm:$0xf]
      %v368 = vld [vmem:[%s1 + $0x14] sm:$0xf]
      %v369 = vld [vmem:[%s1 + $0x18] sm:$0xf]
      %v370 = vld [vmem:[%s1 + $0x1c] sm:$0xf]
      %v371 = vld [vmem:[%s1 + $0x20] sm:$0xf]
      %v372 = vld [vmem:[%s1 + $0x24] sm:$0xf]
      %v373 = vld [vmem:[%s1 + $0x28] sm:$0xf]
      %v374 = vld [vmem:[%s1 + $0x2c] sm:$0xf]
      %v375 = vld [vmem:[%s1 + $0x30] sm:$0xf]
      %v376 = vld [vmem:[%s1 + $0x34] sm:$0xf]
      %v377 = vld [vmem:[%s1 + $0x38] sm:$0xf]
      %v378 = vld [vmem:[%s1 + $0x3c] sm:$0xf]
      %v379 = vld [vmem:[%s1 + $0x40] sm:$0xf]
      %v380 = vld [vmem:[%s1 + $0x44] sm:$0xf]
      %v381 = vld [vmem:[%s1 + $0x48] sm:$0xf]
      %v382 = vld [vmem:[%s1 + $0x4c] sm:$0xf]
      %v383 = vld [vmem:[%s1 + $0x50] sm:$0xf]
      %v384 = vld [vmem:[%s1 + $0x54] sm:$0xf]
      %v385 = vld [vmem:[%s1 + $0x58] sm:$0xf]
      %v386 = vld [vmem:[%s1 + $0x5c] sm:$0xf]
      %v387 = vld [vmem:[%s2] sm:$0x1]
      %v389 = vlaneseq
      %v390 = vshrl.u32 %v389, 7
      %v391 = vsub.s32 0, %v390
      %v392 = vrot.slane %v387, %v391
      %v418 = vunpack.c.l.b16 %v363
      %v419 = vunpack.c.l.b16 %v364
      %v420 = vunpack.c.l.b16 %v365
      %v421 = vunpack.c.l.b16 %v366
      %v422 = vunpack.c.l.b16 %v367
      %v423 = vunpack.c.l.b16 %v368
      %v424 = vunpack.c.l.b16 %v369
      %v425 = vunpack.c.l.b16 %v370
      %v426 = vunpack.c.l.b16 %v371
      %v427 = vunpack.c.l.b16 %v372
      %v428 = vunpack.c.l.b16 %v373
      %v429 = vunpack.c.l.b16 %v374
      %v430 = vunpack.c.l.b16 %v375
      %v431 = vunpack.c.l.b16 %v376
      %v432 = vunpack.c.l.b16 %v377
      %v433 = vunpack.c.l.b16 %v378
      %v434 = vunpack.c.l.b16 %v379
      %v435 = vunpack.c.l.b16 %v380
      %v436 = vunpack.c.l.b16 %v381
      %v437 = vunpack.c.l.b16 %v382
      %v438 = vunpack.c.l.b16 %v383
      %v439 = vunpack.c.l.b16 %v384
      %v440 = vunpack.c.l.b16 %v385
      %v441 = vunpack.c.l.b16 %v386
      %v442 = vpack.c.b16 %v419, %v418
      %v443 = vpack.c.b16 %v421, %v420
      %v444 = vpack.c.b16 %v423, %v422
      %v445 = vpack.c.b16 %v425, %v424
      %v446 = vpack.c.b16 %v427, %v426
      %v447 = vpack.c.b16 %v429, %v428
      %v448 = vpack.c.b16 %v431, %v430
      %v449 = vpack.c.b16 %v433, %v432
      %v450 = vpack.c.b16 %v435, %v434
      %v451 = vpack.c.b16 %v437, %v436
      %v452 = vpack.c.b16 %v439, %v438
      %v453 = vpack.c.b16 %v441, %v440
      %v467 = vsel %vm355, %v360, 0
      %v470 = vsel %vm355, %v362, 0
      %472 = vmatprep.subr.bf16.mxu0 0
      %473 = vmatpush1.bf16.msra.mxu0 %v442
      %474 = vmatprep.subr.bf16.mxu0 0
      %475 = vmatpush1.bf16.msra.mxu0 %v443
      %476 = vmatprep.subr.bf16.mxu0 0
      %477 = vmatpush1.bf16.msra.mxu0 %v444
      %478 = vmatprep.subr.bf16.mxu0 0
      %479 = vmatpush1.bf16.msra.mxu0 %v445
      %480 = vmatprep.subr.bf16.mxu0 0
      %481 = vmatpush1.bf16.msra.mxu0 %v446
      %482 = vmatprep.subr.bf16.mxu0 0
      %483 = vmatpush1.bf16.msra.mxu0 %v447
      %484 = vmatprep.subr.bf16.mxu0 0
      %485 = vmatpush1.bf16.msra.mxu0 %v448
      %486 = vmatprep.subr.bf16.mxu0 0
      %487 = vmatpush1.bf16.msra.mxu0 %v449
      %488 = vmatprep.subr.bf16.mxu0 0
      %489 = vmatpush1.bf16.msra.mxu0 %v450
      %490 = vmatprep.subr.bf16.mxu0 0
      %491 = vmatpush1.bf16.msra.mxu0 %v451
      %492 = vmatprep.subr.bf16.mxu0 0
      %493 = vmatpush1.bf16.msra.mxu0 %v452
      %494 = vmatprep.subr.bf16.mxu0 0
      %495 = vmatpush1.bf16.msra.mxu0 %v453
      %496 = vmatprep.subr.bf16.mxu0 0
      %497 = vmatpush1.bf16.msra.mxu0 0
      %498 = vmatprep.subr.bf16.mxu0 0
      %499 = vmatpush1.bf16.msra.mxu0 0
      %500 = vmatprep.subr.bf16.mxu0 0
      %501 = vmatpush1.bf16.msra.mxu0 0
      %502 = vmatprep.subr.bf16.mxu0 0
      %503 = vmatpush1.bf16.msra.mxu0 0
      %504 = vmatprep.mubr.bf16.mxu0 %v467
      %505 = vmatmul.mubr.bf16.gmra.mrb[0].mxu0 %v359
      %v506 = vpop.f32.mrb[0].mxu0
      %v507 = vadd.f32 %v392, %v506
      %v508 = vpop.f32.mrb[0].mxu0
      %v509 = vpop.f32.mrb[0].mxu0
      %v510 = vadd.f32 %v392, %v509
      %v511 = vpop.f32.mrb[0].mxu0
      %512 = vmatprep.mubr.bf16.mxu0 %v470
      %513 = vmatmul.mubr.bf16.gmra.mrb[0].mxu0 %v361
      %v514 = vpop.f32.mrb[0].mxu0
      %v515 = vadd.f32 %v392, %v514
      %v516 = vpop.f32.mrb[0].mxu0
      %v517 = vpop.f32.mrb[0].mxu0
      %v518 = vpop.f32.mrb[0].mxu0
      %519 = vdwg.mxu0
      %v520 = vmax.f32 %v507, 0.0
      %v521 = vmax.f32 %v510, 0.0
      %v522 = vmax.f32 %v515, 0.0
      %v523 = vld [vmem:[%s3] sm:$0x1]
      %v525 = vlaneseq
      %v526 = vshrl.u32 %v525, 7
      %v527 = vsub.s32 0, %v526
      %v528 = vrot.slane %v523, %v527
      %v530 = vmul.f32 %v520, %v528
      %v531 = vmul.f32 %v521, %v528
      %v532 = vmul.f32 %v522, %v528
      %v533 = vld [vmem:[%s4] sm:$0x1]
      %v535 = vlaneseq
      %v536 = vshrl.u32 %v535, 7
      %v537 = vsub.s32 0, %v536
      %v538 = vrot.slane %v533, %v537
      %v540 = vadd.f32 %v530, %v538
      %v541 = vadd.f32 %v531, %v538
      %v542 = vadd.f32 %v532, %v538
      %v543 = vsel %vm355, %v540, 0.0
      %v544 = vsel %vm355, %v541, 0.0
      %v545 = vadd.f32 %v543, %v544
      %vm546 = vcmask 521216
      %v547 = vsel %vm546, %v542, 0.0
      %v548 = vadd.f32 %v545, %v547
      %v549 = vrot.slane %v548, 4
      %v550 = vadd.f32 %v548, %v549
      %v551 = vrot.slane %v550, 2
      %v552 = vadd.f32 %v550, %v551
      %v553 = vrot.slane %v552, 1
      %v554 = vadd.f32 %v552, %v553
      %v555 = vmul.f32 %v554, 0.045454547
      %v556 = vpack.c.bf16 %v555, %v555
      %v557 = vld [vmem:[%s5] sm:$0xf]
      %v558 = vld [vmem:[%s5 + $0x4] sm:$0xf]
      %v559 = vld [vmem:[%s5 + $0x8] sm:$0xf]
      %v560 = vld [vmem:[%s5 + $0xc] sm:$0xf]
      %v561 = vld [vmem:[%s5 + $0x10] sm:$0xf]
      %v562 = vld [vmem:[%s5 + $0x14] sm:$0xf]
      %v563 = vld [vmem:[%s5 + $0x18] sm:$0xf]
      %v564 = vld [vmem:[%s5 + $0x1c] sm:$0xf]
      %v565 = vld [vmem:[%s6] sm:$0x1]
      %v574 = vunpack.c.l.b16 %v557
      %v575 = vunpack.c.l.b16 %v558
      %v576 = vunpack.c.l.b16 %v559
      %v577 = vunpack.c.l.b16 %v560
      %v578 = vunpack.c.l.b16 %v561
      %v579 = vunpack.c.l.b16 %v562
      %v580 = vunpack.c.l.b16 %v563
      %v581 = vunpack.c.l.b16 %v564
      %v582 = vpack.c.b16 %v575, %v574
      %v583 = vpack.c.b16 %v577, %v576
      %v584 = vpack.c.b16 %v579, %v578
      %v585 = vpack.c.b16 %v581, %v580
      %v591 = vsel %vm355, %v556, 0
      %593 = vmatprep.subr.bf16.mxu0 0
      %594 = vmatpush1.bf16.msra.mxu0 %v582
      %595 = vmatprep.subr.bf16.mxu0 0
      %596 = vmatpush1.bf16.msra.mxu0 %v583
      %597 = vmatprep.subr.bf16.mxu0 0
      %598 = vmatpush1.bf16.msra.mxu0 %v584
      %599 = vmatprep.subr.bf16.mxu0 0
      %600 = vmatpush1.bf16.msra.mxu0 %v585
      %601 = vmatprep.subr.bf16.mxu0 0
      %602 = vmatpush1.bf16.msra.mxu0 0
      %603 = vmatprep.subr.bf16.mxu0 0
      %604 = vmatpush1.bf16.msra.mxu0 0
      %605 = vmatprep.subr.bf16.mxu0 0
      %606 = vmatpush1.bf16.msra.mxu0 0
      %607 = vmatprep.subr.bf16.mxu0 0
      %608 = vmatpush1.bf16.msra.mxu0 0
      %609 = vmatprep.subr.bf16.mxu0 0
      %610 = vmatpush1.bf16.msra.mxu0 0
      %611 = vmatprep.subr.bf16.mxu0 0
      %612 = vmatpush1.bf16.msra.mxu0 0
      %613 = vmatprep.subr.bf16.mxu0 0
      %614 = vmatpush1.bf16.msra.mxu0 0
      %615 = vmatprep.subr.bf16.mxu0 0
      %616 = vmatpush1.bf16.msra.mxu0 0
      %617 = vmatprep.subr.bf16.mxu0 0
      %618 = vmatpush1.bf16.msra.mxu0 0
      %619 = vmatprep.subr.bf16.mxu0 0
      %620 = vmatpush1.bf16.msra.mxu0 0
      %621 = vmatprep.subr.bf16.mxu0 0
      %622 = vmatpush1.bf16.msra.mxu0 0
      %623 = vmatprep.subr.bf16.mxu0 0
      %624 = vmatpush1.bf16.msra.mxu0 0
      %625 = vmatprep.mubr.bf16.mxu0 0
      %626 = vmatmul.mubr.bf16.gmra.mrb[0].mxu0 %v591
      %v627 = vpop.f32.mrb[0].mxu0
      %v628 = vadd.f32 %v565, %v627
      %v629 = vpop.f32.mrb[0].mxu0
      %v630 = vpop.f32.mrb[0].mxu0
      %v631 = vpop.f32.mrb[0].mxu0
      %632 = vdwg.mxu0
      %v633 = vmax.f32 %v628, 0.0
      %v634 = vpack.c.bf16 %v633, %v633
      %v635 = vld [vmem:[%s7] sm:$0xf]
      %v636 = vld [vmem:[%s8] sm:$0x1]
      %vm637 = vcmask 64512
      %v639 = vsel %vm637, %v634, 0
      %vm641 = vcmask 1043456
      %v643 = vsel %vm641, %v635, 0
      %645 = vmatprep.subr.bf16.mxu0 0
      %646 = vmatpush1.bf16.msra.mxu0 %v643
      %647 = vmatprep.subr.bf16.mxu0 0
      %648 = vmatpush1.bf16.msra.mxu0 0
      %649 = vmatprep.subr.bf16.mxu0 0
      %650 = vmatpush1.bf16.msra.mxu0 0
      %651 = vmatprep.subr.bf16.mxu0 0
      %652 = vmatpush1.bf16.msra.mxu0 0
      %653 = vmatprep.subr.bf16.mxu0 0
      %654 = vmatpush1.bf16.msra.mxu0 0
      %655 = vmatprep.subr.bf16.mxu0 0
      %656 = vmatpush1.bf16.msra.mxu0 0
      %657 = vmatprep.subr.bf16.mxu0 0
      %658 = vmatpush1.bf16.msra.mxu0 0
      %659 = vmatprep.subr.bf16.mxu0 0
      %660 = vmatpush1.bf16.msra.mxu0 0
      %661 = vmatprep.subr.bf16.mxu0 0
      %662 = vmatpush1.bf16.msra.mxu0 0
      %663 = vmatprep.subr.bf16.mxu0 0
      %664 = vmatpush1.bf16.msra.mxu0 0
      %665 = vmatprep.subr.bf16.mxu0 0
      %666 = vmatpush1.bf16.msra.mxu0 0
      %667 = vmatprep.subr.bf16.mxu0 0
      %668 = vmatpush1.bf16.msra.mxu0 0
      %669 = vmatprep.subr.bf16.mxu0 0
      %670 = vmatpush1.bf16.msra.mxu0 0
      %671 = vmatprep.subr.bf16.mxu0 0
      %672 = vmatpush1.bf16.msra.mxu0 0
      %673 = vmatprep.subr.bf16.mxu0 0
      %674 = vmatpush1.bf16.msra.mxu0 0
      %675 = vmatprep.subr.bf16.mxu0 0
      %676 = vmatpush1.bf16.msra.mxu0 0
      %677 = vmatprep.mubr.bf16.mxu0 0
      %678 = vmatmul.mubr.bf16.gmra.mrb[0].mxu0 %v639
      %v679 = vpop.f32.mrb[0].mxu0
      %v680 = vadd.f32 %v636, %v679
      %v681 = vpop.f32.mrb[0].mxu0
      %v682 = vpop.f32.mrb[0].mxu0
      %v683 = vpop.f32.mrb[0].mxu0
      %684 = vdwg.mxu0
      %v685 = vsub.f32 0.0, %v680
      %v686 = vmul.f32 %v685, 1.442695
      %v687 = vpow.pop %v686
      %v688 = vadd.f32 %v687, 1.0
      %v689 = vrcp.pop %v688
      %v690 = vmul.f32 1.0, %v689
      %v691 = vlaneseq
      %v692 = vshrl.u32 %v691, 7
      %v693 = vsub.s32 0, %v692
      %v694 = vrot.slane %v690, %v693
      %v695 = vmul.f32 %v540, %v694
      %v696 = vmul.f32 %v541, %v694
      %v697 = vmul.f32 %v542, %v694
      %698 = vst.msk [vmem:[%s332] sm:$0xff] %vm355, %v695
      %699 = vst.msk [vmem:[%s332 + $0x8] sm:$0xff] %vm355, %v696
      %700 = vst.msk [vmem:[%s332 + $0x10] sm:$0x3f] %vm546, %v697
      %p701 = scmp.lt.s32.totalorder %s20, 1
      %s702 = scalar_select %p701, %s20, 1
      %s703 = smul.addr %s702, 3
      %s704 = smul.addr %s703, 8
      %s705 = scalar_lea.vmem %s9, %s704
      // Predicated region
      $region57: #{tdnn_gru_se_forward.7} parent=55 // pred_check
        %p706 = pneg %p232
      $region58: #{tdnn_gru_se_forward.7} parent=55 // pred_check_branch
        %708 = sbr.rel (%p706) target = $region60
      $region59: #{tdnn_gru_se_forward.7} parent=55 // pred_region
        _
      $region60: #{tdnn_gru_se_forward.7} parent=55 // pred_fallthru
        _
    $region56: #{tdnn_gru_se_forward.7} parent=5 // pred_fallthru
      _
    %p709 = scmp.le.s32.totalorder 2, %s15
    // Predicated region
    $region61: #{tdnn_gru_se_forward.7} parent=5 // pred_check
      %p710 = pneg %p709
    $region62: #{tdnn_gru_se_forward.7} parent=5 // pred_check_branch
      %712 = sbr.rel (%p710) target = $region64
    $region63: #{tdnn_gru_se_forward.7} parent=5 // pred_region
      %s713 = ssub.s32 %s15, 2
      // Predicated region
      $region65: #{tdnn_gru_se_forward.7} parent=63 // pred_check
        %p714 = pneg %p238
      $region66: #{tdnn_gru_se_forward.7} parent=63 // pred_check_branch
        %716 = sbr.rel (%p714) target = $region68
      $region67: #{tdnn_gru_se_forward.7} parent=63 // pred_region
        %p717 = scmp.lt.s32.totalorder %s21, 1
        %s718 = scalar_select %p717, %s21, 1
        %s719 = smul.addr %s718, 3
        %s720 = smul.addr %s719, 8
        %s721 = scalar_lea.vmem %s9, %s720
      $region68: #{tdnn_gru_se_forward.7} parent=63 // pred_fallthru
        _
    $region64: #{tdnn_gru_se_forward.7} parent=5 // pred_fallthru
      _
  $region6: #{tdnn_gru_se_forward.7} parent=0 // loop_footer
    %s19 = sadd.s32 1, %s15
  $region7: #{tdnn_gru_se_forward.7} parent=0 // loop_footer_branch
    %14 = sbr.rel target = $region3
  $region8: #{tdnn_gru_se_forward.7} parent=0 // loop_exit
    _

// kernel: tdnn_gru_se_forward.9
$region0: #{tdnn_gru_se_forward.9}
  #allocation0 [shape = 'u32[]', space=smem, size = 0x4, offset = 0x4, fixed_abs, tag = 'smem constant byte address 0x4 - core index']
  #allocation1 [shape = 'u32[144,128]{1,0:T(1,128)}', space=vmem, size = 0x12000, scoped, tag = 'internal scratch']
  %s0 = inlined_call_operand.vmem [shape: f32[2,16,64], index: 0, kind: input, shape index: {}]
  %s1 = inlined_call_operand.vmem [shape: bf16[64,64], index: 1, kind: input, shape index: {}]
  %s2 = inlined_call_operand.vmem [shape: f32[1,64], index: 2, kind: input, shape index: {}]
  %s3 = inlined_call_operand.vmem [shape: f32[1,64], index: 3, kind: input, shape index: {}]
  %s4 = inlined_call_operand.vmem [shape: f32[1,64], index: 4, kind: input, shape index: {}]
  %s5 = inlined_call_operand.vmem [shape: bf16[64,8], index: 5, kind: input, shape index: {}]
  %s6 = inlined_call_operand.vmem [shape: f32[1,8], index: 6, kind: input, shape index: {}]
  %s7 = inlined_call_operand.vmem [shape: bf16[8,64], index: 7, kind: input, shape index: {}]
  %s8 = inlined_call_operand.vmem [shape: f32[1,64], index: 8, kind: input, shape index: {}]
  %s9 = inlined_call_operand.vmem [shape: bf16[64,64], index: 9, kind: input, shape index: {}]
  %s10 = inlined_call_operand.vmem [shape: f32[1,64], index: 10, kind: input, shape index: {}]
  %s11 = inlined_call_operand.vmem [shape: bf16[64,8], index: 11, kind: input, shape index: {}]
  %s12 = inlined_call_operand.vmem [shape: f32[1,8], index: 12, kind: input, shape index: {}]
  %s13 = inlined_call_operand.vmem [shape: bf16[8,64], index: 13, kind: input, shape index: {}]
  %s14 = inlined_call_operand.vmem [shape: f32[1,64], index: 14, kind: input, shape index: {}]
  %s15 = inlined_call_operand.vmem [shape: f32[2,16,64], index: 15, kind: output, shape index: {}]
  %s16 = sld [smem:[#allocation0]]
  $region93: #{tdnn_gru_se_forward.9} parent=0
    _
  %s18 = ssub.s32 1, %s16
  %s19 = scalar_select 0, %s18, %s16
  loop: start=0, step=1, limit=4
  $region2: #{tdnn_gru_se_forward.9} parent=0 // loop_pre_header
    _
  $region3: #{tdnn_gru_se_forward.9} parent=0 // loop_header
    %s21 = sphi 0, %s25
    %p22 = scmp.ge.s32.totalorder %s21, 4
    %s31 = sphi 0, %s33
    %s34 = sphi 0, %s31
    %s35 = sphi 0, %s34
    %s51 = sphi 0, %s35
    %s55 = sphi 0, %s55
    %s57 = sphi 0, %s55
    %s58 = sphi 0, %s57
    %s72 = sphi 0, %s58
    %s76 = sphi 0, %s76
    %s78 = sphi 0, %s76
    %s79 = sphi 0, %s78
    %s93 = sphi 0, %s79
    %s97 = sphi 0, %s97
    %s99 = sphi 0, %s97
    %s100 = sphi 0, %s99
    %s114 = sphi 0, %s100
    %s118 = sphi 0, %s118
    %s120 = sphi 0, %s118
    %s121 = sphi 0, %s120
    %s135 = sphi 0, %s121
    %s139 = sphi 0, %s139
    %s141 = sphi 0, %s139
    %s142 = sphi 0, %s141
    %s156 = sphi 0, %s142
    %s160 = sphi 0, %s160
    %s162 = sphi 0, %s160
    %s163 = sphi 0, %s162
    %s177 = sphi 0, %s163
    %s181 = sphi 0, %s181
    %s183 = sphi 0, %s181
    %s184 = sphi 0, %s183
    %s198 = sphi 0, %s184
    %s202 = sphi 0, %s202
    %s204 = sphi 0, %s202
    %s205 = sphi 0, %s204
    %s219 = sphi 0, %s205
    %s223 = sphi 0, %s223
    %s225 = sphi 0, %s223
    %s226 = sphi 0, %s225
    %s240 = sphi 0, %s226
    %s244 = sphi 0, %s244
    %s246 = sphi 0, %s244
    %s247 = sphi 0, %s246
    %s261 = sphi 0, %s247
    %s265 = sphi 0, %s265
    %s267 = sphi 0, %s265
    %s268 = sphi 0, %s267
    %s282 = sphi 0, %s268
    %s286 = sphi 0, %s286
    %s288 = sphi 0, %s286
    %s289 = sphi 0, %s288
    %s303 = sphi 0, %s289
    %s307 = sphi 0, %s307
    %s309 = sphi 0, %s307
    %s310 = sphi 0, %s309
    %s324 = sphi 0, %s310
    %s328 = sphi 0, %s328
    %s330 = sphi 0, %s328
    %s331 = sphi 0, %s330
    %s345 = sphi 0, %s331
    %s351 = sphi 0, %s353
    %s354 = sphi 0, %s351
    %s355 = sphi 0, %s354
    %s371 = sphi 0, %s355
  $region4: #{tdnn_gru_se_forward.9} parent=0 // loop_header_branch
    %24 = sbr.rel (%p22) target = $region8
  $region5: #{tdnn_gru_se_forward.9} parent=0 // loop_body
    %s26 = ssub.s32 %s21, 1
    %s27 = ssub.s32 %s21, 2
    %s28 = sadd.s32 %s21, 1
    %s29 = ssub.s32 %s21, %s28
    %p30 = scmp.eq.s32.totalorder %s29, 0
    %s32 = sadd.s32 %s31, 1
    %s33 = scalar_select %p30, %s31, %s32
    %p36 = pneg %p30
    %p37 = scmp.eq.s32.totalorder %s21, 1
    %p38 = por %p36, %p37
    %p39 = scmp.ne.s32.totalorder %s31, %s34
    %p40 = scmp.eq.s32.totalorder %s21, 0
    %p41 = por %p39, %p40
    %p42 = scmp.ne.s32.totalorder %s31, %s34
    %p43 = scmp.eq.s32.totalorder %s26, 1
    %p44 = por %p42, %p43
    %p45 = scmp.ne.s32.totalorder %s34, %s35
    %p46 = scmp.eq.s32.totalorder %s26, 0
    %p47 = por %p45, %p46
    %p48 = scmp.ne.s32.totalorder %s34, %s35
    %p49 = scmp.eq.s32.totalorder %s27, 1
    %p50 = por %p48, %p49
    %p52 = scmp.ne.s32.totalorder %s35, %s51
    %p53 = scmp.eq.s32.totalorder %s27, 0
    %p54 = por %p52, %p53
    %s56 = sadd.s32 %s55, 1
    %p59 = scmp.eq.s32.totalorder %s21, 1
    %p60 = scmp.ne.s32.totalorder %s55, %s57
    %p61 = scmp.eq.s32.totalorder %s21, 0
    %p62 = por %p60, %p61
    %p63 = scmp.ne.s32.totalorder %s55, %s57
    %p64 = scmp.eq.s32.totalorder %s26, 1
    %p65 = por %p63, %p64
    %p66 = scmp.ne.s32.totalorder %s57, %s58
    %p67 = scmp.eq.s32.totalorder %s26, 0
    %p68 = por %p66, %p67
    %p69 = scmp.ne.s32.totalorder %s57, %s58
    %p70 = scmp.eq.s32.totalorder %s27, 1
    %p71 = por %p69, %p70
    %p73 = scmp.ne.s32.totalorder %s58, %s72
    %p74 = scmp.eq.s32.totalorder %s27, 0
    %p75 = por %p73, %p74
    %s77 = sadd.s32 %s76, 1
    %p80 = scmp.eq.s32.totalorder %s21, 1
    %p81 = scmp.ne.s32.totalorder %s76, %s78
    %p82 = scmp.eq.s32.totalorder %s21, 0
    %p83 = por %p81, %p82
    %p84 = scmp.ne.s32.totalorder %s76, %s78
    %p85 = scmp.eq.s32.totalorder %s26, 1
    %p86 = por %p84, %p85
    %p87 = scmp.ne.s32.totalorder %s78, %s79
    %p88 = scmp.eq.s32.totalorder %s26, 0
    %p89 = por %p87, %p88
    %p90 = scmp.ne.s32.totalorder %s78, %s79
    %p91 = scmp.eq.s32.totalorder %s27, 1
    %p92 = por %p90, %p91
    %p94 = scmp.ne.s32.totalorder %s79, %s93
    %p95 = scmp.eq.s32.totalorder %s27, 0
    %p96 = por %p94, %p95
    %s98 = sadd.s32 %s97, 1
    %p101 = scmp.eq.s32.totalorder %s21, 1
    %p102 = scmp.ne.s32.totalorder %s97, %s99
    %p103 = scmp.eq.s32.totalorder %s21, 0
    %p104 = por %p102, %p103
    %p105 = scmp.ne.s32.totalorder %s97, %s99
    %p106 = scmp.eq.s32.totalorder %s26, 1
    %p107 = por %p105, %p106
    %p108 = scmp.ne.s32.totalorder %s99, %s100
    %p109 = scmp.eq.s32.totalorder %s26, 0
    %p110 = por %p108, %p109
    %p111 = scmp.ne.s32.totalorder %s99, %s100
    %p112 = scmp.eq.s32.totalorder %s27, 1
    %p113 = por %p111, %p112
    %p115 = scmp.ne.s32.totalorder %s100, %s114
    %p116 = scmp.eq.s32.totalorder %s27, 0
    %p117 = por %p115, %p116
    %s119 = sadd.s32 %s118, 1
    %p122 = scmp.eq.s32.totalorder %s21, 1
    %p123 = scmp.ne.s32.totalorder %s118, %s120
    %p124 = scmp.eq.s32.totalorder %s21, 0
    %p125 = por %p123, %p124
    %p126 = scmp.ne.s32.totalorder %s118, %s120
    %p127 = scmp.eq.s32.totalorder %s26, 1
    %p128 = por %p126, %p127
    %p129 = scmp.ne.s32.totalorder %s120, %s121
    %p130 = scmp.eq.s32.totalorder %s26, 0
    %p131 = por %p129, %p130
    %p132 = scmp.ne.s32.totalorder %s120, %s121
    %p133 = scmp.eq.s32.totalorder %s27, 1
    %p134 = por %p132, %p133
    %p136 = scmp.ne.s32.totalorder %s121, %s135
    %p137 = scmp.eq.s32.totalorder %s27, 0
    %p138 = por %p136, %p137
    %s140 = sadd.s32 %s139, 1
    %p143 = scmp.eq.s32.totalorder %s21, 1
    %p144 = scmp.ne.s32.totalorder %s139, %s141
    %p145 = scmp.eq.s32.totalorder %s21, 0
    %p146 = por %p144, %p145
    %p147 = scmp.ne.s32.totalorder %s139, %s141
    %p148 = scmp.eq.s32.totalorder %s26, 1
    %p149 = por %p147, %p148
    %p150 = scmp.ne.s32.totalorder %s141, %s142
    %p151 = scmp.eq.s32.totalorder %s26, 0
    %p152 = por %p150, %p151
    %p153 = scmp.ne.s32.totalorder %s141, %s142
    %p154 = scmp.eq.s32.totalorder %s27, 1
    %p155 = por %p153, %p154
    %p157 = scmp.ne.s32.totalorder %s142, %s156
    %p158 = scmp.eq.s32.totalorder %s27, 0
    %p159 = por %p157, %p158
    %s161 = sadd.s32 %s160, 1
    %p164 = scmp.eq.s32.totalorder %s21, 1
    %p165 = scmp.ne.s32.totalorder %s160, %s162
    %p166 = scmp.eq.s32.totalorder %s21, 0
    %p167 = por %p165, %p166
    %p168 = scmp.ne.s32.totalorder %s160, %s162
    %p169 = scmp.eq.s32.totalorder %s26, 1
    %p170 = por %p168, %p169
    %p171 = scmp.ne.s32.totalorder %s162, %s163
    %p172 = scmp.eq.s32.totalorder %s26, 0
    %p173 = por %p171, %p172
    %p174 = scmp.ne.s32.totalorder %s162, %s163
    %p175 = scmp.eq.s32.totalorder %s27, 1
    %p176 = por %p174, %p175
    %p178 = scmp.ne.s32.totalorder %s163, %s177
    %p179 = scmp.eq.s32.totalorder %s27, 0
    %p180 = por %p178, %p179
    %s182 = sadd.s32 %s181, 1
    %p185 = scmp.eq.s32.totalorder %s21, 1
    %p186 = scmp.ne.s32.totalorder %s181, %s183
    %p187 = scmp.eq.s32.totalorder %s21, 0
    %p188 = por %p186, %p187
    %p189 = scmp.ne.s32.totalorder %s181, %s183
    %p190 = scmp.eq.s32.totalorder %s26, 1
    %p191 = por %p189, %p190
    %p192 = scmp.ne.s32.totalorder %s183, %s184
    %p193 = scmp.eq.s32.totalorder %s26, 0
    %p194 = por %p192, %p193
    %p195 = scmp.ne.s32.totalorder %s183, %s184
    %p196 = scmp.eq.s32.totalorder %s27, 1
    %p197 = por %p195, %p196
    %p199 = scmp.ne.s32.totalorder %s184, %s198
    %p200 = scmp.eq.s32.totalorder %s27, 0
    %p201 = por %p199, %p200
    %s203 = sadd.s32 %s202, 1
    %p206 = scmp.eq.s32.totalorder %s21, 1
    %p207 = scmp.ne.s32.totalorder %s202, %s204
    %p208 = scmp.eq.s32.totalorder %s21, 0
    %p209 = por %p207, %p208
    %p210 = scmp.ne.s32.totalorder %s202, %s204
    %p211 = scmp.eq.s32.totalorder %s26, 1
    %p212 = por %p210, %p211
    %p213 = scmp.ne.s32.totalorder %s204, %s205
    %p214 = scmp.eq.s32.totalorder %s26, 0
    %p215 = por %p213, %p214
    %p216 = scmp.ne.s32.totalorder %s204, %s205
    %p217 = scmp.eq.s32.totalorder %s27, 1
    %p218 = por %p216, %p217
    %p220 = scmp.ne.s32.totalorder %s205, %s219
    %p221 = scmp.eq.s32.totalorder %s27, 0
    %p222 = por %p220, %p221
    %s224 = sadd.s32 %s223, 1
    %p227 = scmp.eq.s32.totalorder %s21, 1
    %p228 = scmp.ne.s32.totalorder %s223, %s225
    %p229 = scmp.eq.s32.totalorder %s21, 0
    %p230 = por %p228, %p229
    %p231 = scmp.ne.s32.totalorder %s223, %s225
    %p232 = scmp.eq.s32.totalorder %s26, 1
    %p233 = por %p231, %p232
    %p234 = scmp.ne.s32.totalorder %s225, %s226
    %p235 = scmp.eq.s32.totalorder %s26, 0
    %p236 = por %p234, %p235
    %p237 = scmp.ne.s32.totalorder %s225, %s226
    %p238 = scmp.eq.s32.totalorder %s27, 1
    %p239 = por %p237, %p238
    %p241 = scmp.ne.s32.totalorder %s226, %s240
    %p242 = scmp.eq.s32.totalorder %s27, 0
    %p243 = por %p241, %p242
    %s245 = sadd.s32 %s244, 1
    %p248 = scmp.eq.s32.totalorder %s21, 1
    %p249 = scmp.ne.s32.totalorder %s244, %s246
    %p250 = scmp.eq.s32.totalorder %s21, 0
    %p251 = por %p249, %p250
    %p252 = scmp.ne.s32.totalorder %s244, %s246
    %p253 = scmp.eq.s32.totalorder %s26, 1
    %p254 = por %p252, %p253
    %p255 = scmp.ne.s32.totalorder %s246, %s247
    %p256 = scmp.eq.s32.totalorder %s26, 0
    %p257 = por %p255, %p256
    %p258 = scmp.ne.s32.totalorder %s246, %s247
    %p259 = scmp.eq.s32.totalorder %s27, 1
    %p260 = por %p258, %p259
    %p262 = scmp.ne.s32.totalorder %s247, %s261
    %p263 = scmp.eq.s32.totalorder %s27, 0
    %p264 = por %p262, %p263
    %s266 = sadd.s32 %s265, 1
    %p269 = scmp.eq.s32.totalorder %s21, 1
    %p270 = scmp.ne.s32.totalorder %s265, %s267
    %p271 = scmp.eq.s32.totalorder %s21, 0
    %p272 = por %p270, %p271
    %p273 = scmp.ne.s32.totalorder %s265, %s267
    %p274 = scmp.eq.s32.totalorder %s26, 1
    %p275 = por %p273, %p274
    %p276 = scmp.ne.s32.totalorder %s267, %s268
    %p277 = scmp.eq.s32.totalorder %s26, 0
    %p278 = por %p276, %p277
    %p279 = scmp.ne.s32.totalorder %s267, %s268
    %p280 = scmp.eq.s32.totalorder %s27, 1
    %p281 = por %p279, %p280
    %p283 = scmp.ne.s32.totalorder %s268, %s282
    %p284 = scmp.eq.s32.totalorder %s27, 0
    %p285 = por %p283, %p284
    %s287 = sadd.s32 %s286, 1
    %p290 = scmp.eq.s32.totalorder %s21, 1
    %p291 = scmp.ne.s32.totalorder %s286, %s288
    %p292 = scmp.eq.s32.totalorder %s21, 0
    %p293 = por %p291, %p292
    %p294 = scmp.ne.s32.totalorder %s286, %s288
    %p295 = scmp.eq.s32.totalorder %s26, 1
    %p296 = por %p294, %p295
    %p297 = scmp.ne.s32.totalorder %s288, %s289
    %p298 = scmp.eq.s32.totalorder %s26, 0
    %p299 = por %p297, %p298
    %p300 = scmp.ne.s32.totalorder %s288, %s289
    %p301 = scmp.eq.s32.totalorder %s27, 1
    %p302 = por %p300, %p301
    %p304 = scmp.ne.s32.totalorder %s289, %s303
    %p305 = scmp.eq.s32.totalorder %s27, 0
    %p306 = por %p304, %p305
    %s308 = sadd.s32 %s307, 1
    %p311 = scmp.eq.s32.totalorder %s21, 1
    %p312 = scmp.ne.s32.totalorder %s307, %s309
    %p313 = scmp.eq.s32.totalorder %s21, 0
    %p314 = por %p312, %p313
    %p315 = scmp.ne.s32.totalorder %s307, %s309
    %p316 = scmp.eq.s32.totalorder %s26, 1
    %p317 = por %p315, %p316
    %p318 = scmp.ne.s32.totalorder %s309, %s310
    %p319 = scmp.eq.s32.totalorder %s26, 0
    %p320 = por %p318, %p319
    %p321 = scmp.ne.s32.totalorder %s309, %s310
    %p322 = scmp.eq.s32.totalorder %s27, 1
    %p323 = por %p321, %p322
    %p325 = scmp.ne.s32.totalorder %s310, %s324
    %p326 = scmp.eq.s32.totalorder %s27, 0
    %p327 = por %p325, %p326
    %s329 = sadd.s32 %s328, 1
    %p332 = scmp.eq.s32.totalorder %s21, 1
    %p333 = scmp.ne.s32.totalorder %s328, %s330
    %p334 = scmp.eq.s32.totalorder %s21, 0
    %p335 = por %p333, %p334
    %p336 = scmp.ne.s32.totalorder %s328, %s330
    %p337 = scmp.eq.s32.totalorder %s26, 1
    %p338 = por %p336, %p337
    %p339 = scmp.ne.s32.totalorder %s330, %s331
    %p340 = scmp.eq.s32.totalorder %s26, 0
    %p341 = por %p339, %p340
    %p342 = scmp.ne.s32.totalorder %s330, %s331
    %p343 = scmp.eq.s32.totalorder %s27, 1
    %p344 = por %p342, %p343
    %p346 = scmp.ne.s32.totalorder %s331, %s345
    %p347 = scmp.eq.s32.totalorder %s27, 0
    %p348 = por %p346, %p347
    %s349 = ssub.s32 %s21, %s28
    %p350 = scmp.eq.s32.totalorder %s349, 0
    %s352 = sadd.s32 %s351, 1
    %s353 = scalar_select %p350, %s351, %s352
    %p356 = pneg %p350
    %p357 = scmp.eq.s32.totalorder %s21, 1
    %p358 = por %p356, %p357
    %p359 = scmp.ne.s32.totalorder %s351, %s354
    %p360 = scmp.eq.s32.totalorder %s21, 0
    %p361 = por %p359, %p360
    %p362 = scmp.ne.s32.totalorder %s351, %s354
    %p363 = scmp.eq.s32.totalorder %s26, 1
    %p364 = por %p362, %p363
    %p365 = scmp.ne.s32.totalorder %s354, %s355
    %p366 = scmp.eq.s32.totalorder %s26, 0
    %p367 = por %p365, %p366
    %p368 = scmp.ne.s32.totalorder %s354, %s355
    %p369 = scmp.eq.s32.totalorder %s27, 1
    %p370 = por %p368, %p369
    %p372 = scmp.ne.s32.totalorder %s355, %s371
    %p373 = scmp.eq.s32.totalorder %s27, 0
    %p374 = por %p372, %p373
    %p375 = scmp.le.s32.totalorder 1, %s21
    %p376 = scmp.lt.s32.totalorder %s21, 3
    %p377 = pnand %p375, %p376
    %p378 = pneg %p377
    // Predicated region
    $region9: #{tdnn_gru_se_forward.9} parent=5 // pred_check
      _
    $region10: #{tdnn_gru_se_forward.9} parent=5 // pred_check_branch
      %380 = sbr.rel (%p377) target = $region12
    $region11: #{tdnn_gru_se_forward.9} parent=5 // pred_region
      %s381 = ssub.s32 %s21, 1
      // Predicated region
      $region13: #{tdnn_gru_se_forward.9} parent=11 // pred_check
        %p382 = pneg %p68
      $region14: #{tdnn_gru_se_forward.9} parent=11 // pred_check_branch
        %384 = sbr.rel (%p382) target = $region16
      $region15: #{tdnn_gru_se_forward.9} parent=11 // pred_region
        _
      $region16: #{tdnn_gru_se_forward.9} parent=11 // pred_fallthru
        _
      // Predicated region
      $region17: #{tdnn_gru_se_forward.9} parent=11 // pred_check
        %p385 = pneg %p89
      $region18: #{tdnn_gru_se_forward.9} parent=11 // pred_check_branch
        %387 = sbr.rel (%p385) target = $region20
      $region19: #{tdnn_gru_se_forward.9} parent=11 // pred_region
        _
      $region20: #{tdnn_gru_se_forward.9} parent=11 // pred_fallthru
        _
      // Predicated region
      $region21: #{tdnn_gru_se_forward.9} parent=11 // pred_check
        %p388 = pneg %p110
      $region22: #{tdnn_gru_se_forward.9} parent=11 // pred_check_branch
        %390 = sbr.rel (%p388) target = $region24
      $region23: #{tdnn_gru_se_forward.9} parent=11 // pred_region
        _
      $region24: #{tdnn_gru_se_forward.9} parent=11 // pred_fallthru
        _
      // Predicated region
      $region25: #{tdnn_gru_se_forward.9} parent=11 // pred_check
        %p391 = pneg %p131
      $region26: #{tdnn_gru_se_forward.9} parent=11 // pred_check_branch
        %393 = sbr.rel (%p391) target = $region28
      $region27: #{tdnn_gru_se_forward.9} parent=11 // pred_region
        _
      $region28: #{tdnn_gru_se_forward.9} parent=11 // pred_fallthru
        _
      // Predicated region
      $region29: #{tdnn_gru_se_forward.9} parent=11 // pred_check
        %p394 = pneg %p152
      $region30: #{tdnn_gru_se_forward.9} parent=11 // pred_check_branch
        %396 = sbr.rel (%p394) target = $region32
      $region31: #{tdnn_gru_se_forward.9} parent=11 // pred_region
        _
      $region32: #{tdnn_gru_se_forward.9} parent=11 // pred_fallthru
        _
      // Predicated region
      $region33: #{tdnn_gru_se_forward.9} parent=11 // pred_check
        %p397 = pneg %p173
      $region34: #{tdnn_gru_se_forward.9} parent=11 // pred_check_branch
        %399 = sbr.rel (%p397) target = $region36
      $region35: #{tdnn_gru_se_forward.9} parent=11 // pred_region
        _
      $region36: #{tdnn_gru_se_forward.9} parent=11 // pred_fallthru
        _
      // Predicated region
      $region37: #{tdnn_gru_se_forward.9} parent=11 // pred_check
        %p400 = pneg %p194
      $region38: #{tdnn_gru_se_forward.9} parent=11 // pred_check_branch
        %402 = sbr.rel (%p400) target = $region40
      $region39: #{tdnn_gru_se_forward.9} parent=11 // pred_region
        _
      $region40: #{tdnn_gru_se_forward.9} parent=11 // pred_fallthru
        _
      // Predicated region
      $region41: #{tdnn_gru_se_forward.9} parent=11 // pred_check
        %p403 = pneg %p215
      $region42: #{tdnn_gru_se_forward.9} parent=11 // pred_check_branch
        %405 = sbr.rel (%p403) target = $region44
      $region43: #{tdnn_gru_se_forward.9} parent=11 // pred_region
        _
      $region44: #{tdnn_gru_se_forward.9} parent=11 // pred_fallthru
        _
      // Predicated region
      $region45: #{tdnn_gru_se_forward.9} parent=11 // pred_check
        %p406 = pneg %p236
      $region46: #{tdnn_gru_se_forward.9} parent=11 // pred_check_branch
        %408 = sbr.rel (%p406) target = $region48
      $region47: #{tdnn_gru_se_forward.9} parent=11 // pred_region
        _
      $region48: #{tdnn_gru_se_forward.9} parent=11 // pred_fallthru
        _
      // Predicated region
      $region49: #{tdnn_gru_se_forward.9} parent=11 // pred_check
        %p409 = pneg %p257
      $region50: #{tdnn_gru_se_forward.9} parent=11 // pred_check_branch
        %411 = sbr.rel (%p409) target = $region52
      $region51: #{tdnn_gru_se_forward.9} parent=11 // pred_region
        _
      $region52: #{tdnn_gru_se_forward.9} parent=11 // pred_fallthru
        _
      // Predicated region
      $region53: #{tdnn_gru_se_forward.9} parent=11 // pred_check
        %p412 = pneg %p278
      $region54: #{tdnn_gru_se_forward.9} parent=11 // pred_check_branch
        %414 = sbr.rel (%p412) target = $region56
      $region55: #{tdnn_gru_se_forward.9} parent=11 // pred_region
        _
      $region56: #{tdnn_gru_se_forward.9} parent=11 // pred_fallthru
        _
      // Predicated region
      $region57: #{tdnn_gru_se_forward.9} parent=11 // pred_check
        %p415 = pneg %p299
      $region58: #{tdnn_gru_se_forward.9} parent=11 // pred_check_branch
        %417 = sbr.rel (%p415) target = $region60
      $region59: #{tdnn_gru_se_forward.9} parent=11 // pred_region
        _
      $region60: #{tdnn_gru_se_forward.9} parent=11 // pred_fallthru
        _
      // Predicated region
      $region61: #{tdnn_gru_se_forward.9} parent=11 // pred_check
        %p418 = pneg %p320
      $region62: #{tdnn_gru_se_forward.9} parent=11 // pred_check_branch
        %420 = sbr.rel (%p418) target = $region64
      $region63: #{tdnn_gru_se_forward.9} parent=11 // pred_region
        _
      $region64: #{tdnn_gru_se_forward.9} parent=11 // pred_fallthru
        _
      // Predicated region
      $region65: #{tdnn_gru_se_forward.9} parent=11 // pred_check
        %p421 = pneg %p341
      $region66: #{tdnn_gru_se_forward.9} parent=11 // pred_check_branch
        %423 = sbr.rel (%p421) target = $region68
      $region67: #{tdnn_gru_se_forward.9} parent=11 // pred_region
        _
      $region68: #{tdnn_gru_se_forward.9} parent=11 // pred_fallthru
        _
    $region12: #{tdnn_gru_se_forward.9} parent=5 // pred_fallthru
      _
    %p424 = scmp.lt.s32.totalorder %s21, 2
    // Predicated region
    $region69: #{tdnn_gru_se_forward.9} parent=5 // pred_check
      %p425 = pneg %p424
    $region70: #{tdnn_gru_se_forward.9} parent=5 // pred_check_branch
      %427 = sbr.rel (%p425) target = $region72
    $region71: #{tdnn_gru_se_forward.9} parent=5 // pred_region
      // Predicated region
      $region73: #{tdnn_gru_se_forward.9} parent=71 // pred_check
        %p428 = pneg %p41
      $region74: #{tdnn_gru_se_forward.9} parent=71 // pred_check_branch
        %430 = sbr.rel (%p428) target = $region76
      $region75: #{tdnn_gru_se_forward.9} parent=71 // pred_region
        %p431 = scmp.lt.s32.totalorder %s21, 1
        %s432 = scalar_select %p431, %s21, 1
        %s433 = smul.addr %s432, 2
        %s434 = smul.addr %s433, 8
        %s435 = scalar_lea.vmem %s0, %s434
      $region76: #{tdnn_gru_se_forward.9} parent=71 // pred_fallthru
        _
    $region72: #{tdnn_gru_se_forward.9} parent=5 // pred_fallthru
      _
    %p436 = scmp.le.s32.totalorder 1, %s21
    %p437 = scmp.lt.s32.totalorder %s21, 3
    %p438 = pnand %p436, %p437
    %p439 = pneg %p438
    // Predicated region
    $region77: #{tdnn_gru_se_forward.9} parent=5 // pred_check
      _
    $region78: #{tdnn_gru_se_forward.9} parent=5 // pred_check_branch
      %441 = sbr.rel (%p438) target = $region80
    $region79: #{tdnn_gru_se_forward.9} parent=5 // pred_region
      %s442 = ssub.s32 %s21, 1
      %p443 = scmp.lt.s32.totalorder %s26, 1
      %s444 = scalar_select %p443, %s26, 1
      %s445 = smul.addr %s444, 2
      %s446 = smul.addr %s445, 8
      %s447 = scalar_lea.vmem %s0, %s446
      %p448 = pneg %p47
      %p449 = pneg %p44
      %p450 = pneg %p68
      %p451 = pneg %p65
      %p452 = pneg %p89
      %p453 = pneg %p86
      %p454 = pneg %p110
      %p455 = pneg %p107
      %p456 = pneg %p131
      %p457 = pneg %p128
      %p458 = pneg %p152
      %p459 = pneg %p149
      %p460 = pneg %p173
      %p461 = pneg %p170
      %p462 = pneg %p194
      %p463 = pneg %p191
      %p464 = pneg %p215
      %p465 = pneg %p212
      %p466 = pneg %p236
      %p467 = pneg %p233
      %p468 = pneg %p257
      %p469 = pneg %p254
      %p470 = pneg %p278
      %p471 = pneg %p275
      %p472 = pneg %p299
      %p473 = pneg %p296
      %p474 = pneg %p320
      %p475 = pneg %p317
      %p476 = pneg %p341
      %p477 = pneg %p338
      %p478 = pneg %p367
      %p479 = pneg %p364
      %p480 = scmp.lt.s32.totalorder %s26, 1
      %s481 = scalar_select %p480, %s26, 1
      %s482 = smul.addr %s481, 2
      %s483 = smul.addr %s482, 8
      %s484 = scalar_lea.vmem %s15, %s483
      %p485 = scmp.lt.s32.totalorder %s26, 1
      %s486 = scalar_select %p485, %s26, 1
      %s487 = smul.addr %s486, 2
      %s488 = smul.addr %s487, 8
      %s489 = scalar_lea.vmem %s0, %s488
      %p490 = scmp.lt.s32.totalorder %s26, 1
      %s491 = scalar_select %p490, %s26, 1
      %s492 = smul.addr %s491, 2
      %s493 = smul.addr %s492, 8
      %s494 = scalar_lea.vmem %s15, %s493
      %v496 = vld [vmem:[%s489] sm:$0xff]
      %v497 = vld [vmem:[%s489 + $0x8] sm:$0xff]
      %v498 = vpack.c.bf16 %v497, %v496
      %v499 = vld [vmem:[%s1] sm:$0xf]
      %v500 = vld [vmem:[%s1 + $0x4] sm:$0xf]
      %v501 = vld [vmem:[%s1 + $0x8] sm:$0xf]
      %v502 = vld [vmem:[%s1 + $0xc] sm:$0xf]
      %v503 = vld [vmem:[%s1 + $0x10] sm:$0xf]
      %v504 = vld [vmem:[%s1 + $0x14] sm:$0xf]
      %v505 = vld [vmem:[%s1 + $0x18] sm:$0xf]
      %v506 = vld [vmem:[%s1 + $0x1c] sm:$0xf]
      %v507 = vld [vmem:[%s2] sm:$0x1]
      %v509 = vlaneseq
      %v510 = vshrl.u32 %v509, 7
      %v511 = vsub.s32 0, %v510
      %v512 = vrot.slane %v507, %v511
      %v522 = vunpack.c.l.b16 %v499
      %v523 = vunpack.c.l.b16 %v500
      %v524 = vunpack.c.l.b16 %v501
      %v525 = vunpack.c.l.b16 %v502
      %v526 = vunpack.c.l.b16 %v503
      %v527 = vunpack.c.l.b16 %v504
      %v528 = vunpack.c.l.b16 %v505
      %v529 = vunpack.c.l.b16 %v506
      %v530 = vpack.c.b16 %v523, %v522
      %v531 = vpack.c.b16 %v525, %v524
      %v532 = vpack.c.b16 %v527, %v526
      %v533 = vpack.c.b16 %v529, %v528
      %vm538 = vcmask 523264
      %v540 = vsel %vm538, %v498, 0
      %542 = vmatprep.subr.bf16.mxu0 0
      %543 = vmatpush1.bf16.msra.mxu0 %v530
      %544 = vmatprep.subr.bf16.mxu0 0
      %545 = vmatpush1.bf16.msra.mxu0 %v531
      %546 = vmatprep.subr.bf16.mxu0 0
      %547 = vmatpush1.bf16.msra.mxu0 %v532
      %548 = vmatprep.subr.bf16.mxu0 0
      %549 = vmatpush1.bf16.msra.mxu0 %v533
      %550 = vmatprep.subr.bf16.mxu0 0
      %551 = vmatpush1.bf16.msra.mxu0 0
      %552 = vmatprep.subr.bf16.mxu0 0
      %553 = vmatpush1.bf16.msra.mxu0 0
      %554 = vmatprep.subr.bf16.mxu0 0
      %555 = vmatpush1.bf16.msra.mxu0 0
      %556 = vmatprep.subr.bf16.mxu0 0
      %557 = vmatpush1.bf16.msra.mxu0 0
      %558 = vmatprep.subr.bf16.mxu0 0
      %559 = vmatpush1.bf16.msra.mxu0 0
      %560 = vmatprep.subr.bf16.mxu0 0
      %561 = vmatpush1.bf16.msra.mxu0 0
      %562 = vmatprep.subr.bf16.mxu0 0
      %563 = vmatpush1.bf16.msra.mxu0 0
      %564 = vmatprep.subr.bf16.mxu0 0
      %565 = vmatpush1.bf16.msra.mxu0 0
      %566 = vmatprep.subr.bf16.mxu0 0
      %567 = vmatpush1.bf16.msra.mxu0 0
      %568 = vmatprep.subr.bf16.mxu0 0
      %569 = vmatpush1.bf16.msra.mxu0 0
      %570 = vmatprep.subr.bf16.mxu0 0
      %571 = vmatpush1.bf16.msra.mxu0 0
      %572 = vmatprep.subr.bf16.mxu0 0
      %573 = vmatpush1.bf16.msra.mxu0 0
      %574 = vmatprep.mubr.bf16.mxu0 0
      %575 = vmatmul.mubr.bf16.gmra.mrb[0].mxu0 %v540
      %v576 = vpop.f32.mrb[0].mxu0
      %v577 = vadd.f32 %v512, %v576
      %v578 = vpop.f32.mrb[0].mxu0
      %v579 = vpop.f32.mrb[0].mxu0
      %v580 = vadd.f32 %v512, %v579
      %v581 = vpop.f32.mrb[0].mxu0
      %582 = vdwg.mxu0
      %v583 = vmax.f32 %v577, 0.0
      %v584 = vmax.f32 %v580, 0.0
      %v585 = vld [vmem:[%s3] sm:$0x1]
      %v587 = vlaneseq
      %v588 = vshrl.u32 %v587, 7
      %v589 = vsub.s32 0, %v588
      %v590 = vrot.slane %v585, %v589
      %v592 = vmul.f32 %v583, %v590
      %v593 = vmul.f32 %v584, %v590
      %v594 = vld [vmem:[%s4] sm:$0x1]
      %v596 = vlaneseq
      %v597 = vshrl.u32 %v596, 7
      %v598 = vsub.s32 0, %v597
      %v599 = vrot.slane %v594, %v598
      %v601 = vadd.f32 %v592, %v599
      %v602 = vadd.f32 %v593, %v599
      %v603 = vsel %vm538, %v601, 0.0
      %v604 = vsel %vm538, %v602, 0.0
      %v605 = vadd.f32 %v603, %v604
      %v606 = vrot.slane %v605, 4
      %v607 = vadd.f32 %v605, %v606
      %v608 = vrot.slane %v607, 2
      %v609 = vadd.f32 %v607, %v608
      %v610 = vrot.slane %v609, 1
      %v611 = vadd.f32 %v609, %v610
      %v612 = vmul.f32 %v611, 0.0625
      %v613 = vpack.c.bf16 %v612, %v612
      %v614 = vld [vmem:[%s5] sm:$0xf]
      %v615 = vld [vmem:[%s5 + $0x4] sm:$0xf]
      %v616 = vld [vmem:[%s5 + $0x8] sm:$0xf]
      %v617 = vld [vmem:[%s5 + $0xc] sm:$0xf]
      %v618 = vld [vmem:[%s5 + $0x10] sm:$0xf]
      %v619 = vld [vmem:[%s5 + $0x14] sm:$0xf]
      %v620 = vld [vmem:[%s5 + $0x18] sm:$0xf]
      %v621 = vld [vmem:[%s5 + $0x1c] sm:$0xf]
      %v622 = vld [vmem:[%s6] sm:$0x1]
      %v631 = vunpack.c.l.b16 %v614
      %v632 = vunpack.c.l.b16 %v615
      %v633 = vunpack.c.l.b16 %v616
      %v634 = vunpack.c.l.b16 %v617
      %v635 = vunpack.c.l.b16 %v618
      %v636 = vunpack.c.l.b16 %v619
      %v637 = vunpack.c.l.b16 %v620
      %v638 = vunpack.c.l.b16 %v621
      %v639 = vpack.c.b16 %v632, %v631
      %v640 = vpack.c.b16 %v634, %v633
      %v641 = vpack.c.b16 %v636, %v635
      %v642 = vpack.c.b16 %v638, %v637
      %v648 = vsel %vm538, %v613, 0
      %650 = vmatprep.subr.bf16.mxu0 0
      %651 = vmatpush1.bf16.msra.mxu0 %v639
      %652 = vmatprep.subr.bf16.mxu0 0
      %653 = vmatpush1.bf16.msra.mxu0 %v640
      %654 = vmatprep.subr.bf16.mxu0 0
      %655 = vmatpush1.bf16.msra.mxu0 %v641
      %656 = vmatprep.subr.bf16.mxu0 0
      %657 = vmatpush1.bf16.msra.mxu0 %v642
      %658 = vmatprep.subr.bf16.mxu0 0
      %659 = vmatpush1.bf16.msra.mxu0 0
      %660 = vmatprep.subr.bf16.mxu0 0
      %661 = vmatpush1.bf16.msra.mxu0 0
      %662 = vmatprep.subr.bf16.mxu0 0
      %663 = vmatpush1.bf16.msra.mxu0 0
      %664 = vmatprep.subr.bf16.mxu0 0
      %665 = vmatpush1.bf16.msra.mxu0 0
      %666 = vmatprep.subr.bf16.mxu0 0
      %667 = vmatpush1.bf16.msra.mxu0 0
      %668 = vmatprep.subr.bf16.mxu0 0
      %669 = vmatpush1.bf16.msra.mxu0 0
      %670 = vmatprep.subr.bf16.mxu0 0
      %671 = vmatpush1.bf16.msra.mxu0 0
      %672 = vmatprep.subr.bf16.mxu0 0
      %673 = vmatpush1.bf16.msra.mxu0 0
      %674 = vmatprep.subr.bf16.mxu0 0
      %675 = vmatpush1.bf16.msra.mxu0 0
      %676 = vmatprep.subr.bf16.mxu0 0
      %677 = vmatpush1.bf16.msra.mxu0 0
      %678 = vmatprep.subr.bf16.mxu0 0
      %679 = vmatpush1.bf16.msra.mxu0 0
      %680 = vmatprep.subr.bf16.mxu0 0
      %681 = vmatpush1.bf16.msra.mxu0 0
      %682 = vmatprep.mubr.bf16.mxu0 0
      %683 = vmatmul.mubr.bf16.gmra.mrb[0].mxu0 %v648
      %v684 = vpop.f32.mrb[0].mxu0
      %v685 = vadd.f32 %v622, %v684
      %v686 = vpop.f32.mrb[0].mxu0
      %v687 = vpop.f32.mrb[0].mxu0
      %v688 = vpop.f32.mrb[0].mxu0
      %689 = vdwg.mxu0
      %v690 = vmax.f32 %v685, 0.0
      %v691 = vpack.c.bf16 %v690, %v690
      %v692 = vld [vmem:[%s7] sm:$0xf]
      %v693 = vld [vmem:[%s8] sm:$0x1]
      %vm694 = vcmask 64512
      %v696 = vsel %vm694, %v691, 0
      %vm698 = vcmask 1043456
      %v700 = vsel %vm698, %v692, 0
      %702 = vmatprep.subr.bf16.mxu0 0
      %703 = vmatpush1.bf16.msra.mxu0 %v700
      %704 = vmatprep.subr.bf16.mxu0 0
      %705 = vmatpush1.bf16.msra.mxu0 0
      %706 = vmatprep.subr.bf16.mxu0 0
      %707 = vmatpush1.bf16.msra.mxu0 0
      %708 = vmatprep.subr.bf16.mxu0 0
      %709 = vmatpush1.bf16.msra.mxu0 0
      %710 = vmatprep.subr.bf16.mxu0 0
      %711 = vmatpush1.bf16.msra.mxu0 0
      %712 = vmatprep.subr.bf16.mxu0 0
      %713 = vmatpush1.bf16.msra.mxu0 0
      %714 = vmatprep.subr.bf16.mxu0 0
      %715 = vmatpush1.bf16.msra.mxu0 0
      %716 = vmatprep.subr.bf16.mxu0 0
      %717 = vmatpush1.bf16.msra.mxu0 0
      %718 = vmatprep.subr.bf16.mxu0 0
      %719 = vmatpush1.bf16.msra.mxu0 0
      %720 = vmatprep.subr.bf16.mxu0 0
      %721 = vmatpush1.bf16.msra.mxu0 0
      %722 = vmatprep.subr.bf16.mxu0 0
      %723 = vmatpush1.bf16.msra.mxu0 0
      %724 = vmatprep.subr.bf16.mxu0 0
      %725 = vmatpush1.bf16.msra.mxu0 0
      %726 = vmatprep.subr.bf16.mxu0 0
      %727 = vmatpush1.bf16.msra.mxu0 0
      %728 = vmatprep.subr.bf16.mxu0 0
      %729 = vmatpush1.bf16.msra.mxu0 0
      %730 = vmatprep.subr.bf16.mxu0 0
      %731 = vmatpush1.bf16.msra.mxu0 0
      %732 = vmatprep.subr.bf16.mxu0 0
      %733 = vmatpush1.bf16.msra.mxu0 0
      %734 = vmatprep.mubr.bf16.mxu0 0
      %735 = vmatmul.mubr.bf16.gmra.mrb[0].mxu0 %v696
      %v736 = vpop.f32.mrb[0].mxu0
      %v737 = vadd.f32 %v693, %v736
      %v738 = vpop.f32.mrb[0].mxu0
      %v739 = vpop.f32.mrb[0].mxu0
      %v740 = vpop.f32.mrb[0].mxu0
      %741 = vdwg.mxu0
      %v742 = vsub.f32 0.0, %v737
      %v743 = vmul.f32 %v742, 1.442695
      %v744 = vpow.pop %v743
      %v745 = vadd.f32 %v744, 1.0
      %v746 = vrcp.pop %v745
      %v747 = vmul.f32 1.0, %v746
      %v748 = vlaneseq
      %v749 = vshrl.u32 %v748, 7
      %v750 = vsub.s32 0, %v749
      %v751 = vrot.slane %v747, %v750
      %v752 = vmul.f32 %v601, %v751
      %v753 = vmul.f32 %v602, %v751
      %v754 = vpack.c.bf16 %v753, %v752
      %v755 = vld [vmem:[%s9] sm:$0xf]
      %v756 = vld [vmem:[%s9 + $0x4] sm:$0xf]
      %v757 = vld [vmem:[%s9 + $0x8] sm:$0xf]
      %v758 = vld [vmem:[%s9 + $0xc] sm:$0xf]
      %v759 = vld [vmem:[%s9 + $0x10] sm:$0xf]
      %v760 = vld [vmem:[%s9 + $0x14] sm:$0xf]
      %v761 = vld [vmem:[%s9 + $0x18] sm:$0xf]
      %v762 = vld [vmem:[%s9 + $0x1c] sm:$0xf]
      %v763 = vld [vmem:[%s10] sm:$0x1]
      %v765 = vlaneseq
      %v766 = vshrl.u32 %v765, 7
      %v767 = vsub.s32 0, %v766
      %v768 = vrot.slane %v763, %v767
      %v778 = vunpack.c.l.b16 %v755
      %v779 = vunpack.c.l.b16 %v756
      %v780 = vunpack.c.l.b16 %v757
      %v781 = vunpack.c.l.b16 %v758
      %v782 = vunpack.c.l.b16 %v759
      %v783 = vunpack.c.l.b16 %v760
      %v784 = vunpack.c.l.b16 %v761
      %v785 = vunpack.c.l.b16 %v762
      %v786 = vpack.c.b16 %v779, %v778
      %v787 = vpack.c.b16 %v781, %v780
      %v788 = vpack.c.b16 %v783, %v782
      %v789 = vpack.c.b16 %v785, %v784
      %v795 = vsel %vm538, %v754, 0
      %797 = vmatprep.subr.bf16.mxu0 0
      %798 = vmatpush1.bf16.msra.mxu0 %v786
      %799 = vmatprep.subr.bf16.mxu0 0
      %800 = vmatpush1.bf16.msra.mxu0 %v787
      %801 = vmatprep.subr.bf16.mxu0 0
      %802 = vmatpush1.bf16.msra.mxu0 %v788
      %803 = vmatprep.subr.bf16.mxu0 0
      %804 = vmatpush1.bf16.msra.mxu0 %v789
      %805 = vmatprep.subr.bf16.mxu0 0
      %806 = vmatpush1.bf16.msra.mxu0 0
      %807 = vmatprep.subr.bf16.mxu0 0
      %808 = vmatpush1.bf16.msra.mxu0 0
      %809 = vmatprep.subr.bf16.mxu0 0
      %810 = vmatpush1.bf16.msra.mxu0 0
      %811 = vmatprep.subr.bf16.mxu0 0
      %812 = vmatpush1.bf16.msra.mxu0 0
      %813 = vmatprep.subr.bf16.mxu0 0
      %814 = vmatpush1.bf16.msra.mxu0 0
      %815 = vmatprep.subr.bf16.mxu0 0
      %816 = vmatpush1.bf16.msra.mxu0 0
      %817 = vmatprep.subr.bf16.mxu0 0
      %818 = vmatpush1.bf16.msra.mxu0 0
      %819 = vmatprep.subr.bf16.mxu0 0
      %820 = vmatpush1.bf16.msra.mxu0 0
      %821 = vmatprep.subr.bf16.mxu0 0
      %822 = vmatpush1.bf16.msra.mxu0 0
      %823 = vmatprep.subr.bf16.mxu0 0
      %824 = vmatpush1.bf16.msra.mxu0 0
      %825 = vmatprep.subr.bf16.mxu0 0
      %826 = vmatpush1.bf16.msra.mxu0 0
      %827 = vmatprep.subr.bf16.mxu0 0
      %828 = vmatpush1.bf16.msra.mxu0 0
      %829 = vmatprep.mubr.bf16.mxu0 0
      %830 = vmatmul.mubr.bf16.gmra.mrb[0].mxu0 %v795
      %v831 = vpop.f32.mrb[0].mxu0
      %v832 = vadd.f32 %v768, %v831
      %v833 = vpop.f32.mrb[0].mxu0
      %v834 = vpop.f32.mrb[0].mxu0
      %v835 = vadd.f32 %v768, %v834
      %v836 = vpop.f32.mrb[0].mxu0
      %837 = vdwg.mxu0
      %v838 = vmax.f32 %v832, 0.0
      %v839 = vmax.f32 %v835, 0.0
      %v840 = vsel %vm538, %v838, 0.0
      %v841 = vsel %vm538, %v839, 0.0
      %v842 = vadd.f32 %v840, %v841
      %v843 = vrot.slane %v842, 4
      %v844 = vadd.f32 %v842, %v843
      %v845 = vrot.slane %v844, 2
      %v846 = vadd.f32 %v844, %v845
      %v847 = vrot.slane %v846, 1
      %v848 = vadd.f32 %v846, %v847
      %v849 = vmul.f32 %v848, 0.0625
      %v850 = vpack.c.bf16 %v849, %v849
      %v851 = vld [vmem:[%s11] sm:$0xf]
      %v852 = vld [vmem:[%s11 + $0x4] sm:$0xf]
      %v853 = vld [vmem:[%s11 + $0x8] sm:$0xf]
      %v854 = vld [vmem:[%s11 + $0xc] sm:$0xf]
      %v855 = vld [vmem:[%s11 + $0x10] sm:$0xf]
      %v856 = vld [vmem:[%s11 + $0x14] sm:$0xf]
      %v857 = vld [vmem:[%s11 + $0x18] sm:$0xf]
      %v858 = vld [vmem:[%s11 + $0x1c] sm:$0xf]
      %v859 = vld [vmem:[%s12] sm:$0x1]
      %v868 = vunpack.c.l.b16 %v851
      %v869 = vunpack.c.l.b16 %v852
      %v870 = vunpack.c.l.b16 %v853
      %v871 = vunpack.c.l.b16 %v854
      %v872 = vunpack.c.l.b16 %v855
      %v873 = vunpack.c.l.b16 %v856
      %v874 = vunpack.c.l.b16 %v857
      %v875 = vunpack.c.l.b16 %v858
      %v876 = vpack.c.b16 %v869, %v868
      %v877 = vpack.c.b16 %v871, %v870
      %v878 = vpack.c.b16 %v873, %v872
      %v879 = vpack.c.b16 %v875, %v874
      %v885 = vsel %vm538, %v850, 0
      %887 = vmatprep.subr.bf16.mxu0 0
      %888 = vmatpush1.bf16.msra.mxu0 %v876
      %889 = vmatprep.subr.bf16.mxu0 0
      %890 = vmatpush1.bf16.msra.mxu0 %v877
      %891 = vmatprep.subr.bf16.mxu0 0
      %892 = vmatpush1.bf16.msra.mxu0 %v878
      %893 = vmatprep.subr.bf16.mxu0 0
      %894 = vmatpush1.bf16.msra.mxu0 %v879
      %895 = vmatprep.subr.bf16.mxu0 0
      %896 = vmatpush1.bf16.msra.mxu0 0
      %897 = vmatprep.subr.bf16.mxu0 0
      %898 = vmatpush1.bf16.msra.mxu0 0
      %899 = vmatprep.subr.bf16.mxu0 0
      %900 = vmatpush1.bf16.msra.mxu0 0
      %901 = vmatprep.subr.bf16.mxu0 0
      %902 = vmatpush1.bf16.msra.mxu0 0
      %903 = vmatprep.subr.bf16.mxu0 0
      %904 = vmatpush1.bf16.msra.mxu0 0
      %905 = vmatprep.subr.bf16.mxu0 0
      %906 = vmatpush1.bf16.msra.mxu0 0
      %907 = vmatprep.subr.bf16.mxu0 0
      %908 = vmatpush1.bf16.msra.mxu0 0
      %909 = vmatprep.subr.bf16.mxu0 0
      %910 = vmatpush1.bf16.msra.mxu0 0
      %911 = vmatprep.subr.bf16.mxu0 0
      %912 = vmatpush1.bf16.msra.mxu0 0
      %913 = vmatprep.subr.bf16.mxu0 0
      %914 = vmatpush1.bf16.msra.mxu0 0
      %915 = vmatprep.subr.bf16.mxu0 0
      %916 = vmatpush1.bf16.msra.mxu0 0
      %917 = vmatprep.subr.bf16.mxu0 0
      %918 = vmatpush1.bf16.msra.mxu0 0
      %919 = vmatprep.mubr.bf16.mxu0 0
      %920 = vmatmul.mubr.bf16.gmra.mrb[0].mxu0 %v885
      %v921 = vpop.f32.mrb[0].mxu0
      %v922 = vadd.f32 %v859, %v921
      %v923 = vpop.f32.mrb[0].mxu0
      %v924 = vpop.f32.mrb[0].mxu0
      %v925 = vpop.f32.mrb[0].mxu0
      %926 = vdwg.mxu0
      %v927 = vmax.f32 %v922, 0.0
      %v928 = vpack.c.bf16 %v927, %v927
      %v929 = vld [vmem:[%s13] sm:$0xf]
      %v930 = vld [vmem:[%s14] sm:$0x1]
      %v932 = vsel %vm694, %v928, 0
      %v935 = vsel %vm698, %v929, 0
      %937 = vmatprep.subr.bf16.mxu0 0
      %938 = vmatpush1.bf16.msra.mxu0 %v935
      %939 = vmatprep.subr.bf16.mxu0 0
      %940 = vmatpush1.bf16.msra.mxu0 0
      %941 = vmatprep.subr.bf16.mxu0 0
      %942 = vmatpush1.bf16.msra.mxu0 0
      %943 = vmatprep.subr.bf16.mxu0 0
      %944 = vmatpush1.bf16.msra.mxu0 0
      %945 = vmatprep.subr.bf16.mxu0 0
      %946 = vmatpush1.bf16.msra.mxu0 0
      %947 = vmatprep.subr.bf16.mxu0 0
      %948 = vmatpush1.bf16.msra.mxu0 0
      %949 = vmatprep.subr.bf16.mxu0 0
      %950 = vmatpush1.bf16.msra.mxu0 0
      %951 = vmatprep.subr.bf16.mxu0 0
      %952 = vmatpush1.bf16.msra.mxu0 0
      %953 = vmatprep.subr.bf16.mxu0 0
      %954 = vmatpush1.bf16.msra.mxu0 0
      %955 = vmatprep.subr.bf16.mxu0 0
      %956 = vmatpush1.bf16.msra.mxu0 0
      %957 = vmatprep.subr.bf16.mxu0 0
      %958 = vmatpush1.bf16.msra.mxu0 0
      %959 = vmatprep.subr.bf16.mxu0 0
      %960 = vmatpush1.bf16.msra.mxu0 0
      %961 = vmatprep.subr.bf16.mxu0 0
      %962 = vmatpush1.bf16.msra.mxu0 0
      %963 = vmatprep.subr.bf16.mxu0 0
      %964 = vmatpush1.bf16.msra.mxu0 0
      %965 = vmatprep.subr.bf16.mxu0 0
      %966 = vmatpush1.bf16.msra.mxu0 0
      %967 = vmatprep.subr.bf16.mxu0 0
      %968 = vmatpush1.bf16.msra.mxu0 0
      %969 = vmatprep.mubr.bf16.mxu0 0
      %970 = vmatmul.mubr.bf16.gmra.mrb[0].mxu0 %v932
      %v971 = vpop.f32.mrb[0].mxu0
      %v972 = vadd.f32 %v930, %v971
      %v973 = vpop.f32.mrb[0].mxu0
      %v974 = vpop.f32.mrb[0].mxu0
      %v975 = vpop.f32.mrb[0].mxu0
      %976 = vdwg.mxu0
      %v977 = vsub.f32 0.0, %v972
      %v978 = vmul.f32 %v977, 1.442695
      %v979 = vpow.pop %v978
      %v980 = vadd.f32 %v979, 1.0
      %v981 = vrcp.pop %v980
      %v982 = vmul.f32 1.0, %v981
      %v983 = vlaneseq
      %v984 = vshrl.u32 %v983, 7
      %v985 = vsub.s32 0, %v984
      %v986 = vrot.slane %v982, %v985
      %v987 = vmul.f32 %v838, %v986
      %v988 = vmul.f32 %v839, %v986
      %989 = vst.msk [vmem:[%s494] sm:$0xff] %vm538, %v987
      %990 = vst.msk [vmem:[%s494 + $0x8] sm:$0xff] %vm538, %v988
      %p991 = scmp.lt.s32.totalorder %s26, 1
      %s992 = scalar_select %p991, %s26, 1
      %s993 = smul.addr %s992, 2
      %s994 = smul.addr %s993, 8
      %s995 = scalar_lea.vmem %s15, %s994
      // Predicated region
      $region81: #{tdnn_gru_se_forward.9} parent=79 // pred_check
        %p996 = pneg %p364
      $region82: #{tdnn_gru_se_forward.9} parent=79 // pred_check_branch
        %998 = sbr.rel (%p996) target = $region84
      $region83: #{tdnn_gru_se_forward.9} parent=79 // pred_region
        _
      $region84: #{tdnn_gru_se_forward.9} parent=79 // pred_fallthru
        _
    $region80: #{tdnn_gru_se_forward.9} parent=5 // pred_fallthru
      _
    %p999 = scmp.le.s32.totalorder 2, %s21
    // Predicated region
    $region85: #{tdnn_gru_se_forward.9} parent=5 // pred_check
      %p1000 = pneg %p999
    $region86: #{tdnn_gru_se_forward.9} parent=5 // pred_check_branch
      %1002 = sbr.rel (%p1000) target = $region88
    $region87: #{tdnn_gru_se_forward.9} parent=5 // pred_region
      %s1003 = ssub.s32 %s21, 2
      // Predicated region
      $region89: #{tdnn_gru_se_forward.9} parent=87 // pred_check
        %p1004 = pneg %p370
      $region90: #{tdnn_gru_se_forward.9} parent=87 // pred_check_branch
        %1006 = sbr.rel (%p1004) target = $region92
      $region91: #{tdnn_gru_se_forward.9} parent=87 // pred_region
        %p1007 = scmp.lt.s32.totalorder %s27, 1
        %s1008 = scalar_select %p1007, %s27, 1
        %s1009 = smul.addr %s1008, 2
        %s1010 = smul.addr %s1009, 8
        %s1011 = scalar_lea.vmem %s15, %s1010
      $region92: #{tdnn_gru_se_forward.9} parent=87 // pred_fallthru
        _
    $region88: #{tdnn_gru_se_forward.9} parent=5 // pred_fallthru
      _
  $region6: #{tdnn_gru_se_forward.9} parent=0 // loop_footer
    %s25 = sadd.s32 1, %s21
  $region7: #{tdnn_gru_se_forward.9} parent=0 // loop_footer_branch
    %20 = sbr.rel target = $region3
  $region8: #{tdnn_gru_se_forward.9} parent=0 // loop_exit
    _

// kernel: tdnn_gru_se_forward.10
$region0: #{tdnn_gru_se_forward.10}
  #allocation0 [shape = 'u32[]', space=smem, size = 0x4, offset = 0x4, fixed_abs, tag = 'smem constant byte address 0x4 - core index']
  #allocation1 [shape = 'u32[144,128]{1,0:T(1,128)}', space=vmem, size = 0x12000, scoped, tag = 'internal scratch']
  %s0 = inlined_call_operand.vmem [shape: f32[64,2,48], index: 0, kind: input, shape index: {}]
  %s1 = inlined_call_operand.vmem [shape: bf16[16,48], index: 1, kind: input, shape index: {}]
  %s2 = inlined_call_operand.vmem [shape: f32[1,48], index: 2, kind: input, shape index: {}]
  %s3 = inlined_call_operand.vmem [shape: bf16[16,48], index: 3, kind: input, shape index: {}]
  %s4 = inlined_call_operand.vmem [shape: f32[1,48], index: 4, kind: input, shape index: {}]
  %s5 = inlined_call_operand.vmem [shape: bf16[16,48], index: 5, kind: input, shape index: {}]
  %s6 = inlined_call_operand.vmem [shape: f32[1,48], index: 6, kind: input, shape index: {}]
  %s7 = inlined_call_operand.vmem [shape: f32[64,2,16], index: 7, kind: output, shape index: {}]
  %s8 = sld [smem:[#allocation0]]
  $region45: #{tdnn_gru_se_forward.10} parent=0
    _
  %s10 = ssub.s32 1, %s8
  %s11 = scalar_select 0, %s10, %s8
  // Predicated region
  $region2: #{tdnn_gru_se_forward.10} parent=0 // pred_check
    _
  $region3: #{tdnn_gru_se_forward.10} parent=0 // pred_check_branch
    %13 = sbr.rel (0) target = $region5
  $region4: #{tdnn_gru_se_forward.10} parent=0 // pred_region
    _
  $region5: #{tdnn_gru_se_forward.10} parent=0 // pred_fallthru
    _
  // Predicated region
  $region6: #{tdnn_gru_se_forward.10} parent=0 // pred_check
    _
  $region7: #{tdnn_gru_se_forward.10} parent=0 // pred_check_branch
    %15 = sbr.rel (0) target = $region9
  $region8: #{tdnn_gru_se_forward.10} parent=0 // pred_region
    _
  $region9: #{tdnn_gru_se_forward.10} parent=0 // pred_fallthru
    _
  // Predicated region
  $region10: #{tdnn_gru_se_forward.10} parent=0 // pred_check
    _
  $region11: #{tdnn_gru_se_forward.10} parent=0 // pred_check_branch
    %17 = sbr.rel (0) target = $region13
  $region12: #{tdnn_gru_se_forward.10} parent=0 // pred_region
    _
  $region13: #{tdnn_gru_se_forward.10} parent=0 // pred_fallthru
    _
  // Predicated region
  $region14: #{tdnn_gru_se_forward.10} parent=0 // pred_check
    _
  $region15: #{tdnn_gru_se_forward.10} parent=0 // pred_check_branch
    %19 = sbr.rel (0) target = $region17
  $region16: #{tdnn_gru_se_forward.10} parent=0 // pred_region
    _
  $region17: #{tdnn_gru_se_forward.10} parent=0 // pred_fallthru
    _
  // Predicated region
  $region18: #{tdnn_gru_se_forward.10} parent=0 // pred_check
    _
  $region19: #{tdnn_gru_se_forward.10} parent=0 // pred_check_branch
    %21 = sbr.rel (0) target = $region21
  $region20: #{tdnn_gru_se_forward.10} parent=0 // pred_region
    _
  $region21: #{tdnn_gru_se_forward.10} parent=0 // pred_fallthru
    _
  // Predicated region
  $region22: #{tdnn_gru_se_forward.10} parent=0 // pred_check
    _
  $region23: #{tdnn_gru_se_forward.10} parent=0 // pred_check_branch
    %23 = sbr.rel (0) target = $region25
  $region24: #{tdnn_gru_se_forward.10} parent=0 // pred_region
    _
  $region25: #{tdnn_gru_se_forward.10} parent=0 // pred_fallthru
    _
  // Predicated region
  $region26: #{tdnn_gru_se_forward.10} parent=0 // pred_check
    _
  $region27: #{tdnn_gru_se_forward.10} parent=0 // pred_check_branch
    %25 = sbr.rel (0) target = $region29
  $region28: #{tdnn_gru_se_forward.10} parent=0 // pred_region
    _
  $region29: #{tdnn_gru_se_forward.10} parent=0 // pred_fallthru
    _
  %v27 = vld [vmem:[%s0] sm:$0x3]
  %v28 = vld [vmem:[%s1] sm:$0xf]
  %v29 = vld [vmem:[%s1 + $0x4] sm:$0xf]
  %v30 = vld [vmem:[%s2] sm:$0x1]
  %v32 = vlaneseq
  %v33 = vshrl.u32 %v32, 7
  %v34 = vsub.s32 0, %v33
  %v35 = vrot.slane %v30, %v34
  %v39 = vunpack.c.l.b16 %v28
  %v40 = vunpack.c.l.b16 %v29
  %v41 = vpack.c.b16 %v40, %v39
  %vm43 = vcmask 130048
  %v45 = vsel %vm43, 0, 0
  %47 = vmatprep.subr.bf16.mxu0 0
  %48 = vmatpush1.bf16.msra.mxu0 %v41
  %49 = vmatprep.subr.bf16.mxu0 0
  %50 = vmatpush1.bf16.msra.mxu0 0
  %51 = vmatprep.subr.bf16.mxu0 0
  %52 = vmatpush1.bf16.msra.mxu0 0
  %53 = vmatprep.subr.bf16.mxu0 0
  %54 = vmatpush1.bf16.msra.mxu0 0
  %55 = vmatprep.subr.bf16.mxu0 0
  %56 = vmatpush1.bf16.msra.mxu0 0
  %57 = vmatprep.subr.bf16.mxu0 0
  %58 = vmatpush1.bf16.msra.mxu0 0
  %59 = vmatprep.subr.bf16.mxu0 0
  %60 = vmatpush1.bf16.msra.mxu0 0
  %61 = vmatprep.subr.bf16.mxu0 0
  %62 = vmatpush1.bf16.msra.mxu0 0
  %63 = vmatprep.subr.bf16.mxu0 0
  %64 = vmatpush1.bf16.msra.mxu0 0
  %65 = vmatprep.subr.bf16.mxu0 0
  %66 = vmatpush1.bf16.msra.mxu0 0
  %67 = vmatprep.subr.bf16.mxu0 0
  %68 = vmatpush1.bf16.msra.mxu0 0
  %69 = vmatprep.subr.bf16.mxu0 0
  %70 = vmatpush1.bf16.msra.mxu0 0
  %71 = vmatprep.subr.bf16.mxu0 0
  %72 = vmatpush1.bf16.msra.mxu0 0
  %73 = vmatprep.subr.bf16.mxu0 0
  %74 = vmatpush1.bf16.msra.mxu0 0
  %75 = vmatprep.subr.bf16.mxu0 0
  %76 = vmatpush1.bf16.msra.mxu0 0
  %77 = vmatprep.subr.bf16.mxu0 0
  %78 = vmatpush1.bf16.msra.mxu0 0
  %79 = vmatprep.mubr.bf16.mxu0 0
  %80 = vmatmul.mubr.bf16.gmra.mrb[0].mxu0 %v45
  %v81 = vpop.f32.mrb[0].mxu0
  %v82 = vadd.f32 %v35, %v81
  %v83 = vpop.f32.mrb[0].mxu0
  %v84 = vpop.f32.mrb[0].mxu0
  %v85 = vpop.f32.mrb[0].mxu0
  %86 = vdwg.mxu0
  %v87 = vadd.f32 %v27, %v82
  %v88 = vsub.f32 0.0, %v87
  %v89 = vmul.f32 %v88, 1.442695
  %v90 = vpow.pop %v89
  %v91 = vadd.f32 %v90, 1.0
  %v92 = vrcp.pop %v91
  %v93 = vmul.f32 1.0, %v92
  %95 = vrot.lane.b32.xlu0 %v82, 96
  %v96 = vpop.permute.xlu0 %95
  %v98 = vmul.f32 %v93, %v96
  %100 = vrot.lane.b32.xlu0 %v98, 32
  %v101 = vpop.permute.xlu0 %100
  %v103 = vadd.f32 %v27, %v101
  %v104 = vtanh.pop %v103
  %v105 = vsub.f32 1.0, %v93
  %107 = vrot.lane.b32.xlu0 %v104, 112
  %v108 = vpop.permute.xlu0 %107
  %v110 = vmul.f32 %v105, %v108
  %v111 = vmul.f32 %v93, 0.0
  %v112 = vadd.f32 %v110, %v111
  loop: start=0, step=1, limit=64
  $region30: #{tdnn_gru_se_forward.10} parent=0 // loop_pre_header
    _
  $region31: #{tdnn_gru_se_forward.10} parent=0 // loop_header
    %s114 = sphi 0, %s118
    %p115 = scmp.ge.s32.totalorder %s114, 64
    %v119 = vphi %v112, %v365
    %v120 = vphi 0.0, %v270
  $region32: #{tdnn_gru_se_forward.10} parent=0 // loop_header_branch
    %117 = sbr.rel (%p115) target = $region36
  $region33: #{tdnn_gru_se_forward.10} parent=0 // loop_body
    %v121 = vpack.c.bf16 %v119, %v119
    %v122 = vld [vmem:[%s3] sm:$0xf]
    %v123 = vld [vmem:[%s3 + $0x4] sm:$0xf]
    %v124 = vld [vmem:[%s4] sm:$0x1]
    %v126 = vlaneseq
    %v127 = vshrl.u32 %v126, 7
    %v128 = vsub.s32 0, %v127
    %v129 = vrot.slane %v124, %v128
    %132 = vrot.lane.b32.xlu0 %v121, 112
    %v133 = vpop.permute.xlu0 %132
    %v136 = vunpack.c.l.b16 %v122
    %v137 = vunpack.c.l.b16 %v123
    %v138 = vpack.c.b16 %v137, %v136
    %v141 = vsel %vm43, %v133, 0
    %143 = vmatprep.subr.bf16.mxu0 0
    %144 = vmatpush1.bf16.msra.mxu0 %v138
    %145 = vmatprep.subr.bf16.mxu0 0
    %146 = vmatpush1.bf16.msra.mxu0 0
    %147 = vmatprep.subr.bf16.mxu0 0
    %148 = vmatpush1.bf16.msra.mxu0 0
    %149 = vmatprep.subr.bf16.mxu0 0
    %150 = vmatpush1.bf16.msra.mxu0 0
    %151 = vmatprep.subr.bf16.mxu0 0
    %152 = vmatpush1.bf16.msra.mxu0 0
    %153 = vmatprep.subr.bf16.mxu0 0
    %154 = vmatpush1.bf16.msra.mxu0 0
    %155 = vmatprep.subr.bf16.mxu0 0
    %156 = vmatpush1.bf16.msra.mxu0 0
    %157 = vmatprep.subr.bf16.mxu0 0
    %158 = vmatpush1.bf16.msra.mxu0 0
    %159 = vmatprep.subr.bf16.mxu0 0
    %160 = vmatpush1.bf16.msra.mxu0 0
    %161 = vmatprep.subr.bf16.mxu0 0
    %162 = vmatpush1.bf16.msra.mxu0 0
    %163 = vmatprep.subr.bf16.mxu0 0
    %164 = vmatpush1.bf16.msra.mxu0 0
    %165 = vmatprep.subr.bf16.mxu0 0
    %166 = vmatpush1.bf16.msra.mxu0 0
    %167 = vmatprep.subr.bf16.mxu0 0
    %168 = vmatpush1.bf16.msra.mxu0 0
    %169 = vmatprep.subr.bf16.mxu0 0
    %170 = vmatpush1.bf16.msra.mxu0 0
    %171 = vmatprep.subr.bf16.mxu0 0
    %172 = vmatpush1.bf16.msra.mxu0 0
    %173 = vmatprep.subr.bf16.mxu0 0
    %174 = vmatpush1.bf16.msra.mxu0 0
    %175 = vmatprep.mubr.bf16.mxu0 0
    %176 = vmatmul.mubr.bf16.gmra.mrb[0].mxu0 %v141
    %v177 = vpop.f32.mrb[0].mxu0
    %v178 = vadd.f32 %v129, %v177
    %v179 = vpop.f32.mrb[0].mxu0
    %v180 = vpop.f32.mrb[0].mxu0
    %v181 = vpop.f32.mrb[0].mxu0
    %182 = vdwg.mxu0
    %v183 = vpack.c.bf16 %v120, %v120
    %v184 = vld [vmem:[%s5] sm:$0xf]
    %v185 = vld [vmem:[%s5 + $0x4] sm:$0xf]
    %v186 = vld [vmem:[%s6] sm:$0x1]
    %v188 = vlaneseq
    %v189 = vshrl.u32 %v188, 7
    %v190 = vsub.s32 0, %v189
    %v191 = vrot.slane %v186, %v190
    %194 = vrot.lane.b32.xlu0 %v183, 112
    %v195 = vpop.permute.xlu0 %194
    %v198 = vunpack.c.l.b16 %v184
    %v199 = vunpack.c.l.b16 %v185
    %v200 = vpack.c.b16 %v199, %v198
    %v203 = vsel %vm43, %v195, 0
    %205 = vmatprep.subr.bf16.mxu0 0
    %206 = vmatpush1.bf16.msra.mxu0 %v200
    %207 = vmatprep.subr.bf16.mxu0 0
    %208 = vmatpush1.bf16.msra.mxu0 0
    %209 = vmatprep.subr.bf16.mxu0 0
    %210 = vmatpush1.bf16.msra.mxu0 0
    %211 = vmatprep.subr.bf16.mxu0 0
    %212 = vmatpush1.bf16.msra.mxu0 0
    %213 = vmatprep.subr.bf16.mxu0 0
    %214 = vmatpush1.bf16.msra.mxu0 0
    %215 = vmatprep.subr.bf16.mxu0 0
    %216 = vmatpush1.bf16.msra.mxu0 0
    %217 = vmatprep.subr.bf16.mxu0 0
    %218 = vmatpush1.bf16.msra.mxu0 0
    %219 = vmatprep.subr.bf16.mxu0 0
    %220 = vmatpush1.bf16.msra.mxu0 0
    %221 = vmatprep.subr.bf16.mxu0 0
    %222 = vmatpush1.bf16.msra.mxu0 0
    %223 = vmatprep.subr.bf16.mxu0 0
    %224 = vmatpush1.bf16.msra.mxu0 0
    %225 = vmatprep.subr.bf16.mxu0 0
    %226 = vmatpush1.bf16.msra.mxu0 0
    %227 = vmatprep.subr.bf16.mxu0 0
    %228 = vmatpush1.bf16.msra.mxu0 0
    %229 = vmatprep.subr.bf16.mxu0 0
    %230 = vmatpush1.bf16.msra.mxu0 0
    %231 = vmatprep.subr.bf16.mxu0 0
    %232 = vmatpush1.bf16.msra.mxu0 0
    %233 = vmatprep.subr.bf16.mxu0 0
    %234 = vmatpush1.bf16.msra.mxu0 0
    %235 = vmatprep.subr.bf16.mxu0 0
    %236 = vmatpush1.bf16.msra.mxu0 0
    %237 = vmatprep.mubr.bf16.mxu0 0
    %238 = vmatmul.mubr.bf16.gmra.mrb[0].mxu0 %v203
    %v239 = vpop.f32.mrb[0].mxu0
    %v240 = vadd.f32 %v191, %v239
    %v241 = vpop.f32.mrb[0].mxu0
    %v242 = vpop.f32.mrb[0].mxu0
    %v243 = vpop.f32.mrb[0].mxu0
    %244 = vdwg.mxu0
    %v245 = vadd.f32 %v178, %v240
    %v246 = vsub.f32 0.0, %v245
    %v247 = vmul.f32 %v246, 1.442695
    %v248 = vpow.pop %v247
    %v249 = vadd.f32 %v248, 1.0
    %v250 = vrcp.pop %v249
    %v251 = vmul.f32 1.0, %v250
    %253 = vrot.lane.b32.xlu0 %v240, 96
    %v254 = vpop.permute.xlu0 %253
    %v256 = vmul.f32 %v251, %v254
    %258 = vrot.lane.b32.xlu0 %v256, 32
    %v259 = vpop.permute.xlu0 %258
    %v261 = vadd.f32 %v178, %v259
    %v262 = vtanh.pop %v261
    %v263 = vsub.f32 1.0, %v251
    %265 = vrot.lane.b32.xlu0 %v262, 112
    %v266 = vpop.permute.xlu0 %265
    %v268 = vmul.f32 %v263, %v266
    %v269 = vmul.f32 %v251, %v120
    %v270 = vadd.f32 %v268, %v269
    %272 = vrot.lane.b32.xlu0 %v270, 112
    %v273 = vpop.permute.xlu0 %272
    %s275 = smul.u32 %s114, 2
    %s276 = scalar_lea.vmem %s7, %s275
    %vm277 = vcmask 123904
    %278 = vst.msk [vmem:[%s276] sm:$0x3] %vm277, %v273
    %s279 = sadd.s32 %s114, 1
    %p280 = scmp.lt.s32.totalorder %s279, 63
    %s281 = scalar_select %p280, %s279, 63
    %s282 = smul.u32 %s281, 2
    %s283 = scalar_lea.vmem %s0, %s282
    %v284 = vld [vmem:[%s283] sm:$0x3]
    %v285 = vld [vmem:[%s1] sm:$0xf]
    %v286 = vld [vmem:[%s1 + $0x4] sm:$0xf]
    %v287 = vld [vmem:[%s2] sm:$0x1]
    %v289 = vlaneseq
    %v290 = vshrl.u32 %v289, 7
    %v291 = vsub.s32 0, %v290
    %v292 = vrot.slane %v287, %v291
    %v296 = vunpack.c.l.b16 %v285
    %v297 = vunpack.c.l.b16 %v286
    %v298 = vpack.c.b16 %v297, %v296
    %300 = vmatprep.subr.bf16.mxu0 0
    %301 = vmatpush1.bf16.msra.mxu0 %v298
    %302 = vmatprep.subr.bf16.mxu0 0
    %303 = vmatpush1.bf16.msra.mxu0 0
    %304 = vmatprep.subr.bf16.mxu0 0
    %305 = vmatpush1.bf16.msra.mxu0 0
    %306 = vmatprep.subr.bf16.mxu0 0
    %307 = vmatpush1.bf16.msra.mxu0 0
    %308 = vmatprep.subr.bf16.mxu0 0
    %309 = vmatpush1.bf16.msra.mxu0 0
    %310 = vmatprep.subr.bf16.mxu0 0
    %311 = vmatpush1.bf16.msra.mxu0 0
    %312 = vmatprep.subr.bf16.mxu0 0
    %313 = vmatpush1.bf16.msra.mxu0 0
    %314 = vmatprep.subr.bf16.mxu0 0
    %315 = vmatpush1.bf16.msra.mxu0 0
    %316 = vmatprep.subr.bf16.mxu0 0
    %317 = vmatpush1.bf16.msra.mxu0 0
    %318 = vmatprep.subr.bf16.mxu0 0
    %319 = vmatpush1.bf16.msra.mxu0 0
    %320 = vmatprep.subr.bf16.mxu0 0
    %321 = vmatpush1.bf16.msra.mxu0 0
    %322 = vmatprep.subr.bf16.mxu0 0
    %323 = vmatpush1.bf16.msra.mxu0 0
    %324 = vmatprep.subr.bf16.mxu0 0
    %325 = vmatpush1.bf16.msra.mxu0 0
    %326 = vmatprep.subr.bf16.mxu0 0
    %327 = vmatpush1.bf16.msra.mxu0 0
    %328 = vmatprep.subr.bf16.mxu0 0
    %329 = vmatpush1.bf16.msra.mxu0 0
    %330 = vmatprep.subr.bf16.mxu0 0
    %331 = vmatpush1.bf16.msra.mxu0 0
    %332 = vmatprep.mubr.bf16.mxu0 0
    %333 = vmatmul.mubr.bf16.gmra.mrb[0].mxu0 %v141
    %v334 = vpop.f32.mrb[0].mxu0
    %v335 = vadd.f32 %v292, %v334
    %v336 = vpop.f32.mrb[0].mxu0
    %v337 = vpop.f32.mrb[0].mxu0
    %v338 = vpop.f32.mrb[0].mxu0
    %339 = vdwg.mxu0
    %v340 = vadd.f32 %v284, %v335
    %v341 = vsub.f32 0.0, %v340
    %v342 = vmul.f32 %v341, 1.442695
    %v343 = vpow.pop %v342
    %v344 = vadd.f32 %v343, 1.0
    %v345 = vrcp.pop %v344
    %v346 = vmul.f32 1.0, %v345
    %348 = vrot.lane.b32.xlu0 %v335, 96
    %v349 = vpop.permute.xlu0 %348
    %v351 = vmul.f32 %v346, %v349
    %353 = vrot.lane.b32.xlu0 %v351, 32
    %v354 = vpop.permute.xlu0 %353
    %v356 = vadd.f32 %v284, %v354
    %v357 = vtanh.pop %v356
    %v358 = vsub.f32 1.0, %v346
    %360 = vrot.lane.b32.xlu0 %v357, 112
    %v361 = vpop.permute.xlu0 %360
    %v363 = vmul.f32 %v358, %v361
    %v364 = vmul.f32 %v346, %v119
    %v365 = vadd.f32 %v363, %v364
  $region34: #{tdnn_gru_se_forward.10} parent=0 // loop_footer
    %s118 = sadd.s32 1, %s114
  $region35: #{tdnn_gru_se_forward.10} parent=0 // loop_footer_branch
    %113 = sbr.rel target = $region31
  $region36: #{tdnn_gru_se_forward.10} parent=0 // loop_exit
    _
  // Predicated region
  $region37: #{tdnn_gru_se_forward.10} parent=0 // pred_check
    _
  $region38: #{tdnn_gru_se_forward.10} parent=0 // pred_check_branch
    %367 = sbr.rel (0) target = $region40
  $region39: #{tdnn_gru_se_forward.10} parent=0 // pred_region
    _
  $region40: #{tdnn_gru_se_forward.10} parent=0 // pred_fallthru
    _
  // Predicated region
  $region41: #{tdnn_gru_se_forward.10} parent=0 // pred_check
    _
  $region42: #{tdnn_gru_se_forward.10} parent=0 // pred_check_branch
    %369 = sbr.rel (0) target = $region44
  $region43: #{tdnn_gru_se_forward.10} parent=0 // pred_region
    _
  $region44: #{tdnn_gru_se_forward.10} parent=0 // pred_fallthru
    _

// kernel: tdnn_gru_se_forward.11
$region0: #{tdnn_gru_se_forward.11}
  #allocation0 [shape = 'u32[]', space=smem, size = 0x4, offset = 0x4, fixed_abs, tag = 'smem constant byte address 0x4 - core index']
  #allocation1 [shape = 'u32[144,128]{1,0:T(1,128)}', space=vmem, size = 0x12000, scoped, tag = 'internal scratch']
  %s0 = inlined_call_operand.vmem [shape: f32[2,16,64], index: 0, kind: input, shape index: {}]
  %s1 = inlined_call_operand.vmem [shape: bf16[64,32], index: 1, kind: input, shape index: {}]
  %s2 = inlined_call_operand.vmem [shape: f32[1,32], index: 2, kind: input, shape index: {}]
  %s3 = inlined_call_operand.vmem [shape: bf16[32,64], index: 3, kind: input, shape index: {}]
  %s4 = inlined_call_operand.vmem [shape: f32[1,64], index: 4, kind: input, shape index: {}]
  %s5 = inlined_call_operand.vmem [shape: bf16[128,32], index: 5, kind: input, shape index: {}]
  %s6 = inlined_call_operand.vmem [shape: f32[1,32], index: 6, kind: input, shape index: {}]
  %s7 = inlined_call_operand.vmem [shape: bf16[32,10], index: 7, kind: input, shape index: {}]
  %s8 = inlined_call_operand.vmem [shape: f32[1,10], index: 8, kind: input, shape index: {}]
  %s9 = inlined_call_operand.hbm [shape: f32[2,1,10], index: 9, kind: output, shape index: {}]
  %s10 = sld [smem:[#allocation0]]
  $region69: #{tdnn_gru_se_forward.11} parent=0
    _
  %s12 = ssub.s32 1, %s10
  %s13 = scalar_select 0, %s12, %s10
  $region1: #{tdnn_gru_se_forward.11} parent=0
    #allocation2 [shape = 'u8[1024]{0}', space=vmem, size = 0x400, scoped, tag = 'output window, operand 0']
    #allocation3 [shape = 's32[2]{0}', space=sflag, size = 0x8, scoped, tag = 'scoped memory for tdnn_gru_se_forward.11']
    %14 = vsyncpa [#allocation3], 0
    %s15 = scalar_lea.sflag [#allocation3], 1
    %16 = vsyncpa %s15, 0
    loop: start=0, step=1, limit=4
    $region2: #{tdnn_gru_se_forward.11} parent=1 // loop_pre_header
      _
    $region3: #{tdnn_gru_se_forward.11} parent=1 // loop_header
      %s18 = sphi 0, %s22
      %p19 = scmp.ge.s32.totalorder %s18, 4
      %s28 = sphi 0, %s30
      %s31 = sphi 0, %s28
      %s32 = sphi 0, %s31
      %s48 = sphi 0, %s32
      %s52 = sphi 0, %s52
      %s54 = sphi 0, %s52
      %s55 = sphi 0, %s54
      %s69 = sphi 0, %s55
      %s73 = sphi 0, %s73
      %s75 = sphi 0, %s73
      %s76 = sphi 0, %s75
      %s90 = sphi 0, %s76
      %s94 = sphi 0, %s94
      %s96 = sphi 0, %s94
      %s97 = sphi 0, %s96
      %s111 = sphi 0, %s97
      %s115 = sphi 0, %s115
      %s117 = sphi 0, %s115
      %s118 = sphi 0, %s117
      %s132 = sphi 0, %s118
      %s136 = sphi 0, %s136
      %s138 = sphi 0, %s136
      %s139 = sphi 0, %s138
      %s153 = sphi 0, %s139
      %s157 = sphi 0, %s157
      %s159 = sphi 0, %s157
      %s160 = sphi 0, %s159
      %s174 = sphi 0, %s160
      %s178 = sphi 0, %s178
      %s180 = sphi 0, %s178
      %s181 = sphi 0, %s180
      %s195 = sphi 0, %s181
      %s199 = sphi 0, %s199
      %s201 = sphi 0, %s199
      %s202 = sphi 0, %s201
      %s216 = sphi 0, %s202
      %s222 = sphi 0, %s224
      %s225 = sphi 0, %s222
      %s226 = sphi 0, %s225
      %s242 = sphi 0, %s226
    $region4: #{tdnn_gru_se_forward.11} parent=1 // loop_header_branch
      %21 = sbr.rel (%p19) target = $region8
    $region5: #{tdnn_gru_se_forward.11} parent=1 // loop_body
      %s23 = ssub.s32 %s18, 1
      %s24 = ssub.s32 %s18, 2
      %s25 = sadd.s32 %s18, 1
      %s26 = ssub.s32 %s18, %s25
      %p27 = scmp.eq.s32.totalorder %s26, 0
      %s29 = sadd.s32 %s28, 1
      %s30 = scalar_select %p27, %s28, %s29
      %p33 = pneg %p27
      %p34 = scmp.eq.s32.totalorder %s18, 1
      %p35 = por %p33, %p34
      %p36 = scmp.ne.s32.totalorder %s28, %s31
      %p37 = scmp.eq.s32.totalorder %s18, 0
      %p38 = por %p36, %p37
      %p39 = scmp.ne.s32.totalorder %s28, %s31
      %p40 = scmp.eq.s32.totalorder %s23, 1
      %p41 = por %p39, %p40
      %p42 = scmp.ne.s32.totalorder %s31, %s32
      %p43 = scmp.eq.s32.totalorder %s23, 0
      %p44 = por %p42, %p43
      %p45 = scmp.ne.s32.totalorder %s31, %s32
      %p46 = scmp.eq.s32.totalorder %s24, 1
      %p47 = por %p45, %p46
      %p49 = scmp.ne.s32.totalorder %s32, %s48
      %p50 = scmp.eq.s32.totalorder %s24, 0
      %p51 = por %p49, %p50
      %s53 = sadd.s32 %s52, 1
      %p56 = scmp.eq.s32.totalorder %s18, 1
      %p57 = scmp.ne.s32.totalorder %s52, %s54
      %p58 = scmp.eq.s32.totalorder %s18, 0
      %p59 = por %p57, %p58
      %p60 = scmp.ne.s32.totalorder %s52, %s54
      %p61 = scmp.eq.s32.totalorder %s23, 1
      %p62 = por %p60, %p61
      %p63 = scmp.ne.s32.totalorder %s54, %s55
      %p64 = scmp.eq.s32.totalorder %s23, 0
      %p65 = por %p63, %p64
      %p66 = scmp.ne.s32.totalorder %s54, %s55
      %p67 = scmp.eq.s32.totalorder %s24, 1
      %p68 = por %p66, %p67
      %p70 = scmp.ne.s32.totalorder %s55, %s69
      %p71 = scmp.eq.s32.totalorder %s24, 0
      %p72 = por %p70, %p71
      %s74 = sadd.s32 %s73, 1
      %p77 = scmp.eq.s32.totalorder %s18, 1
      %p78 = scmp.ne.s32.totalorder %s73, %s75
      %p79 = scmp.eq.s32.totalorder %s18, 0
      %p80 = por %p78, %p79
      %p81 = scmp.ne.s32.totalorder %s73, %s75
      %p82 = scmp.eq.s32.totalorder %s23, 1
      %p83 = por %p81, %p82
      %p84 = scmp.ne.s32.totalorder %s75, %s76
      %p85 = scmp.eq.s32.totalorder %s23, 0
      %p86 = por %p84, %p85
      %p87 = scmp.ne.s32.totalorder %s75, %s76
      %p88 = scmp.eq.s32.totalorder %s24, 1
      %p89 = por %p87, %p88
      %p91 = scmp.ne.s32.totalorder %s76, %s90
      %p92 = scmp.eq.s32.totalorder %s24, 0
      %p93 = por %p91, %p92
      %s95 = sadd.s32 %s94, 1
      %p98 = scmp.eq.s32.totalorder %s18, 1
      %p99 = scmp.ne.s32.totalorder %s94, %s96
      %p100 = scmp.eq.s32.totalorder %s18, 0
      %p101 = por %p99, %p100
      %p102 = scmp.ne.s32.totalorder %s94, %s96
      %p103 = scmp.eq.s32.totalorder %s23, 1
      %p104 = por %p102, %p103
      %p105 = scmp.ne.s32.totalorder %s96, %s97
      %p106 = scmp.eq.s32.totalorder %s23, 0
      %p107 = por %p105, %p106
      %p108 = scmp.ne.s32.totalorder %s96, %s97
      %p109 = scmp.eq.s32.totalorder %s24, 1
      %p110 = por %p108, %p109
      %p112 = scmp.ne.s32.totalorder %s97, %s111
      %p113 = scmp.eq.s32.totalorder %s24, 0
      %p114 = por %p112, %p113
      %s116 = sadd.s32 %s115, 1
      %p119 = scmp.eq.s32.totalorder %s18, 1
      %p120 = scmp.ne.s32.totalorder %s115, %s117
      %p121 = scmp.eq.s32.totalorder %s18, 0
      %p122 = por %p120, %p121
      %p123 = scmp.ne.s32.totalorder %s115, %s117
      %p124 = scmp.eq.s32.totalorder %s23, 1
      %p125 = por %p123, %p124
      %p126 = scmp.ne.s32.totalorder %s117, %s118
      %p127 = scmp.eq.s32.totalorder %s23, 0
      %p128 = por %p126, %p127
      %p129 = scmp.ne.s32.totalorder %s117, %s118
      %p130 = scmp.eq.s32.totalorder %s24, 1
      %p131 = por %p129, %p130
      %p133 = scmp.ne.s32.totalorder %s118, %s132
      %p134 = scmp.eq.s32.totalorder %s24, 0
      %p135 = por %p133, %p134
      %s137 = sadd.s32 %s136, 1
      %p140 = scmp.eq.s32.totalorder %s18, 1
      %p141 = scmp.ne.s32.totalorder %s136, %s138
      %p142 = scmp.eq.s32.totalorder %s18, 0
      %p143 = por %p141, %p142
      %p144 = scmp.ne.s32.totalorder %s136, %s138
      %p145 = scmp.eq.s32.totalorder %s23, 1
      %p146 = por %p144, %p145
      %p147 = scmp.ne.s32.totalorder %s138, %s139
      %p148 = scmp.eq.s32.totalorder %s23, 0
      %p149 = por %p147, %p148
      %p150 = scmp.ne.s32.totalorder %s138, %s139
      %p151 = scmp.eq.s32.totalorder %s24, 1
      %p152 = por %p150, %p151
      %p154 = scmp.ne.s32.totalorder %s139, %s153
      %p155 = scmp.eq.s32.totalorder %s24, 0
      %p156 = por %p154, %p155
      %s158 = sadd.s32 %s157, 1
      %p161 = scmp.eq.s32.totalorder %s18, 1
      %p162 = scmp.ne.s32.totalorder %s157, %s159
      %p163 = scmp.eq.s32.totalorder %s18, 0
      %p164 = por %p162, %p163
      %p165 = scmp.ne.s32.totalorder %s157, %s159
      %p166 = scmp.eq.s32.totalorder %s23, 1
      %p167 = por %p165, %p166
      %p168 = scmp.ne.s32.totalorder %s159, %s160
      %p169 = scmp.eq.s32.totalorder %s23, 0
      %p170 = por %p168, %p169
      %p171 = scmp.ne.s32.totalorder %s159, %s160
      %p172 = scmp.eq.s32.totalorder %s24, 1
      %p173 = por %p171, %p172
      %p175 = scmp.ne.s32.totalorder %s160, %s174
      %p176 = scmp.eq.s32.totalorder %s24, 0
      %p177 = por %p175, %p176
      %s179 = sadd.s32 %s178, 1
      %p182 = scmp.eq.s32.totalorder %s18, 1
      %p183 = scmp.ne.s32.totalorder %s178, %s180
      %p184 = scmp.eq.s32.totalorder %s18, 0
      %p185 = por %p183, %p184
      %p186 = scmp.ne.s32.totalorder %s178, %s180
      %p187 = scmp.eq.s32.totalorder %s23, 1
      %p188 = por %p186, %p187
      %p189 = scmp.ne.s32.totalorder %s180, %s181
      %p190 = scmp.eq.s32.totalorder %s23, 0
      %p191 = por %p189, %p190
      %p192 = scmp.ne.s32.totalorder %s180, %s181
      %p193 = scmp.eq.s32.totalorder %s24, 1
      %p194 = por %p192, %p193
      %p196 = scmp.ne.s32.totalorder %s181, %s195
      %p197 = scmp.eq.s32.totalorder %s24, 0
      %p198 = por %p196, %p197
      %s200 = sadd.s32 %s199, 1
      %p203 = scmp.eq.s32.totalorder %s18, 1
      %p204 = scmp.ne.s32.totalorder %s199, %s201
      %p205 = scmp.eq.s32.totalorder %s18, 0
      %p206 = por %p204, %p205
      %p207 = scmp.ne.s32.totalorder %s199, %s201
      %p208 = scmp.eq.s32.totalorder %s23, 1
      %p209 = por %p207, %p208
      %p210 = scmp.ne.s32.totalorder %s201, %s202
      %p211 = scmp.eq.s32.totalorder %s23, 0
      %p212 = por %p210, %p211
      %p213 = scmp.ne.s32.totalorder %s201, %s202
      %p214 = scmp.eq.s32.totalorder %s24, 1
      %p215 = por %p213, %p214
      %p217 = scmp.ne.s32.totalorder %s202, %s216
      %p218 = scmp.eq.s32.totalorder %s24, 0
      %p219 = por %p217, %p218
      %s220 = ssub.s32 %s18, %s25
      %p221 = scmp.eq.s32.totalorder %s220, 0
      %s223 = sadd.s32 %s222, 1
      %s224 = scalar_select %p221, %s222, %s223
      %p227 = pneg %p221
      %p228 = scmp.eq.s32.totalorder %s18, 1
      %p229 = por %p227, %p228
      %p230 = scmp.ne.s32.totalorder %s222, %s225
      %p231 = scmp.eq.s32.totalorder %s18, 0
      %p232 = por %p230, %p231
      %p233 = scmp.ne.s32.totalorder %s222, %s225
      %p234 = scmp.eq.s32.totalorder %s23, 1
      %p235 = por %p233, %p234
      %p236 = scmp.ne.s32.totalorder %s225, %s226
      %p237 = scmp.eq.s32.totalorder %s23, 0
      %p238 = por %p236, %p237
      %p239 = scmp.ne.s32.totalorder %s225, %s226
      %p240 = scmp.eq.s32.totalorder %s24, 1
      %p241 = por %p239, %p240
      %p243 = scmp.ne.s32.totalorder %s226, %s242
      %p244 = scmp.eq.s32.totalorder %s24, 0
      %p245 = por %p243, %p244
      %p246 = scmp.le.s32.totalorder 1, %s18
      %p247 = scmp.lt.s32.totalorder %s18, 3
      %p248 = pnand %p246, %p247
      %p249 = pneg %p248
      // Predicated region
      $region9: #{tdnn_gru_se_forward.11} parent=5 // pred_check
        _
      $region10: #{tdnn_gru_se_forward.11} parent=5 // pred_check_branch
        %251 = sbr.rel (%p248) target = $region12
      $region11: #{tdnn_gru_se_forward.11} parent=5 // pred_region
        %s252 = ssub.s32 %s18, 1
        // Predicated region
        $region13: #{tdnn_gru_se_forward.11} parent=11 // pred_check
          %p253 = pneg %p65
        $region14: #{tdnn_gru_se_forward.11} parent=11 // pred_check_branch
          %255 = sbr.rel (%p253) target = $region16
        $region15: #{tdnn_gru_se_forward.11} parent=11 // pred_region
          _
        $region16: #{tdnn_gru_se_forward.11} parent=11 // pred_fallthru
          _
        // Predicated region
        $region17: #{tdnn_gru_se_forward.11} parent=11 // pred_check
          %p256 = pneg %p86
        $region18: #{tdnn_gru_se_forward.11} parent=11 // pred_check_branch
          %258 = sbr.rel (%p256) target = $region20
        $region19: #{tdnn_gru_se_forward.11} parent=11 // pred_region
          _
        $region20: #{tdnn_gru_se_forward.11} parent=11 // pred_fallthru
          _
        // Predicated region
        $region21: #{tdnn_gru_se_forward.11} parent=11 // pred_check
          %p259 = pneg %p107
        $region22: #{tdnn_gru_se_forward.11} parent=11 // pred_check_branch
          %261 = sbr.rel (%p259) target = $region24
        $region23: #{tdnn_gru_se_forward.11} parent=11 // pred_region
          _
        $region24: #{tdnn_gru_se_forward.11} parent=11 // pred_fallthru
          _
        // Predicated region
        $region25: #{tdnn_gru_se_forward.11} parent=11 // pred_check
          %p262 = pneg %p128
        $region26: #{tdnn_gru_se_forward.11} parent=11 // pred_check_branch
          %264 = sbr.rel (%p262) target = $region28
        $region27: #{tdnn_gru_se_forward.11} parent=11 // pred_region
          _
        $region28: #{tdnn_gru_se_forward.11} parent=11 // pred_fallthru
          _
        // Predicated region
        $region29: #{tdnn_gru_se_forward.11} parent=11 // pred_check
          %p265 = pneg %p149
        $region30: #{tdnn_gru_se_forward.11} parent=11 // pred_check_branch
          %267 = sbr.rel (%p265) target = $region32
        $region31: #{tdnn_gru_se_forward.11} parent=11 // pred_region
          _
        $region32: #{tdnn_gru_se_forward.11} parent=11 // pred_fallthru
          _
        // Predicated region
        $region33: #{tdnn_gru_se_forward.11} parent=11 // pred_check
          %p268 = pneg %p170
        $region34: #{tdnn_gru_se_forward.11} parent=11 // pred_check_branch
          %270 = sbr.rel (%p268) target = $region36
        $region35: #{tdnn_gru_se_forward.11} parent=11 // pred_region
          _
        $region36: #{tdnn_gru_se_forward.11} parent=11 // pred_fallthru
          _
        // Predicated region
        $region37: #{tdnn_gru_se_forward.11} parent=11 // pred_check
          %p271 = pneg %p191
        $region38: #{tdnn_gru_se_forward.11} parent=11 // pred_check_branch
          %273 = sbr.rel (%p271) target = $region40
        $region39: #{tdnn_gru_se_forward.11} parent=11 // pred_region
          _
        $region40: #{tdnn_gru_se_forward.11} parent=11 // pred_fallthru
          _
        // Predicated region
        $region41: #{tdnn_gru_se_forward.11} parent=11 // pred_check
          %p274 = pneg %p212
        $region42: #{tdnn_gru_se_forward.11} parent=11 // pred_check_branch
          %276 = sbr.rel (%p274) target = $region44
        $region43: #{tdnn_gru_se_forward.11} parent=11 // pred_region
          _
        $region44: #{tdnn_gru_se_forward.11} parent=11 // pred_fallthru
          _
      $region12: #{tdnn_gru_se_forward.11} parent=5 // pred_fallthru
        _
      %p277 = scmp.lt.s32.totalorder %s18, 2
      // Predicated region
      $region45: #{tdnn_gru_se_forward.11} parent=5 // pred_check
        %p278 = pneg %p277
      $region46: #{tdnn_gru_se_forward.11} parent=5 // pred_check_branch
        %280 = sbr.rel (%p278) target = $region48
      $region47: #{tdnn_gru_se_forward.11} parent=5 // pred_region
        // Predicated region
        $region49: #{tdnn_gru_se_forward.11} parent=47 // pred_check
          %p281 = pneg %p38
        $region50: #{tdnn_gru_se_forward.11} parent=47 // pred_check_branch
          %283 = sbr.rel (%p281) target = $region52
        $region51: #{tdnn_gru_se_forward.11} parent=47 // pred_region
          %p284 = scmp.lt.s32.totalorder %s18, 1
          %s285 = scalar_select %p284, %s18, 1
          %s286 = smul.addr %s285, 2
          %s287 = smul.addr %s286, 8
          %s288 = scalar_lea.vmem %s0, %s287
        $region52: #{tdnn_gru_se_forward.11} parent=47 // pred_fallthru
          _
      $region48: #{tdnn_gru_se_forward.11} parent=5 // pred_fallthru
        _
      %p289 = scmp.le.s32.totalorder 1, %s18
      %p290 = scmp.lt.s32.totalorder %s18, 3
      %p291 = pnand %p289, %p290
      %p292 = pneg %p291
      // Predicated region
      $region53: #{tdnn_gru_se_forward.11} parent=5 // pred_check
        _
      $region54: #{tdnn_gru_se_forward.11} parent=5 // pred_check_branch
        %294 = sbr.rel (%p291) target = $region56
      $region55: #{tdnn_gru_se_forward.11} parent=5 // pred_region
        %s295 = ssub.s32 %s18, 1
        %p296 = scmp.lt.s32.totalorder %s23, 1
        %s297 = scalar_select %p296, %s23, 1
        %s298 = smul.addr %s297, 2
        %s299 = smul.addr %s298, 8
        %s300 = scalar_lea.vmem %s0, %s299
        %p301 = pneg %p44
        %p302 = pneg %p41
        %p303 = pneg %p65
        %p304 = pneg %p62
        %p305 = pneg %p86
        %p306 = pneg %p83
        %p307 = pneg %p107
        %p308 = pneg %p104
        %p309 = pneg %p128
        %p310 = pneg %p125
        %p311 = pneg %p149
        %p312 = pneg %p146
        %p313 = pneg %p170
        %p314 = pneg %p167
        %p315 = pneg %p191
        %p316 = pneg %p188
        %p317 = pneg %p212
        %p318 = pneg %p209
        %p319 = pneg %p238
        %p320 = pneg %p235
        %s321 = sand.u32 %s225, 1
        %s322 = scalar_lea.sflag [#allocation3], %s321
        %s323 = sand.u32 %s225, 1
        %s324 = scalar_lea.vmem [#allocation2], %s323
        %p325 = scmp.lt.s32.totalorder %s23, 1
        %s326 = scalar_select %p325, %s23, 1
        %s327 = smul.addr %s326, 2
        %s328 = smul.addr %s327, 8
        %s329 = scalar_lea.vmem %s0, %s328
        %v331 = vld [vmem:[%s329] sm:$0xff]
        %v332 = vld [vmem:[%s329 + $0x8] sm:$0xff]
        %v333 = vpack.c.bf16 %v332, %v331
        %v334 = vld [vmem:[%s1] sm:$0xf]
        %v335 = vld [vmem:[%s1 + $0x4] sm:$0xf]
        %v336 = vld [vmem:[%s1 + $0x8] sm:$0xf]
        %v337 = vld [vmem:[%s1 + $0xc] sm:$0xf]
        %v338 = vld [vmem:[%s1 + $0x10] sm:$0xf]
        %v339 = vld [vmem:[%s1 + $0x14] sm:$0xf]
        %v340 = vld [vmem:[%s1 + $0x18] sm:$0xf]
        %v341 = vld [vmem:[%s1 + $0x1c] sm:$0xf]
        %v342 = vld [vmem:[%s2] sm:$0x1]
        %v344 = vlaneseq
        %v345 = vshrl.u32 %v344, 7
        %v346 = vsub.s32 0, %v345
        %v347 = vrot.slane %v342, %v346
        %v357 = vunpack.c.l.b16 %v334
        %v358 = vunpack.c.l.b16 %v335
        %v359 = vunpack.c.l.b16 %v336
        %v360 = vunpack.c.l.b16 %v337
        %v361 = vunpack.c.l.b16 %v338
        %v362 = vunpack.c.l.b16 %v339
        %v363 = vunpack.c.l.b16 %v340
        %v364 = vunpack.c.l.b16 %v341
        %v365 = vpack.c.b16 %v358, %v357
        %v366 = vpack.c.b16 %v360, %v359
        %v367 = vpack.c.b16 %v362, %v361
        %v368 = vpack.c.b16 %v364, %v363
        %vm373 = vcmask 523264
        %v375 = vsel %vm373, %v333, 0
        %377 = vmatprep.subr.bf16.mxu0 0
        %378 = vmatpush1.bf16.msra.mxu0 %v365
        %379 = vmatprep.subr.bf16.mxu0 0
        %380 = vmatpush1.bf16.msra.mxu0 %v366
        %381 = vmatprep.subr.bf16.mxu0 0
        %382 = vmatpush1.bf16.msra.mxu0 %v367
        %383 = vmatprep.subr.bf16.mxu0 0
        %384 = vmatpush1.bf16.msra.mxu0 %v368
        %385 = vmatprep.subr.bf16.mxu0 0
        %386 = vmatpush1.bf16.msra.mxu0 0
        %387 = vmatprep.subr.bf16.mxu0 0
        %388 = vmatpush1.bf16.msra.mxu0 0
        %389 = vmatprep.subr.bf16.mxu0 0
        %390 = vmatpush1.bf16.msra.mxu0 0
        %391 = vmatprep.subr.bf16.mxu0 0
        %392 = vmatpush1.bf16.msra.mxu0 0
        %393 = vmatprep.subr.bf16.mxu0 0
        %394 = vmatpush1.bf16.msra.mxu0 0
        %395 = vmatprep.subr.bf16.mxu0 0
        %396 = vmatpush1.bf16.msra.mxu0 0
        %397 = vmatprep.subr.bf16.mxu0 0
        %398 = vmatpush1.bf16.msra.mxu0 0
        %399 = vmatprep.subr.bf16.mxu0 0
        %400 = vmatpush1.bf16.msra.mxu0 0
        %401 = vmatprep.subr.bf16.mxu0 0
        %402 = vmatpush1.bf16.msra.mxu0 0
        %403 = vmatprep.subr.bf16.mxu0 0
        %404 = vmatpush1.bf16.msra.mxu0 0
        %405 = vmatprep.subr.bf16.mxu0 0
        %406 = vmatpush1.bf16.msra.mxu0 0
        %407 = vmatprep.subr.bf16.mxu0 0
        %408 = vmatpush1.bf16.msra.mxu0 0
        %409 = vmatprep.mubr.bf16.mxu0 0
        %410 = vmatmul.mubr.bf16.gmra.mrb[0].mxu0 %v375
        %v411 = vpop.f32.mrb[0].mxu0
        %v412 = vadd.f32 %v347, %v411
        %v413 = vpop.f32.mrb[0].mxu0
        %v414 = vpop.f32.mrb[0].mxu0
        %v415 = vadd.f32 %v347, %v414
        %v416 = vpop.f32.mrb[0].mxu0
        %417 = vdwg.mxu0
        %v418 = vtanh.pop %v412
        %v419 = vtanh.pop %v415
        %v420 = vpack.c.bf16 %v419, %v418
        %v421 = vld [vmem:[%s3] sm:$0xf]
        %v422 = vld [vmem:[%s3 + $0x4] sm:$0xf]
        %v423 = vld [vmem:[%s3 + $0x8] sm:$0xf]
        %v424 = vld [vmem:[%s3 + $0xc] sm:$0xf]
        %v425 = vld [vmem:[%s4] sm:$0x1]
        %v427 = vlaneseq
        %v428 = vshrl.u32 %v427, 7
        %v429 = vsub.s32 0, %v428
        %v430 = vrot.slane %v425, %v429
        %v436 = vunpack.c.l.b16 %v421
        %v437 = vunpack.c.l.b16 %v422
        %v438 = vunpack.c.l.b16 %v423
        %v439 = vunpack.c.l.b16 %v424
        %v440 = vpack.c.b16 %v437, %v436
        %v441 = vpack.c.b16 %v439, %v438
        %vm444 = vcmask 261120
        %v446 = vsel %vm444, %v420, 0
        %448 = vmatprep.subr.bf16.mxu0 0
        %449 = vmatpush1.bf16.msra.mxu0 %v440
        %450 = vmatprep.subr.bf16.mxu0 0
        %451 = vmatpush1.bf16.msra.mxu0 %v441
        %452 = vmatprep.subr.bf16.mxu0 0
        %453 = vmatpush1.bf16.msra.mxu0 0
        %454 = vmatprep.subr.bf16.mxu0 0
        %455 = vmatpush1.bf16.msra.mxu0 0
        %456 = vmatprep.subr.bf16.mxu0 0
        %457 = vmatpush1.bf16.msra.mxu0 0
        %458 = vmatprep.subr.bf16.mxu0 0
        %459 = vmatpush1.bf16.msra.mxu0 0
        %460 = vmatprep.subr.bf16.mxu0 0
        %461 = vmatpush1.bf16.msra.mxu0 0
        %462 = vmatprep.subr.bf16.mxu0 0
        %463 = vmatpush1.bf16.msra.mxu0 0
        %464 = vmatprep.subr.bf16.mxu0 0
        %465 = vmatpush1.bf16.msra.mxu0 0
        %466 = vmatprep.subr.bf16.mxu0 0
        %467 = vmatpush1.bf16.msra.mxu0 0
        %468 = vmatprep.subr.bf16.mxu0 0
        %469 = vmatpush1.bf16.msra.mxu0 0
        %470 = vmatprep.subr.bf16.mxu0 0
        %471 = vmatpush1.bf16.msra.mxu0 0
        %472 = vmatprep.subr.bf16.mxu0 0
        %473 = vmatpush1.bf16.msra.mxu0 0
        %474 = vmatprep.subr.bf16.mxu0 0
        %475 = vmatpush1.bf16.msra.mxu0 0
        %476 = vmatprep.subr.bf16.mxu0 0
        %477 = vmatpush1.bf16.msra.mxu0 0
        %478 = vmatprep.subr.bf16.mxu0 0
        %479 = vmatpush1.bf16.msra.mxu0 0
        %480 = vmatprep.mubr.bf16.mxu0 0
        %481 = vmatmul.mubr.bf16.gmra.mrb[0].mxu0 %v446
        %v482 = vpop.f32.mrb[0].mxu0
        %v483 = vadd.f32 %v430, %v482
        %v484 = vpop.f32.mrb[0].mxu0
        %v485 = vpop.f32.mrb[0].mxu0
        %v486 = vadd.f32 %v430, %v485
        %v487 = vpop.f32.mrb[0].mxu0
        %488 = vdwg.mxu0
        %v489 = vsel %vm373, %v483, -inf
        %v490 = vsel %vm373, %v486, -inf
        %v491 = vmax.f32 %v489, %v490
        %v492 = vrot.slane %v491, 4
        %v493 = vmax.f32 %v491, %v492
        %v494 = vrot.slane %v493, 2
        %v495 = vmax.f32 %v493, %v494
        %v496 = vrot.slane %v495, 1
        %v497 = vmax.f32 %v495, %v496
        %v498 = vsub.f32 %v483, %v497
        %v499 = vsub.f32 %v486, %v497
        %v500 = vmul.f32 %v498, 1.442695
        %v501 = vpow.pop %v500
        %v502 = vmul.f32 %v499, 1.442695
        %v503 = vpow.pop %v502
        %v504 = vsel %vm373, %v501, 0.0
        %v505 = vsel %vm373, %v503, 0.0
        %v506 = vadd.f32 %v504, %v505
        %v507 = vrot.slane %v506, 4
        %v508 = vadd.f32 %v506, %v507
        %v509 = vrot.slane %v508, 2
        %v510 = vadd.f32 %v508, %v509
        %v511 = vrot.slane %v510, 1
        %v512 = vadd.f32 %v510, %v511
        %v513 = vrcp.pop %v512
        %v514 = vmul.f32 %v501, %v513
        %v515 = vmul.f32 %v503, %v513
        %v516 = vmul.f32 %v514, %v331
        %v517 = vmul.f32 %v515, %v332
        %v518 = vsel %vm373, %v516, 0.0
        %v519 = vsel %vm373, %v517, 0.0
        %v520 = vadd.f32 %v518, %v519
        %v521 = vrot.slane %v520, 4
        %v522 = vadd.f32 %v520, %v521
        %v523 = vrot.slane %v522, 2
        %v524 = vadd.f32 %v522, %v523
        %v525 = vrot.slane %v524, 1
        %v526 = vadd.f32 %v524, %v525
        %v527 = vmul.f32 %v516, %v331
        %v528 = vmul.f32 %v517, %v332
        %v529 = vsel %vm373, %v527, 0.0
        %v530 = vsel %vm373, %v528, 0.0
        %v531 = vadd.f32 %v529, %v530
        %v532 = vrot.slane %v531, 4
        %v533 = vadd.f32 %v531, %v532
        %v534 = vrot.slane %v533, 2
        %v535 = vadd.f32 %v533, %v534
        %v536 = vrot.slane %v535, 1
        %v537 = vadd.f32 %v535, %v536
        %v538 = vmul.f32 %v526, %v526
        %v539 = vsub.f32 %v537, %v538
        %v540 = vmax.f32 %v539, 1e-09
        %v541 = vrsqrt.pop %v540
        %v542 = vmul.f32 %v540, %v541
        %vm543 = vcmp.eq.f32.partialorder %v540, inf
        %v544 = vsel %vm543, %v540, %v542
        %vm545 = vcmp.eq.f32.partialorder %v540, 0.0
        %v546 = vand.u32 %v540, 2147483648
        %v547 = vsel %vm545, %v546, %v544
        %549 = vrot.lane.b32.xlu0 %v547, 64
        %v550 = vpop.permute.xlu0 %549
        %v552 = vsel %vm373, %v526, %v550
        %v553 = vpack.c.bf16 %v552, %v552
        %v554 = vld [vmem:[%s5] sm:$0xf]
        %v555 = vld [vmem:[%s5 + $0x4] sm:$0xf]
        %v556 = vld [vmem:[%s5 + $0x8] sm:$0xf]
        %v557 = vld [vmem:[%s5 + $0xc] sm:$0xf]
        %v558 = vld [vmem:[%s5 + $0x10] sm:$0xf]
        %v559 = vld [vmem:[%s5 + $0x14] sm:$0xf]
        %v560 = vld [vmem:[%s5 + $0x18] sm:$0xf]
        %v561 = vld [vmem:[%s5 + $0x1c] sm:$0xf]
        %v562 = vld [vmem:[%s5 + $0x20] sm:$0xf]
        %v563 = vld [vmem:[%s5 + $0x24] sm:$0xf]
        %v564 = vld [vmem:[%s5 + $0x28] sm:$0xf]
        %v565 = vld [vmem:[%s5 + $0x2c] sm:$0xf]
        %v566 = vld [vmem:[%s5 + $0x30] sm:$0xf]
        %v567 = vld [vmem:[%s5 + $0x34] sm:$0xf]
        %v568 = vld [vmem:[%s5 + $0x38] sm:$0xf]
        %v569 = vld [vmem:[%s5 + $0x3c] sm:$0xf]
        %v570 = vld [vmem:[%s6] sm:$0x1]
        %v587 = vunpack.c.l.b16 %v554
        %v588 = vunpack.c.l.b16 %v555
        %v589 = vunpack.c.l.b16 %v556
        %v590 = vunpack.c.l.b16 %v557
        %v591 = vunpack.c.l.b16 %v558
        %v592 = vunpack.c.l.b16 %v559
        %v593 = vunpack.c.l.b16 %v560
        %v594 = vunpack.c.l.b16 %v561
        %v595 = vunpack.c.l.b16 %v562
        %v596 = vunpack.c.l.b16 %v563
        %v597 = vunpack.c.l.b16 %v564
        %v598 = vunpack.c.l.b16 %v565
        %v599 = vunpack.c.l.b16 %v566
        %v600 = vunpack.c.l.b16 %v567
        %v601 = vunpack.c.l.b16 %v568
        %v602 = vunpack.c.l.b16 %v569
        %v603 = vpack.c.b16 %v588, %v587
        %v604 = vpack.c.b16 %v590, %v589
        %v605 = vpack.c.b16 %v592, %v591
        %v606 = vpack.c.b16 %v594, %v593
        %v607 = vpack.c.b16 %v596, %v595
        %v608 = vpack.c.b16 %v598, %v597
        %v609 = vpack.c.b16 %v600, %v599
        %v610 = vpack.c.b16 %v602, %v601
        %619 = vmatprep.subr.bf16.mxu0 0
        %620 = vmatpush1.bf16.msra.mxu0 %v603
        %621 = vmatprep.subr.bf16.mxu0 0
        %622 = vmatpush1.bf16.msra.mxu0 %v604
        %623 = vmatprep.subr.bf16.mxu0 0
        %624 = vmatpush1.bf16.msra.mxu0 %v605
        %625 = vmatprep.subr.bf16.mxu0 0
        %626 = vmatpush1.bf16.msra.mxu0 %v606
        %627 = vmatprep.subr.bf16.mxu0 0
        %628 = vmatpush1.bf16.msra.mxu0 %v607
        %629 = vmatprep.subr.bf16.mxu0 0
        %630 = vmatpush1.bf16.msra.mxu0 %v608
        %631 = vmatprep.subr.bf16.mxu0 0
        %632 = vmatpush1.bf16.msra.mxu0 %v609
        %633 = vmatprep.subr.bf16.mxu0 0
        %634 = vmatpush1.bf16.msra.mxu0 %v610
        %635 = vmatprep.subr.bf16.mxu0 0
        %636 = vmatpush1.bf16.msra.mxu0 0
        %637 = vmatprep.subr.bf16.mxu0 0
        %638 = vmatpush1.bf16.msra.mxu0 0
        %639 = vmatprep.subr.bf16.mxu0 0
        %640 = vmatpush1.bf16.msra.mxu0 0
        %641 = vmatprep.subr.bf16.mxu0 0
        %642 = vmatpush1.bf16.msra.mxu0 0
        %643 = vmatprep.subr.bf16.mxu0 0
        %644 = vmatpush1.bf16.msra.mxu0 0
        %645 = vmatprep.subr.bf16.mxu0 0
        %646 = vmatpush1.bf16.msra.mxu0 0
        %647 = vmatprep.subr.bf16.mxu0 0
        %648 = vmatpush1.bf16.msra.mxu0 0
        %649 = vmatprep.subr.bf16.mxu0 0
        %650 = vmatpush1.bf16.msra.mxu0 0
        %651 = vmatprep.mubr.bf16.mxu0 0
        %652 = vmatmul.mubr.bf16.gmra.mrb[0].mxu0 %v553
        %v653 = vpop.f32.mrb[0].mxu0
        %v654 = vadd.f32 %v570, %v653
        %v655 = vpop.f32.mrb[0].mxu0
        %v656 = vpop.f32.mrb[0].mxu0
        %v657 = vpop.f32.mrb[0].mxu0
        %658 = vdwg.mxu0
        %v659 = vpack.c.bf16 %v654, %v654
        %v660 = vld [vmem:[%s7] sm:$0xf]
        %v661 = vld [vmem:[%s7 + $0x4] sm:$0xf]
        %v662 = vld [vmem:[%s7 + $0x8] sm:$0xf]
        %v663 = vld [vmem:[%s7 + $0xc] sm:$0xf]
        %v664 = vld [vmem:[%s8] sm:$0x1]
        %v669 = vunpack.c.l.b16 %v660
        %v670 = vunpack.c.l.b16 %v661
        %v671 = vunpack.c.l.b16 %v662
        %v672 = vunpack.c.l.b16 %v663
        %v673 = vpack.c.b16 %v670, %v669
        %v674 = vpack.c.b16 %v672, %v671
        %v678 = vsel %vm444, %v659, 0
        %680 = vmatprep.subr.bf16.mxu0 0
        %681 = vmatpush1.bf16.msra.mxu0 %v673
        %682 = vmatprep.subr.bf16.mxu0 0
        %683 = vmatpush1.bf16.msra.mxu0 %v674
        %684 = vmatprep.subr.bf16.mxu0 0
        %685 = vmatpush1.bf16.msra.mxu0 0
        %686 = vmatprep.subr.bf16.mxu0 0
        %687 = vmatpush1.bf16.msra.mxu0 0
        %688 = vmatprep.subr.bf16.mxu0 0
        %689 = vmatpush1.bf16.msra.mxu0 0
        %690 = vmatprep.subr.bf16.mxu0 0
        %691 = vmatpush1.bf16.msra.mxu0 0
        %692 = vmatprep.subr.bf16.mxu0 0
        %693 = vmatpush1.bf16.msra.mxu0 0
        %694 = vmatprep.subr.bf16.mxu0 0
        %695 = vmatpush1.bf16.msra.mxu0 0
        %696 = vmatprep.subr.bf16.mxu0 0
        %697 = vmatpush1.bf16.msra.mxu0 0
        %698 = vmatprep.subr.bf16.mxu0 0
        %699 = vmatpush1.bf16.msra.mxu0 0
        %700 = vmatprep.subr.bf16.mxu0 0
        %701 = vmatpush1.bf16.msra.mxu0 0
        %702 = vmatprep.subr.bf16.mxu0 0
        %703 = vmatpush1.bf16.msra.mxu0 0
        %704 = vmatprep.subr.bf16.mxu0 0
        %705 = vmatpush1.bf16.msra.mxu0 0
        %706 = vmatprep.subr.bf16.mxu0 0
        %707 = vmatpush1.bf16.msra.mxu0 0
        %708 = vmatprep.subr.bf16.mxu0 0
        %709 = vmatpush1.bf16.msra.mxu0 0
        %710 = vmatprep.subr.bf16.mxu0 0
        %711 = vmatpush1.bf16.msra.mxu0 0
        %712 = vmatprep.mubr.bf16.mxu0 0
        %713 = vmatmul.mubr.bf16.gmra.mrb[0].mxu0 %v678
        %v714 = vpop.f32.mrb[0].mxu0
        %v715 = vadd.f32 %v664, %v714
        %v716 = vpop.f32.mrb[0].mxu0
        %v717 = vpop.f32.mrb[0].mxu0
        %v718 = vpop.f32.mrb[0].mxu0
        %719 = vdwg.mxu0
        %vm720 = vcmask 73728
        %v721 = vsel %vm720, %v715, -inf
        %722 = vmax.xlane.f32.xlu0 %v721
        %v723 = vpop.xlane.xlu0 %722
        %v724 = vsub.f32 %v715, %v723
        %v725 = vmul.f32 %v724, 1.442695
        %v726 = vpow.pop %v725
        %v727 = vsel %vm720, %v726, 0.0
        %728 = vadd.xlane.f32.xlu0 %v727
        %v729 = vpop.xlane.xlu0 %728
        %v730 = vrcp.pop %v729
        %v731 = vmul.f32 %v726, %v730
        %732 = vst.msk [vmem:[%s324] sm:$0x1] %vm720, %v731
        %s733 = sand.u32 %s225, 1
        %s734 = scalar_lea.sflag [#allocation3], %s733
        %s735 = sand.u32 %s225, 1
        %s736 = scalar_lea.vmem [#allocation2], %s735
        // Predicated region
        $region57: #{tdnn_gru_se_forward.11} parent=55 // pred_check
          %p737 = pneg %p235
        $region58: #{tdnn_gru_se_forward.11} parent=55 // pred_check_branch
          %739 = sbr.rel (%p737) target = $region60
        $region59: #{tdnn_gru_se_forward.11} parent=55 // pred_region
          %s741 = ssub.s32 16, 16
          %742 = vsyncadd %s734, %s741
          %s743 = smul.addr %s23, 16
          %s744 = scalar_lea.hbm %s9, %s743
          %s746 = sshll.u32 %s736, 4
          %s747 = int_to_ptr.vmem [resolvable:$true] %s746
          %749 = dma.vmem_to_hbm [thread:$0]  %s747, 16, %s744, %s734
        $region60: #{tdnn_gru_se_forward.11} parent=55 // pred_fallthru
          _
      $region56: #{tdnn_gru_se_forward.11} parent=5 // pred_fallthru
        _
      %p750 = scmp.le.s32.totalorder 2, %s18
      // Predicated region
      $region61: #{tdnn_gru_se_forward.11} parent=5 // pred_check
        %p751 = pneg %p750
      $region62: #{tdnn_gru_se_forward.11} parent=5 // pred_check_branch
        %753 = sbr.rel (%p751) target = $region64
      $region63: #{tdnn_gru_se_forward.11} parent=5 // pred_region
        %s754 = ssub.s32 %s18, 2
        // Predicated region
        $region65: #{tdnn_gru_se_forward.11} parent=63 // pred_check
          %p755 = pneg %p241
        $region66: #{tdnn_gru_se_forward.11} parent=63 // pred_check_branch
          %757 = sbr.rel (%p755) target = $region68
        $region67: #{tdnn_gru_se_forward.11} parent=63 // pred_region
          %s758 = sand.u32 %s226, 1
          %s759 = scalar_lea.sflag [#allocation3], %s758
          %s760 = sand.u32 %s226, 1
          %s761 = scalar_lea.vmem [#allocation2], %s760
          %762 = dma.done %s759, 16
        $region68: #{tdnn_gru_se_forward.11} parent=63 // pred_fallthru
          _
      $region64: #{tdnn_gru_se_forward.11} parent=5 // pred_fallthru
        _
    $region6: #{tdnn_gru_se_forward.11} parent=1 // loop_footer
      %s22 = sadd.s32 1, %s18
    $region7: #{tdnn_gru_se_forward.11} parent=1 // loop_footer_branch
      %17 = sbr.rel target = $region3
    $region8: #{tdnn_gru_se_forward.11} parent=1 // loop_exit
      _
    %763 = vsyncpa [#allocation3], 1
    %s764 = scalar_lea.sflag [#allocation3], 1
    %765 = vsyncpa %s764, 1

</llo_original>
